<compile_context>
chip_gen: v6e
topology: v6e:2x2x1
jax: 0.10.0
libtpu: 0.0.40
codegen_flags: <defaults>
</compile_context>

<pallas_src>
import functools
import math

import jax
import jax.numpy as jnp
from jax.experimental import pallas as pl
from jax.experimental.pallas import tpu as pltpu

# ---------------- model hyper-parameters (small, synthetic) ----------------
VOCAB = 128      # vocab size
BLOCK = 8        # sequence length (<= block_size of the reference)
N_EMBD = 32      # hidden size
N_HEAD = 4       # attention heads
HEAD_DIM = N_EMBD // N_HEAD
MLP_DIM = 4 * N_EMBD
LN_EPS = 1e-5

B_TILE = 16      # batch elements per grid step -> BT = B_TILE * BLOCK = 128

# packed per-layer vector slab layout (one lane-padded row per vector)
ROW_LN1_G, ROW_LN1_B = 0, 1
ROW_BQ, ROW_BK, ROW_BV = 2, 3, 4
ROW_BPROJ = 5
ROW_LN2_G, ROW_LN2_B = 6, 7
ROW_BFC, ROW_BFC2 = 8, 9
ROW_LNF_G, ROW_LNF_B = 10, 11
ROW_HEAD_MASK = 12                       # rows 12..12+N_HEAD-1: head lane masks
NUM_VEC_ROWS = ROW_HEAD_MASK + N_HEAD    # = 16 (multiple of 8 sublanes)
VEC_WIDTH = 128


# --------------------------- Pallas kernel ---------------------------------
def _gpt_block_kernel(
    x_ref,       # (B_TILE, T, D)   f32 embedded tokens
    vecs_ref,    # (16, 128)        f32 packed LN gains/biases, biases, head masks
    mask_ref,    # (BT, BT)         f32 block-diagonal causal additive bias
    wq_ref,      # (D, D)           bf16 (1/sqrt(hd) pre-folded)
    wk_ref,      # (D, D)           bf16
    wv_ref,      # (D, D)           bf16
    wproj_ref,   # (D, D)           bf16
    wfc_ref,     # (D, 4D)          bf16
    wfc2_ref,    # (4D, D)          bf16
    wlm_ref,     # (D, V)           bf16
    out_ref,     # (B_TILE, T, V)   f32
    *,
    n_head: int,
):
    bt, T, D = x_ref.shape
    BT = bt * T
    V = out_ref.shape[-1]

    def vec(row, width):
        # static slice of the packed vector slab -> (1, width) f32
        return vecs_ref[row:row + 1, :width]

    def layernorm(h, g, b):                        # stats stay f32
        mu = jnp.mean(h, axis=-1, keepdims=True)
        var = jnp.mean((h - mu) ** 2, axis=-1, keepdims=True)
        return (h - mu) * jax.lax.rsqrt(var + LN_EPS) * g + b

    x = x_ref[...].reshape(BT, D)                  # merge leading dims (cheap)

    # ---- causal multi-head self-attention ----
    h = layernorm(x, vec(ROW_LN1_G, D), vec(ROW_LN1_B, D)).astype(jnp.bfloat16)
    q = jnp.dot(h, wq_ref[...], preferred_element_type=jnp.float32) + vec(ROW_BQ, D)
    k = jnp.dot(h, wk_ref[...], preferred_element_type=jnp.float32) + vec(ROW_BK, D)
    v = jnp.dot(h, wv_ref[...], preferred_element_type=jnp.float32) + vec(ROW_BV, D)
    q_bf = q.astype(jnp.bfloat16)                  # single cast per tensor
    k_bf = k.astype(jnp.bfloat16)
    v_bf = v.astype(jnp.bfloat16)

    bias = mask_ref[...]                           # (BT, BT) f32, precomputed

    ctx = jnp.zeros((BT, D), jnp.float32)
    for hh in range(n_head):                       # static loop, full-width matmuls
        hm = vec(ROW_HEAD_MASK + hh, D).astype(jnp.bfloat16)   # 0/1 lane mask
        # scores: (BT, D)x(BT, D)^T with other-head lanes of q zeroed
        s = jax.lax.dot_general(q_bf * hm, k_bf, (((1,), (1,)), ((), ())),
                                preferred_element_type=jnp.float32) + bias
        s = s - jnp.max(s, axis=-1, keepdims=True)             # stable softmax (f32)
        p = jnp.exp(s)
        p = p * pl.reciprocal(jnp.sum(p, axis=-1, keepdims=True), approx=True)
        # context: masked v puts this head's output straight into its own
        # column block of ctx -> no concat needed before the proj matmul.
        ctx = ctx + jnp.dot(p.astype(jnp.bfloat16), v_bf * hm,
                            preferred_element_type=jnp.float32)

    x1 = x + jnp.dot(ctx.astype(jnp.bfloat16), wproj_ref[...],
                     preferred_element_type=jnp.float32) + vec(ROW_BPROJ, D)

    # ---- MLP ----
    h2 = layernorm(x1, vec(ROW_LN2_G, D), vec(ROW_LN2_B, D)).astype(jnp.bfloat16)
    ff = jax.nn.gelu(
        jnp.dot(h2, wfc_ref[...], preferred_element_type=jnp.float32)
        + vec(ROW_BFC, MLP_DIM))
    x2 = x1 + jnp.dot(ff.astype(jnp.bfloat16), wfc2_ref[...],
                      preferred_element_type=jnp.float32) + vec(ROW_BFC2, D)

    # ---- final LN + lm head ----
    hf = layernorm(x2, vec(ROW_LNF_G, D), vec(ROW_LNF_B, D)).astype(jnp.bfloat16)
    logits = jnp.dot(hf, wlm_ref[...], preferred_element_type=jnp.float32)
    out_ref[...] = logits.reshape(bt, T, V)
    # TODO(synk): at realistic GPT scale (vocab ~50k, D ~768) add a vocab grid
    # axis tiling w_lm / logits (v_tile ~2-8k), set vmem_limit_bytes explicitly
    # (v7x has only 64 MiB VMEM), and fuse the cross-entropy in-kernel via
    # scalar-prefetched targets + online logsumexp to avoid the f32 (B,T,V)
    # logits writeback to HBM.


# --------------------------- parameter setup --------------------------------
def init_params(key):
    def nrm(k, shape, scale=0.02):
        return (scale * jax.random.normal(k, shape)).astype(jnp.float32)

    ks = jax.random.split(key, 8)
    return dict(
        wte=nrm(ks[0], (VOCAB, N_EMBD)),
        wpe=nrm(ks[1], (BLOCK, N_EMBD)),
        ln1_g=jnp.ones((N_EMBD,), jnp.float32),
        ln1_b=jnp.zeros((N_EMBD,), jnp.float32),
        w_qkv=nrm(ks[2], (N_EMBD, 3 * N_EMBD)),
        b_qkv=jnp.zeros((3 * N_EMBD,), jnp.float32),
        w_proj=nrm(ks[3], (N_EMBD, N_EMBD)),
        b_proj=jnp.zeros((N_EMBD,), jnp.float32),
        ln2_g=jnp.ones((N_EMBD,), jnp.float32),
        ln2_b=jnp.zeros((N_EMBD,), jnp.float32),
        w_fc=nrm(ks[4], (N_EMBD, MLP_DIM)),
        b_fc=jnp.zeros((MLP_DIM,), jnp.float32),
        w_fc2=nrm(ks[5], (MLP_DIM, N_EMBD)),
        b_fc2=jnp.zeros((N_EMBD,), jnp.float32),
        lnf_g=jnp.ones((N_EMBD,), jnp.float32),
        lnf_b=jnp.zeros((N_EMBD,), jnp.float32),
        w_lm=nrm(ks[6], (N_EMBD, VOCAB)),
    )


def _pad_row(v):
    v = jnp.asarray(v, jnp.float32).reshape(-1)
    return jnp.pad(v, (0, VEC_WIDTH - v.shape[0]))


# --------------------------- forward wrapper --------------------------------
def rlhf_forward(params, idx, targets=None):
    """Equivalent of RLHF.forward(idx, targets) -> (logits, loss)."""
    B, T = idx.shape
    assert T <= BLOCK
    D = N_EMBD

    # glue: embedding gather + positional embedding (not the hot path)
    x = (params["wte"][idx] + params["wpe"][:T][None, :, :]).astype(jnp.float32)

    # pad batch up to a multiple of B_TILE (instead of gcd -> 1 degradation)
    b_tile = B_TILE
    B_pad = ((B + b_tile - 1) // b_tile) * b_tile
    if B_pad != B:
        x = jnp.pad(x, ((0, B_pad - B), (0, 0), (0, 0)))
    grid = (B_pad // b_tile,)
    BT = b_tile * T

    # fold 1/sqrt(head_dim) into the query weights/bias (zero in-kernel cost)
    scale = 1.0 / math.sqrt(HEAD_DIM)
    w_qkv = params["w_qkv"]
    wq = (w_qkv[:, :D] * scale).astype(jnp.bfloat16)
    wk = w_qkv[:, D:2 * D].astype(jnp.bfloat16)
    wv = w_qkv[:, 2 * D:].astype(jnp.bfloat16)
    b_qkv = params["b_qkv"]
    bq, bk, bv = b_qkv[:D] * scale, b_qkv[D:2 * D], b_qkv[2 * D:]

    w_proj = params["w_proj"].astype(jnp.bfloat16)
    w_fc = params["w_fc"].astype(jnp.bfloat16)
    w_fc2 = params["w_fc2"].astype(jnp.bfloat16)
    w_lm = params["w_lm"].astype(jnp.bfloat16)

    # packed vector slab: LN gains/biases, matmul biases, per-head lane masks
    rows = [params["ln1_g"], params["ln1_b"], bq, bk, bv, params["b_proj"],
            params["ln2_g"], params["ln2_b"], params["b_fc"], params["b_fc2"],
            params["lnf_g"], params["lnf_b"]]
    lane = jnp.arange(D)
    for h in range(N_HEAD):
        rows.append(((lane // HEAD_DIM) == h).astype(jnp.float32))
    vecs = jnp.stack([_pad_row(r) for r in rows], axis=0)      # (16, 128) f32

    # block-diagonal causal additive bias over flattened (b, t) rows (hoisted)
    r = jnp.arange(BT)
    rb, rt = r // T, r % T
    same_batch = rb[:, None] == rb[None, :]
    causal = rt[None, :] <= rt[:, None]
    mask_bias = jnp.where(same_batch & causal, 0.0, -1e30).astype(jnp.float32)

    kernel = functools.partial(_gpt_block_kernel, n_head=N_HEAD)
    full2 = lambda b: (0, 0)

    logits = pl.pallas_call(
        kernel,
        out_shape=jax.ShapeDtypeStruct((B_pad, T, VOCAB), jnp.float32),
        grid=grid,
        in_specs=[
            pl.BlockSpec((b_tile, T, D), lambda b: (b, 0, 0)),
            pl.BlockSpec((NUM_VEC_ROWS, VEC_WIDTH), full2),
            pl.BlockSpec((BT, BT), full2),
            pl.BlockSpec((D, D), full2),            # wq
            pl.BlockSpec((D, D), full2),            # wk
            pl.BlockSpec((D, D), full2),            # wv
            pl.BlockSpec((D, D), full2),            # wproj
            pl.BlockSpec((D, MLP_DIM), full2),      # wfc
            pl.BlockSpec((MLP_DIM, D), full2),      # wfc2
            pl.BlockSpec((D, VOCAB), full2),        # wlm
        ],
        out_specs=pl.BlockSpec((b_tile, T, VOCAB), lambda b: (b, 0, 0)),
        compiler_params=pltpu.CompilerParams(
            dimension_semantics=("parallel",)),
    )(x, vecs, mask_bias, wq, wk, wv, w_proj, w_fc, w_fc2, w_lm)

    logits = logits[:B]

    loss = None
    if targets is not None:
        # glue: cross-entropy over the Pallas-produced logits (toy vocab).
        logp = jax.nn.log_softmax(logits, axis=-1)
        nll = -jnp.take_along_axis(logp, targets[..., None], axis=-1)[..., 0]
        loss = jnp.mean(nll)
    return logits, loss

    # TODO(synk): RLHF.generate (Categorical sampling loop / KL ref model) is
    # autoregressive host-side control flow, not part of forward; not ported.


# --------------------------------- demo -------------------------------------
if __name__ == "__main__":
    key = jax.random.PRNGKey(0)
    pkey, dkey, tkey = jax.random.split(key, 3)

    params = init_params(pkey)
    B = 32                                   # grid of 2 steps at B_TILE=16
    idx = jax.random.randint(dkey, (B, BLOCK), 0, VOCAB, dtype=jnp.int32)
    targets = jax.random.randint(tkey, (B, BLOCK), 0, VOCAB, dtype=jnp.int32)

    logits, _ = rlhf_forward(params, idx, targets=None)
    logits = jax.block_until_ready(logits)
    assert logits.shape == (B, BLOCK, VOCAB)
    assert bool(jnp.all(jnp.isfinite(logits)))

    logits2, loss = rlhf_forward(params, idx, targets=targets)
    jax.block_until_ready((logits2, loss))
    assert bool(jnp.isfinite(loss))

    print("KERNEL_OK")
</pallas_src>

<mosaic_0001>
module attributes {stable_mosaic.version = 11 : i64} {
  func.func @_gpt_block_kernel(%arg0: i32, %arg1: memref<16x8x32xf32, #tpu.memory_space<vmem>>, %arg2: memref<16x128xf32, #tpu.memory_space<vmem>>, %arg3: memref<128x128xf32, #tpu.memory_space<vmem>>, %arg4: memref<32x32xbf16, #tpu.memory_space<vmem>>, %arg5: memref<32x32xbf16, #tpu.memory_space<vmem>>, %arg6: memref<32x32xbf16, #tpu.memory_space<vmem>>, %arg7: memref<32x32xbf16, #tpu.memory_space<vmem>>, %arg8: memref<32x128xbf16, #tpu.memory_space<vmem>>, %arg9: memref<128x32xbf16, #tpu.memory_space<vmem>>, %arg10: memref<32x128xbf16, #tpu.memory_space<vmem>>, %arg11: memref<16x8x128xf32, #tpu.memory_space<vmem>>) attributes {dimension_semantics = [#tpu.dimension_semantics<parallel>], iteration_bounds = array<i64: 2>, scalar_prefetch = 0 : i64, scratch_operands = 0 : i64, tpu.core_type = #tpu.core_type<tc>, window_params = [{transform_indices = @transform_0, window_bounds = array<i64: 16, 8, 32>}, {pipeline_mode = #tpu.pipeline_mode<synchronous>, transform_indices = @transform_1, window_bounds = array<i64: 16, 128>}, {pipeline_mode = #tpu.pipeline_mode<synchronous>, transform_indices = @transform_2, window_bounds = array<i64: 128, 128>}, {pipeline_mode = #tpu.pipeline_mode<synchronous>, transform_indices = @transform_3, window_bounds = array<i64: 32, 32>}, {pipeline_mode = #tpu.pipeline_mode<synchronous>, transform_indices = @transform_4, window_bounds = array<i64: 32, 32>}, {pipeline_mode = #tpu.pipeline_mode<synchronous>, transform_indices = @transform_5, window_bounds = array<i64: 32, 32>}, {pipeline_mode = #tpu.pipeline_mode<synchronous>, transform_indices = @transform_6, window_bounds = array<i64: 32, 32>}, {pipeline_mode = #tpu.pipeline_mode<synchronous>, transform_indices = @transform_7, window_bounds = array<i64: 32, 128>}, {pipeline_mode = #tpu.pipeline_mode<synchronous>, transform_indices = @transform_8, window_bounds = array<i64: 128, 32>}, {pipeline_mode = #tpu.pipeline_mode<synchronous>, transform_indices = @transform_9, window_bounds = array<i64: 32, 128>}, {transform_indices = @transform_10, window_bounds = array<i64: 16, 8, 128>}]} {
    %c0 = arith.constant 0 : index
    %c0_0 = arith.constant 0 : index
    %c0_1 = arith.constant 0 : index
    %0 = vector.load %arg1[%c0, %c0_0, %c0_1] : memref<16x8x32xf32, #tpu.memory_space<vmem>>, vector<16x8x32xf32>
    %1 = vector.shape_cast %0 : vector<16x8x32xf32> to vector<128x32xf32>
    %c0_2 = arith.constant 0 : index
    %c0_3 = arith.constant 0 : index
    %2 = vector.load %arg2[%c0_2, %c0_3] : memref<16x128xf32, #tpu.memory_space<vmem>>, vector<1x32xf32>
    %c1 = arith.constant 1 : index
    %c0_4 = arith.constant 0 : index
    %3 = vector.load %arg2[%c1, %c0_4] : memref<16x128xf32, #tpu.memory_space<vmem>>, vector<1x32xf32>
    %cst = arith.constant dense<0.000000e+00> : vector<128xf32>
    %4 = vector.multi_reduction <add>, %1, %cst [1] : vector<128x32xf32> to vector<128xf32>
    %5 = vector.shape_cast %4 : vector<128xf32> to vector<128x1xf32>
    %cst_5 = arith.constant 3.200000e+01 : f32
    %6 = vector.broadcast %cst_5 : f32 to vector<128x1xf32>
    %7 = arith.divf %5, %6 : vector<128x1xf32>
    %8 = vector.broadcast %7 : vector<128x1xf32> to vector<128x32xf32>
    %9 = arith.subf %1, %8 : vector<128x32xf32>
    %10 = arith.mulf %9, %9 : vector<128x32xf32>
    %cst_6 = arith.constant dense<0.000000e+00> : vector<128xf32>
    %11 = vector.multi_reduction <add>, %10, %cst_6 [1] : vector<128x32xf32> to vector<128xf32>
    %12 = vector.shape_cast %11 : vector<128xf32> to vector<128x1xf32>
    %cst_7 = arith.constant 3.200000e+01 : f32
    %13 = vector.broadcast %cst_7 : f32 to vector<128x1xf32>
    %14 = arith.divf %12, %13 : vector<128x1xf32>
    %15 = vector.broadcast %7 : vector<128x1xf32> to vector<128x32xf32>
    %16 = arith.subf %1, %15 : vector<128x32xf32>
    %cst_8 = arith.constant 9.99999974E-6 : f32
    %17 = vector.broadcast %cst_8 : f32 to vector<128x1xf32>
    %18 = arith.addf %14, %17 : vector<128x1xf32>
    %19 = math.rsqrt %18 : vector<128x1xf32>
    %20 = vector.broadcast %19 : vector<128x1xf32> to vector<128x32xf32>
    %21 = arith.mulf %16, %20 : vector<128x32xf32>
    %22 = vector.broadcast %2 : vector<1x32xf32> to vector<128x32xf32>
    %23 = arith.mulf %21, %22 : vector<128x32xf32>
    %24 = vector.broadcast %3 : vector<1x32xf32> to vector<128x32xf32>
    %25 = arith.addf %23, %24 : vector<128x32xf32>
    %26 = arith.truncf %25 : vector<128x32xf32> to vector<128x32xbf16>
    %c0_9 = arith.constant 0 : index
    %c0_10 = arith.constant 0 : index
    %27 = vector.load %arg4[%c0_9, %c0_10] : memref<32x32xbf16, #tpu.memory_space<vmem>>, vector<32x32xbf16>
    %cst_11 = arith.constant dense<0.000000e+00> : vector<128x32xf32>
    %28 = tpu.matmul %26, %27, %cst_11 {dimension_numbers = #tpu.dot_dimension_numbers<[1], [0], [0], [1], [0, 0, 1, 1], [], []>} : vector<128x32xbf16>, vector<32x32xbf16>, vector<128x32xf32> -> vector<128x32xf32>
    %c2 = arith.constant 2 : index
    %c0_12 = arith.constant 0 : index
    %29 = vector.load %arg2[%c2, %c0_12] : memref<16x128xf32, #tpu.memory_space<vmem>>, vector<1x32xf32>
    %30 = vector.broadcast %29 : vector<1x32xf32> to vector<128x32xf32>
    %31 = arith.addf %28, %30 : vector<128x32xf32>
    %c0_13 = arith.constant 0 : index
    %c0_14 = arith.constant 0 : index
    %32 = vector.load %arg5[%c0_13, %c0_14] : memref<32x32xbf16, #tpu.memory_space<vmem>>, vector<32x32xbf16>
    %cst_15 = arith.constant dense<0.000000e+00> : vector<128x32xf32>
    %33 = tpu.matmul %26, %32, %cst_15 {dimension_numbers = #tpu.dot_dimension_numbers<[1], [0], [0], [1], [0, 0, 1, 1], [], []>} : vector<128x32xbf16>, vector<32x32xbf16>, vector<128x32xf32> -> vector<128x32xf32>
    %c3 = arith.constant 3 : index
    %c0_16 = arith.constant 0 : index
    %34 = vector.load %arg2[%c3, %c0_16] : memref<16x128xf32, #tpu.memory_space<vmem>>, vector<1x32xf32>
    %35 = vector.broadcast %34 : vector<1x32xf32> to vector<128x32xf32>
    %36 = arith.addf %33, %35 : vector<128x32xf32>
    %c0_17 = arith.constant 0 : index
    %c0_18 = arith.constant 0 : index
    %37 = vector.load %arg6[%c0_17, %c0_18] : memref<32x32xbf16, #tpu.memory_space<vmem>>, vector<32x32xbf16>
    %cst_19 = arith.constant dense<0.000000e+00> : vector<128x32xf32>
    %38 = tpu.matmul %26, %37, %cst_19 {dimension_numbers = #tpu.dot_dimension_numbers<[1], [0], [0], [1], [0, 0, 1, 1], [], []>} : vector<128x32xbf16>, vector<32x32xbf16>, vector<128x32xf32> -> vector<128x32xf32>
    %c4 = arith.constant 4 : index
    %c0_20 = arith.constant 0 : index
    %39 = vector.load %arg2[%c4, %c0_20] : memref<16x128xf32, #tpu.memory_space<vmem>>, vector<1x32xf32>
    %40 = vector.broadcast %39 : vector<1x32xf32> to vector<128x32xf32>
    %41 = arith.addf %38, %40 : vector<128x32xf32>
    %42 = arith.truncf %31 : vector<128x32xf32> to vector<128x32xbf16>
    %43 = arith.truncf %36 : vector<128x32xf32> to vector<128x32xbf16>
    %44 = arith.truncf %41 : vector<128x32xf32> to vector<128x32xbf16>
    %c0_21 = arith.constant 0 : index
    %c0_22 = arith.constant 0 : index
    %45 = vector.load %arg3[%c0_21, %c0_22] : memref<128x128xf32, #tpu.memory_space<vmem>>, vector<128x128xf32>
    %cst_23 = arith.constant 0.000000e+00 : f32
    %46 = vector.broadcast %cst_23 : f32 to vector<128x32xf32>
    %c12 = arith.constant 12 : index
    %c0_24 = arith.constant 0 : index
    %47 = vector.load %arg2[%c12, %c0_24] : memref<16x128xf32, #tpu.memory_space<vmem>>, vector<1x32xf32>
    %48 = arith.truncf %47 : vector<1x32xf32> to vector<1x32xbf16>
    %49 = vector.broadcast %48 : vector<1x32xbf16> to vector<128x32xbf16>
    %50 = arith.mulf %42, %49 : vector<128x32xbf16>
    %cst_25 = arith.constant dense<0.000000e+00> : vector<128x128xf32>
    %51 = tpu.matmul %50, %43, %cst_25 {dimension_numbers = #tpu.dot_dimension_numbers<[1], [1], [0], [0], [0, 0, 1, 0], [], []>} : vector<128x32xbf16>, vector<128x32xbf16>, vector<128x128xf32> -> vector<128x128xf32>
    %52 = arith.addf %51, %45 : vector<128x128xf32>
    %cst_26 = arith.constant dense<0xFF800000> : vector<128xf32>
    %53 = vector.multi_reduction <maximumf>, %52, %cst_26 [1] : vector<128x128xf32> to vector<128xf32>
    %54 = vector.shape_cast %53 : vector<128xf32> to vector<128x1xf32>
    %55 = vector.broadcast %54 : vector<128x1xf32> to vector<128x128xf32>
    %56 = arith.subf %52, %55 : vector<128x128xf32>
    %57 = math.exp %56 : vector<128x128xf32>
    %cst_27 = arith.constant dense<0.000000e+00> : vector<128xf32>
    %58 = vector.multi_reduction <add>, %57, %cst_27 [1] : vector<128x128xf32> to vector<128xf32>
    %59 = vector.shape_cast %58 : vector<128xf32> to vector<128x1xf32>
    %60 = tpu.reciprocal %59 {approx = true} : vector<128x1xf32> -> vector<128x1xf32>
    %61 = vector.broadcast %60 : vector<128x1xf32> to vector<128x128xf32>
    %62 = arith.mulf %57, %61 : vector<128x128xf32>
    %63 = arith.truncf %62 : vector<128x128xf32> to vector<128x128xbf16>
    %64 = vector.broadcast %48 : vector<1x32xbf16> to vector<128x32xbf16>
    %65 = arith.mulf %44, %64 : vector<128x32xbf16>
    %cst_28 = arith.constant dense<0.000000e+00> : vector<128x32xf32>
    %66 = tpu.matmul %63, %65, %cst_28 {dimension_numbers = #tpu.dot_dimension_numbers<[1], [0], [0], [1], [0, 0, 1, 1], [], []>} : vector<128x128xbf16>, vector<128x32xbf16>, vector<128x32xf32> -> vector<128x32xf32>
    %67 = arith.addf %46, %66 : vector<128x32xf32>
    %c13 = arith.constant 13 : index
    %c0_29 = arith.constant 0 : index
    %68 = vector.load %arg2[%c13, %c0_29] : memref<16x128xf32, #tpu.memory_space<vmem>>, vector<1x32xf32>
    %69 = arith.truncf %68 : vector<1x32xf32> to vector<1x32xbf16>
    %70 = vector.broadcast %69 : vector<1x32xbf16> to vector<128x32xbf16>
    %71 = arith.mulf %42, %70 : vector<128x32xbf16>
    %cst_30 = arith.constant dense<0.000000e+00> : vector<128x128xf32>
    %72 = tpu.matmul %71, %43, %cst_30 {dimension_numbers = #tpu.dot_dimension_numbers<[1], [1], [0], [0], [0, 0, 1, 0], [], []>} : vector<128x32xbf16>, vector<128x32xbf16>, vector<128x128xf32> -> vector<128x128xf32>
    %73 = arith.addf %72, %45 : vector<128x128xf32>
    %cst_31 = arith.constant dense<0xFF800000> : vector<128xf32>
    %74 = vector.multi_reduction <maximumf>, %73, %cst_31 [1] : vector<128x128xf32> to vector<128xf32>
    %75 = vector.shape_cast %74 : vector<128xf32> to vector<128x1xf32>
    %76 = vector.broadcast %75 : vector<128x1xf32> to vector<128x128xf32>
    %77 = arith.subf %73, %76 : vector<128x128xf32>
    %78 = math.exp %77 : vector<128x128xf32>
    %cst_32 = arith.constant dense<0.000000e+00> : vector<128xf32>
    %79 = vector.multi_reduction <add>, %78, %cst_32 [1] : vector<128x128xf32> to vector<128xf32>
    %80 = vector.shape_cast %79 : vector<128xf32> to vector<128x1xf32>
    %81 = tpu.reciprocal %80 {approx = true} : vector<128x1xf32> -> vector<128x1xf32>
    %82 = vector.broadcast %81 : vector<128x1xf32> to vector<128x128xf32>
    %83 = arith.mulf %78, %82 : vector<128x128xf32>
    %84 = arith.truncf %83 : vector<128x128xf32> to vector<128x128xbf16>
    %85 = vector.broadcast %69 : vector<1x32xbf16> to vector<128x32xbf16>
    %86 = arith.mulf %44, %85 : vector<128x32xbf16>
    %cst_33 = arith.constant dense<0.000000e+00> : vector<128x32xf32>
    %87 = tpu.matmul %84, %86, %cst_33 {dimension_numbers = #tpu.dot_dimension_numbers<[1], [0], [0], [1], [0, 0, 1, 1], [], []>} : vector<128x128xbf16>, vector<128x32xbf16>, vector<128x32xf32> -> vector<128x32xf32>
    %88 = arith.addf %67, %87 : vector<128x32xf32>
    %c14 = arith.constant 14 : index
    %c0_34 = arith.constant 0 : index
    %89 = vector.load %arg2[%c14, %c0_34] : memref<16x128xf32, #tpu.memory_space<vmem>>, vector<1x32xf32>
    %90 = arith.truncf %89 : vector<1x32xf32> to vector<1x32xbf16>
    %91 = vector.broadcast %90 : vector<1x32xbf16> to vector<128x32xbf16>
    %92 = arith.mulf %42, %91 : vector<128x32xbf16>
    %cst_35 = arith.constant dense<0.000000e+00> : vector<128x128xf32>
    %93 = tpu.matmul %92, %43, %cst_35 {dimension_numbers = #tpu.dot_dimension_numbers<[1], [1], [0], [0], [0, 0, 1, 0], [], []>} : vector<128x32xbf16>, vector<128x32xbf16>, vector<128x128xf32> -> vector<128x128xf32>
    %94 = arith.addf %93, %45 : vector<128x128xf32>
    %cst_36 = arith.constant dense<0xFF800000> : vector<128xf32>
    %95 = vector.multi_reduction <maximumf>, %94, %cst_36 [1] : vector<128x128xf32> to vector<128xf32>
    %96 = vector.shape_cast %95 : vector<128xf32> to vector<128x1xf32>
    %97 = vector.broadcast %96 : vector<128x1xf32> to vector<128x128xf32>
    %98 = arith.subf %94, %97 : vector<128x128xf32>
    %99 = math.exp %98 : vector<128x128xf32>
    %cst_37 = arith.constant dense<0.000000e+00> : vector<128xf32>
    %100 = vector.multi_reduction <add>, %99, %cst_37 [1] : vector<128x128xf32> to vector<128xf32>
    %101 = vector.shape_cast %100 : vector<128xf32> to vector<128x1xf32>
    %102 = tpu.reciprocal %101 {approx = true} : vector<128x1xf32> -> vector<128x1xf32>
    %103 = vector.broadcast %102 : vector<128x1xf32> to vector<128x128xf32>
    %104 = arith.mulf %99, %103 : vector<128x128xf32>
    %105 = arith.truncf %104 : vector<128x128xf32> to vector<128x128xbf16>
    %106 = vector.broadcast %90 : vector<1x32xbf16> to vector<128x32xbf16>
    %107 = arith.mulf %44, %106 : vector<128x32xbf16>
    %cst_38 = arith.constant dense<0.000000e+00> : vector<128x32xf32>
    %108 = tpu.matmul %105, %107, %cst_38 {dimension_numbers = #tpu.dot_dimension_numbers<[1], [0], [0], [1], [0, 0, 1, 1], [], []>} : vector<128x128xbf16>, vector<128x32xbf16>, vector<128x32xf32> -> vector<128x32xf32>
    %109 = arith.addf %88, %108 : vector<128x32xf32>
    %c15 = arith.constant 15 : index
    %c0_39 = arith.constant 0 : index
    %110 = vector.load %arg2[%c15, %c0_39] : memref<16x128xf32, #tpu.memory_space<vmem>>, vector<1x32xf32>
    %111 = arith.truncf %110 : vector<1x32xf32> to vector<1x32xbf16>
    %112 = vector.broadcast %111 : vector<1x32xbf16> to vector<128x32xbf16>
    %113 = arith.mulf %42, %112 : vector<128x32xbf16>
    %cst_40 = arith.constant dense<0.000000e+00> : vector<128x128xf32>
    %114 = tpu.matmul %113, %43, %cst_40 {dimension_numbers = #tpu.dot_dimension_numbers<[1], [1], [0], [0], [0, 0, 1, 0], [], []>} : vector<128x32xbf16>, vector<128x32xbf16>, vector<128x128xf32> -> vector<128x128xf32>
    %115 = arith.addf %114, %45 : vector<128x128xf32>
    %cst_41 = arith.constant dense<0xFF800000> : vector<128xf32>
    %116 = vector.multi_reduction <maximumf>, %115, %cst_41 [1] : vector<128x128xf32> to vector<128xf32>
    %117 = vector.shape_cast %116 : vector<128xf32> to vector<128x1xf32>
    %118 = vector.broadcast %117 : vector<128x1xf32> to vector<128x128xf32>
    %119 = arith.subf %115, %118 : vector<128x128xf32>
    %120 = math.exp %119 : vector<128x128xf32>
    %cst_42 = arith.constant dense<0.000000e+00> : vector<128xf32>
    %121 = vector.multi_reduction <add>, %120, %cst_42 [1] : vector<128x128xf32> to vector<128xf32>
    %122 = vector.shape_cast %121 : vector<128xf32> to vector<128x1xf32>
    %123 = tpu.reciprocal %122 {approx = true} : vector<128x1xf32> -> vector<128x1xf32>
    %124 = vector.broadcast %123 : vector<128x1xf32> to vector<128x128xf32>
    %125 = arith.mulf %120, %124 : vector<128x128xf32>
    %126 = arith.truncf %125 : vector<128x128xf32> to vector<128x128xbf16>
    %127 = vector.broadcast %111 : vector<1x32xbf16> to vector<128x32xbf16>
    %128 = arith.mulf %44, %127 : vector<128x32xbf16>
    %cst_43 = arith.constant dense<0.000000e+00> : vector<128x32xf32>
    %129 = tpu.matmul %126, %128, %cst_43 {dimension_numbers = #tpu.dot_dimension_numbers<[1], [0], [0], [1], [0, 0, 1, 1], [], []>} : vector<128x128xbf16>, vector<128x32xbf16>, vector<128x32xf32> -> vector<128x32xf32>
    %130 = arith.addf %109, %129 : vector<128x32xf32>
    %131 = arith.truncf %130 : vector<128x32xf32> to vector<128x32xbf16>
    %c0_44 = arith.constant 0 : index
    %c0_45 = arith.constant 0 : index
    %132 = vector.load %arg7[%c0_44, %c0_45] : memref<32x32xbf16, #tpu.memory_space<vmem>>, vector<32x32xbf16>
    %cst_46 = arith.constant dense<0.000000e+00> : vector<128x32xf32>
    %133 = tpu.matmul %131, %132, %cst_46 {dimension_numbers = #tpu.dot_dimension_numbers<[1], [0], [0], [1], [0, 0, 1, 1], [], []>} : vector<128x32xbf16>, vector<32x32xbf16>, vector<128x32xf32> -> vector<128x32xf32>
    %134 = arith.addf %1, %133 : vector<128x32xf32>
    %c5 = arith.constant 5 : index
    %c0_47 = arith.constant 0 : index
    %135 = vector.load %arg2[%c5, %c0_47] : memref<16x128xf32, #tpu.memory_space<vmem>>, vector<1x32xf32>
    %136 = vector.broadcast %135 : vector<1x32xf32> to vector<128x32xf32>
    %137 = arith.addf %134, %136 : vector<128x32xf32>
    %c6 = arith.constant 6 : index
    %c0_48 = arith.constant 0 : index
    %138 = vector.load %arg2[%c6, %c0_48] : memref<16x128xf32, #tpu.memory_space<vmem>>, vector<1x32xf32>
    %c7 = arith.constant 7 : index
    %c0_49 = arith.constant 0 : index
    %139 = vector.load %arg2[%c7, %c0_49] : memref<16x128xf32, #tpu.memory_space<vmem>>, vector<1x32xf32>
    %cst_50 = arith.constant dense<0.000000e+00> : vector<128xf32>
    %140 = vector.multi_reduction <add>, %137, %cst_50 [1] : vector<128x32xf32> to vector<128xf32>
    %141 = vector.shape_cast %140 : vector<128xf32> to vector<128x1xf32>
    %cst_51 = arith.constant 3.200000e+01 : f32
    %142 = vector.broadcast %cst_51 : f32 to vector<128x1xf32>
    %143 = arith.divf %141, %142 : vector<128x1xf32>
    %144 = vector.broadcast %143 : vector<128x1xf32> to vector<128x32xf32>
    %145 = arith.subf %137, %144 : vector<128x32xf32>
    %146 = arith.mulf %145, %145 : vector<128x32xf32>
    %cst_52 = arith.constant dense<0.000000e+00> : vector<128xf32>
    %147 = vector.multi_reduction <add>, %146, %cst_52 [1] : vector<128x32xf32> to vector<128xf32>
    %148 = vector.shape_cast %147 : vector<128xf32> to vector<128x1xf32>
    %cst_53 = arith.constant 3.200000e+01 : f32
    %149 = vector.broadcast %cst_53 : f32 to vector<128x1xf32>
    %150 = arith.divf %148, %149 : vector<128x1xf32>
    %151 = vector.broadcast %143 : vector<128x1xf32> to vector<128x32xf32>
    %152 = arith.subf %137, %151 : vector<128x32xf32>
    %cst_54 = arith.constant 9.99999974E-6 : f32
    %153 = vector.broadcast %cst_54 : f32 to vector<128x1xf32>
    %154 = arith.addf %150, %153 : vector<128x1xf32>
    %155 = math.rsqrt %154 : vector<128x1xf32>
    %156 = vector.broadcast %155 : vector<128x1xf32> to vector<128x32xf32>
    %157 = arith.mulf %152, %156 : vector<128x32xf32>
    %158 = vector.broadcast %138 : vector<1x32xf32> to vector<128x32xf32>
    %159 = arith.mulf %157, %158 : vector<128x32xf32>
    %160 = vector.broadcast %139 : vector<1x32xf32> to vector<128x32xf32>
    %161 = arith.addf %159, %160 : vector<128x32xf32>
    %162 = arith.truncf %161 : vector<128x32xf32> to vector<128x32xbf16>
    %c0_55 = arith.constant 0 : index
    %c0_56 = arith.constant 0 : index
    %163 = vector.load %arg8[%c0_55, %c0_56] : memref<32x128xbf16, #tpu.memory_space<vmem>>, vector<32x128xbf16>
    %cst_57 = arith.constant dense<0.000000e+00> : vector<128x128xf32>
    %164 = tpu.matmul %162, %163, %cst_57 {dimension_numbers = #tpu.dot_dimension_numbers<[1], [0], [0], [1], [0, 0, 1, 1], [], []>} : vector<128x32xbf16>, vector<32x128xbf16>, vector<128x128xf32> -> vector<128x128xf32>
    %c8 = arith.constant 8 : index
    %c0_58 = arith.constant 0 : index
    %165 = vector.load %arg2[%c8, %c0_58] : memref<16x128xf32, #tpu.memory_space<vmem>>, vector<1x128xf32>
    %166 = vector.broadcast %165 : vector<1x128xf32> to vector<128x128xf32>
    %167 = arith.addf %164, %166 : vector<128x128xf32>
    %168 = arith.mulf %167, %167 : vector<128x128xf32>
    %169 = arith.mulf %167, %168 : vector<128x128xf32>
    %cst_59 = arith.constant 4.471500e-02 : f32
    %170 = vector.broadcast %cst_59 : f32 to vector<128x128xf32>
    %171 = arith.mulf %170, %169 : vector<128x128xf32>
    %172 = arith.addf %167, %171 : vector<128x128xf32>
    %cst_60 = arith.constant 0.797884583 : f32
    %173 = vector.broadcast %cst_60 : f32 to vector<128x128xf32>
    %174 = arith.mulf %173, %172 : vector<128x128xf32>
    %175 = math.tanh %174 : vector<128x128xf32>
    %cst_61 = arith.constant 1.000000e+00 : f32
    %176 = vector.broadcast %cst_61 : f32 to vector<128x128xf32>
    %177 = arith.addf %176, %175 : vector<128x128xf32>
    %cst_62 = arith.constant 5.000000e-01 : f32
    %178 = vector.broadcast %cst_62 : f32 to vector<128x128xf32>
    %179 = arith.mulf %178, %177 : vector<128x128xf32>
    %180 = arith.mulf %167, %179 : vector<128x128xf32>
    %181 = arith.truncf %180 : vector<128x128xf32> to vector<128x128xbf16>
    %c0_63 = arith.constant 0 : index
    %c0_64 = arith.constant 0 : index
    %182 = vector.load %arg9[%c0_63, %c0_64] : memref<128x32xbf16, #tpu.memory_space<vmem>>, vector<128x32xbf16>
    %cst_65 = arith.constant dense<0.000000e+00> : vector<128x32xf32>
    %183 = tpu.matmul %181, %182, %cst_65 {dimension_numbers = #tpu.dot_dimension_numbers<[1], [0], [0], [1], [0, 0, 1, 1], [], []>} : vector<128x128xbf16>, vector<128x32xbf16>, vector<128x32xf32> -> vector<128x32xf32>
    %184 = arith.addf %137, %183 : vector<128x32xf32>
    %c9 = arith.constant 9 : index
    %c0_66 = arith.constant 0 : index
    %185 = vector.load %arg2[%c9, %c0_66] : memref<16x128xf32, #tpu.memory_space<vmem>>, vector<1x32xf32>
    %186 = vector.broadcast %185 : vector<1x32xf32> to vector<128x32xf32>
    %187 = arith.addf %184, %186 : vector<128x32xf32>
    %c10 = arith.constant 10 : index
    %c0_67 = arith.constant 0 : index
    %188 = vector.load %arg2[%c10, %c0_67] : memref<16x128xf32, #tpu.memory_space<vmem>>, vector<1x32xf32>
    %c11 = arith.constant 11 : index
    %c0_68 = arith.constant 0 : index
    %189 = vector.load %arg2[%c11, %c0_68] : memref<16x128xf32, #tpu.memory_space<vmem>>, vector<1x32xf32>
    %cst_69 = arith.constant dense<0.000000e+00> : vector<128xf32>
    %190 = vector.multi_reduction <add>, %187, %cst_69 [1] : vector<128x32xf32> to vector<128xf32>
    %191 = vector.shape_cast %190 : vector<128xf32> to vector<128x1xf32>
    %cst_70 = arith.constant 3.200000e+01 : f32
    %192 = vector.broadcast %cst_70 : f32 to vector<128x1xf32>
    %193 = arith.divf %191, %192 : vector<128x1xf32>
    %194 = vector.broadcast %193 : vector<128x1xf32> to vector<128x32xf32>
    %195 = arith.subf %187, %194 : vector<128x32xf32>
    %196 = arith.mulf %195, %195 : vector<128x32xf32>
    %cst_71 = arith.constant dense<0.000000e+00> : vector<128xf32>
    %197 = vector.multi_reduction <add>, %196, %cst_71 [1] : vector<128x32xf32> to vector<128xf32>
    %198 = vector.shape_cast %197 : vector<128xf32> to vector<128x1xf32>
    %cst_72 = arith.constant 3.200000e+01 : f32
    %199 = vector.broadcast %cst_72 : f32 to vector<128x1xf32>
    %200 = arith.divf %198, %199 : vector<128x1xf32>
    %201 = vector.broadcast %193 : vector<128x1xf32> to vector<128x32xf32>
    %202 = arith.subf %187, %201 : vector<128x32xf32>
    %cst_73 = arith.constant 9.99999974E-6 : f32
    %203 = vector.broadcast %cst_73 : f32 to vector<128x1xf32>
    %204 = arith.addf %200, %203 : vector<128x1xf32>
    %205 = math.rsqrt %204 : vector<128x1xf32>
    %206 = vector.broadcast %205 : vector<128x1xf32> to vector<128x32xf32>
    %207 = arith.mulf %202, %206 : vector<128x32xf32>
    %208 = vector.broadcast %188 : vector<1x32xf32> to vector<128x32xf32>
    %209 = arith.mulf %207, %208 : vector<128x32xf32>
    %210 = vector.broadcast %189 : vector<1x32xf32> to vector<128x32xf32>
    %211 = arith.addf %209, %210 : vector<128x32xf32>
    %212 = arith.truncf %211 : vector<128x32xf32> to vector<128x32xbf16>
    %c0_74 = arith.constant 0 : index
    %c0_75 = arith.constant 0 : index
    %213 = vector.load %arg10[%c0_74, %c0_75] : memref<32x128xbf16, #tpu.memory_space<vmem>>, vector<32x128xbf16>
    %cst_76 = arith.constant dense<0.000000e+00> : vector<128x128xf32>
    %214 = tpu.matmul %212, %213, %cst_76 {dimension_numbers = #tpu.dot_dimension_numbers<[1], [0], [0], [1], [0, 0, 1, 1], [], []>} : vector<128x32xbf16>, vector<32x128xbf16>, vector<128x128xf32> -> vector<128x128xf32>
    %215 = vector.shape_cast %214 : vector<128x128xf32> to vector<16x8x128xf32>
    %c0_77 = arith.constant 0 : index
    %c0_78 = arith.constant 0 : index
    %c0_79 = arith.constant 0 : index
    %216 = vector.load %arg11[%c0_77, %c0_78, %c0_79] : memref<16x8x128xf32, #tpu.memory_space<vmem>>, vector<16x8x128xf32>
    tpu.vector_store %arg11[%c0_77, %c0_78, %c0_79], %215 {strides = array<i32>} : memref<16x8x128xf32, #tpu.memory_space<vmem>>, vector<16x8x128xf32>,
    return
  }
  func.func @transform_0(%arg0: i32) -> (i32, i32, i32) {
    %c0_i32 = arith.constant 0 : i32
    %c0_i32_0 = arith.constant 0 : i32
    %c0_i32_1 = arith.constant 0 : i32
    return %arg0, %c0_i32, %c0_i32_0 : i32, i32, i32
  }
  func.func @transform_1(%arg0: i32) -> (i32, i32) {
    %c0_i32 = arith.constant 0 : i32
    %c0_i32_0 = arith.constant 0 : i32
    %c0_i32_1 = arith.constant 0 : i32
    return %c0_i32, %c0_i32_0 : i32, i32
  }
  func.func @transform_2(%arg0: i32) -> (i32, i32) {
    %c0_i32 = arith.constant 0 : i32
    %c0_i32_0 = arith.constant 0 : i32
    %c0_i32_1 = arith.constant 0 : i32
    return %c0_i32, %c0_i32_0 : i32, i32
  }
  func.func @transform_3(%arg0: i32) -> (i32, i32) {
    %c0_i32 = arith.constant 0 : i32
    %c0_i32_0 = arith.constant 0 : i32
    %c0_i32_1 = arith.constant 0 : i32
    return %c0_i32, %c0_i32_0 : i32, i32
  }
  func.func @transform_4(%arg0: i32) -> (i32, i32) {
    %c0_i32 = arith.constant 0 : i32
    %c0_i32_0 = arith.constant 0 : i32
    %c0_i32_1 = arith.constant 0 : i32
    return %c0_i32, %c0_i32_0 : i32, i32
  }
  func.func @transform_5(%arg0: i32) -> (i32, i32) {
    %c0_i32 = arith.constant 0 : i32
    %c0_i32_0 = arith.constant 0 : i32
    %c0_i32_1 = arith.constant 0 : i32
    return %c0_i32, %c0_i32_0 : i32, i32
  }
  func.func @transform_6(%arg0: i32) -> (i32, i32) {
    %c0_i32 = arith.constant 0 : i32
    %c0_i32_0 = arith.constant 0 : i32
    %c0_i32_1 = arith.constant 0 : i32
    return %c0_i32, %c0_i32_0 : i32, i32
  }
  func.func @transform_7(%arg0: i32) -> (i32, i32) {
    %c0_i32 = arith.constant 0 : i32
    %c0_i32_0 = arith.constant 0 : i32
    %c0_i32_1 = arith.constant 0 : i32
    return %c0_i32, %c0_i32_0 : i32, i32
  }
  func.func @transform_8(%arg0: i32) -> (i32, i32) {
    %c0_i32 = arith.constant 0 : i32
    %c0_i32_0 = arith.constant 0 : i32
    %c0_i32_1 = arith.constant 0 : i32
    return %c0_i32, %c0_i32_0 : i32, i32
  }
  func.func @transform_9(%arg0: i32) -> (i32, i32) {
    %c0_i32 = arith.constant 0 : i32
    %c0_i32_0 = arith.constant 0 : i32
    %c0_i32_1 = arith.constant 0 : i32
    return %c0_i32, %c0_i32_0 : i32, i32
  }
  func.func @transform_10(%arg0: i32) -> (i32, i32, i32) {
    %c0_i32 = arith.constant 0 : i32
    %c0_i32_0 = arith.constant 0 : i32
    %c0_i32_1 = arith.constant 0 : i32
    return %arg0, %c0_i32, %c0_i32_0 : i32, i32, i32
  }
}

</mosaic_0001>

<llo_original>
// kernel: tpu_custom_call.1
$region0: #{tpu_custom_call.1}
  #allocation0 [shape = 'u32[]', space=smem, size = 0x4, offset = 0x4, fixed_abs, tag = 'smem constant byte address 0x4 - core index']
  #allocation1 [shape = 'u32[144,128]{1,0:T(1,128)}', space=vmem, size = 0x12000, scoped, tag = 'internal scratch']
  %s0 = inlined_call_operand.hbm [shape: f32[32,8,32], index: 0, kind: input, shape index: {}]
  %s1 = inlined_call_operand.vmem [shape: f32[16,128], index: 1, kind: input, shape index: {}]
  %s2 = inlined_call_operand.hbm [shape: f32[128,128], index: 2, kind: input, shape index: {}]
  %s3 = inlined_call_operand.vmem [shape: bf16[32,32], index: 3, kind: input, shape index: {}]
  %s4 = inlined_call_operand.vmem [shape: bf16[32,32], index: 4, kind: input, shape index: {}]
  %s5 = inlined_call_operand.vmem [shape: bf16[32,32], index: 5, kind: input, shape index: {}]
  %s6 = inlined_call_operand.vmem [shape: bf16[32,32], index: 6, kind: input, shape index: {}]
  %s7 = inlined_call_operand.hbm [shape: bf16[32,128], index: 7, kind: input, shape index: {}]
  %s8 = inlined_call_operand.vmem [shape: bf16[128,32], index: 8, kind: input, shape index: {}]
  %s9 = inlined_call_operand.vmem [shape: bf16[32,128], index: 9, kind: input, shape index: {}]
  %s10 = inlined_call_operand.hbm [shape: f32[32,8,128], index: 10, kind: output, shape index: {}]
  %s11 = sld [smem:[#allocation0]]
  $region85: #{tpu_custom_call.1} parent=0
    _
  %s13 = ssub.s32 1, %s11
  %s14 = scalar_select 0, %s13, %s11
  $region1: #{tpu_custom_call.1} parent=0
    #allocation2 [shape = 'u8[131072]{0}', space=vmem, size = 0x20000, scoped, tag = 'input window, operand 0']
    #allocation3 [shape = 's32[2]{0}', space=sflag, size = 0x8, scoped, tag = 'scoped memory for tpu_custom_call.1']
    #allocation4 [shape = 's32[2]{0}', space=sflag, size = 0x8, scoped, tag = 'scoped memory for tpu_custom_call.1']
    #allocation5 [shape = 'u8[65536]{0}', space=vmem, size = 0x10000, scoped, tag = 'input window, operand 2, single buffered']
    #allocation6 [shape = 's32[1]{0}', space=sflag, size = 0x4, scoped, tag = 'scoped memory for tpu_custom_call.1']
    #allocation7 [shape = 'u8[8192]{0}', space=vmem, size = 0x2000, scoped, tag = 'input window, operand 7, single buffered']
    #allocation8 [shape = 'u8[131072]{0}', space=vmem, size = 0x20000, scoped, tag = 'output window, operand 0']
    %15 = vsyncpa [#allocation3], 0
    %s16 = scalar_lea.sflag [#allocation3], 1
    %17 = vsyncpa %s16, 0
    %18 = vsyncpa [#allocation6], 0
    %19 = vsyncpa [#allocation4], 0
    %s20 = scalar_lea.sflag [#allocation4], 1
    %21 = vsyncpa %s20, 0
    loop: start=0, step=1, limit=4
    $region2: #{tpu_custom_call.1} parent=1 // loop_pre_header
      _
    $region3: #{tpu_custom_call.1} parent=1 // loop_header
      %s23 = sphi 0, %s27
      %p24 = scmp.ge.s32.totalorder %s23, 4
      %s33 = sphi 0, %s35
      %s36 = sphi 0, %s33
      %s37 = sphi 0, %s36
      %s53 = sphi 0, %s37
      %s57 = sphi 0, %s57
      %s59 = sphi 0, %s57
      %s60 = sphi 0, %s59
      %s74 = sphi 0, %s60
      %s78 = sphi 0, %s78
      %s80 = sphi 0, %s78
      %s81 = sphi 0, %s80
      %s95 = sphi 0, %s81
      %s99 = sphi 0, %s99
      %s101 = sphi 0, %s99
      %s102 = sphi 0, %s101
      %s116 = sphi 0, %s102
      %s120 = sphi 0, %s120
      %s122 = sphi 0, %s120
      %s123 = sphi 0, %s122
      %s137 = sphi 0, %s123
      %s141 = sphi 0, %s141
      %s143 = sphi 0, %s141
      %s144 = sphi 0, %s143
      %s158 = sphi 0, %s144
      %s162 = sphi 0, %s162
      %s164 = sphi 0, %s162
      %s165 = sphi 0, %s164
      %s179 = sphi 0, %s165
      %s183 = sphi 0, %s183
      %s185 = sphi 0, %s183
      %s186 = sphi 0, %s185
      %s200 = sphi 0, %s186
      %s204 = sphi 0, %s204
      %s206 = sphi 0, %s204
      %s207 = sphi 0, %s206
      %s221 = sphi 0, %s207
      %s225 = sphi 0, %s225
      %s227 = sphi 0, %s225
      %s228 = sphi 0, %s227
      %s242 = sphi 0, %s228
      %s248 = sphi 0, %s250
      %s251 = sphi 0, %s248
      %s252 = sphi 0, %s251
      %s268 = sphi 0, %s252
    $region4: #{tpu_custom_call.1} parent=1 // loop_header_branch
      %26 = sbr.rel (%p24) target = $region8
    $region5: #{tpu_custom_call.1} parent=1 // loop_body
      %s28 = ssub.s32 %s23, 1
      %s29 = ssub.s32 %s23, 2
      %s30 = sadd.s32 %s23, 1
      %s31 = ssub.s32 %s23, %s30
      %p32 = scmp.eq.s32.totalorder %s31, 0
      %s34 = sadd.s32 %s33, 1
      %s35 = scalar_select %p32, %s33, %s34
      %p38 = pneg %p32
      %p39 = scmp.eq.s32.totalorder %s23, 1
      %p40 = por %p38, %p39
      %p41 = scmp.ne.s32.totalorder %s33, %s36
      %p42 = scmp.eq.s32.totalorder %s23, 0
      %p43 = por %p41, %p42
      %p44 = scmp.ne.s32.totalorder %s33, %s36
      %p45 = scmp.eq.s32.totalorder %s28, 1
      %p46 = por %p44, %p45
      %p47 = scmp.ne.s32.totalorder %s36, %s37
      %p48 = scmp.eq.s32.totalorder %s28, 0
      %p49 = por %p47, %p48
      %p50 = scmp.ne.s32.totalorder %s36, %s37
      %p51 = scmp.eq.s32.totalorder %s29, 1
      %p52 = por %p50, %p51
      %p54 = scmp.ne.s32.totalorder %s37, %s53
      %p55 = scmp.eq.s32.totalorder %s29, 0
      %p56 = por %p54, %p55
      %s58 = sadd.s32 %s57, 1
      %p61 = scmp.eq.s32.totalorder %s23, 1
      %p62 = scmp.ne.s32.totalorder %s57, %s59
      %p63 = scmp.eq.s32.totalorder %s23, 0
      %p64 = por %p62, %p63
      %p65 = scmp.ne.s32.totalorder %s57, %s59
      %p66 = scmp.eq.s32.totalorder %s28, 1
      %p67 = por %p65, %p66
      %p68 = scmp.ne.s32.totalorder %s59, %s60
      %p69 = scmp.eq.s32.totalorder %s28, 0
      %p70 = por %p68, %p69
      %p71 = scmp.ne.s32.totalorder %s59, %s60
      %p72 = scmp.eq.s32.totalorder %s29, 1
      %p73 = por %p71, %p72
      %p75 = scmp.ne.s32.totalorder %s60, %s74
      %p76 = scmp.eq.s32.totalorder %s29, 0
      %p77 = por %p75, %p76
      %s79 = sadd.s32 %s78, 1
      %p82 = scmp.eq.s32.totalorder %s23, 1
      %p83 = scmp.ne.s32.totalorder %s78, %s80
      %p84 = scmp.eq.s32.totalorder %s23, 0
      %p85 = por %p83, %p84
      %p86 = scmp.ne.s32.totalorder %s78, %s80
      %p87 = scmp.eq.s32.totalorder %s28, 1
      %p88 = por %p86, %p87
      %p89 = scmp.ne.s32.totalorder %s80, %s81
      %p90 = scmp.eq.s32.totalorder %s28, 0
      %p91 = por %p89, %p90
      %p92 = scmp.ne.s32.totalorder %s80, %s81
      %p93 = scmp.eq.s32.totalorder %s29, 1
      %p94 = por %p92, %p93
      %p96 = scmp.ne.s32.totalorder %s81, %s95
      %p97 = scmp.eq.s32.totalorder %s29, 0
      %p98 = por %p96, %p97
      %s100 = sadd.s32 %s99, 1
      %p103 = scmp.eq.s32.totalorder %s23, 1
      %p104 = scmp.ne.s32.totalorder %s99, %s101
      %p105 = scmp.eq.s32.totalorder %s23, 0
      %p106 = por %p104, %p105
      %p107 = scmp.ne.s32.totalorder %s99, %s101
      %p108 = scmp.eq.s32.totalorder %s28, 1
      %p109 = por %p107, %p108
      %p110 = scmp.ne.s32.totalorder %s101, %s102
      %p111 = scmp.eq.s32.totalorder %s28, 0
      %p112 = por %p110, %p111
      %p113 = scmp.ne.s32.totalorder %s101, %s102
      %p114 = scmp.eq.s32.totalorder %s29, 1
      %p115 = por %p113, %p114
      %p117 = scmp.ne.s32.totalorder %s102, %s116
      %p118 = scmp.eq.s32.totalorder %s29, 0
      %p119 = por %p117, %p118
      %s121 = sadd.s32 %s120, 1
      %p124 = scmp.eq.s32.totalorder %s23, 1
      %p125 = scmp.ne.s32.totalorder %s120, %s122
      %p126 = scmp.eq.s32.totalorder %s23, 0
      %p127 = por %p125, %p126
      %p128 = scmp.ne.s32.totalorder %s120, %s122
      %p129 = scmp.eq.s32.totalorder %s28, 1
      %p130 = por %p128, %p129
      %p131 = scmp.ne.s32.totalorder %s122, %s123
      %p132 = scmp.eq.s32.totalorder %s28, 0
      %p133 = por %p131, %p132
      %p134 = scmp.ne.s32.totalorder %s122, %s123
      %p135 = scmp.eq.s32.totalorder %s29, 1
      %p136 = por %p134, %p135
      %p138 = scmp.ne.s32.totalorder %s123, %s137
      %p139 = scmp.eq.s32.totalorder %s29, 0
      %p140 = por %p138, %p139
      %s142 = sadd.s32 %s141, 1
      %p145 = scmp.eq.s32.totalorder %s23, 1
      %p146 = scmp.ne.s32.totalorder %s141, %s143
      %p147 = scmp.eq.s32.totalorder %s23, 0
      %p148 = por %p146, %p147
      %p149 = scmp.ne.s32.totalorder %s141, %s143
      %p150 = scmp.eq.s32.totalorder %s28, 1
      %p151 = por %p149, %p150
      %p152 = scmp.ne.s32.totalorder %s143, %s144
      %p153 = scmp.eq.s32.totalorder %s28, 0
      %p154 = por %p152, %p153
      %p155 = scmp.ne.s32.totalorder %s143, %s144
      %p156 = scmp.eq.s32.totalorder %s29, 1
      %p157 = por %p155, %p156
      %p159 = scmp.ne.s32.totalorder %s144, %s158
      %p160 = scmp.eq.s32.totalorder %s29, 0
      %p161 = por %p159, %p160
      %s163 = sadd.s32 %s162, 1
      %p166 = scmp.eq.s32.totalorder %s23, 1
      %p167 = scmp.ne.s32.totalorder %s162, %s164
      %p168 = scmp.eq.s32.totalorder %s23, 0
      %p169 = por %p167, %p168
      %p170 = scmp.ne.s32.totalorder %s162, %s164
      %p171 = scmp.eq.s32.totalorder %s28, 1
      %p172 = por %p170, %p171
      %p173 = scmp.ne.s32.totalorder %s164, %s165
      %p174 = scmp.eq.s32.totalorder %s28, 0
      %p175 = por %p173, %p174
      %p176 = scmp.ne.s32.totalorder %s164, %s165
      %p177 = scmp.eq.s32.totalorder %s29, 1
      %p178 = por %p176, %p177
      %p180 = scmp.ne.s32.totalorder %s165, %s179
      %p181 = scmp.eq.s32.totalorder %s29, 0
      %p182 = por %p180, %p181
      %s184 = sadd.s32 %s183, 1
      %p187 = scmp.eq.s32.totalorder %s23, 1
      %p188 = scmp.ne.s32.totalorder %s183, %s185
      %p189 = scmp.eq.s32.totalorder %s23, 0
      %p190 = por %p188, %p189
      %p191 = scmp.ne.s32.totalorder %s183, %s185
      %p192 = scmp.eq.s32.totalorder %s28, 1
      %p193 = por %p191, %p192
      %p194 = scmp.ne.s32.totalorder %s185, %s186
      %p195 = scmp.eq.s32.totalorder %s28, 0
      %p196 = por %p194, %p195
      %p197 = scmp.ne.s32.totalorder %s185, %s186
      %p198 = scmp.eq.s32.totalorder %s29, 1
      %p199 = por %p197, %p198
      %p201 = scmp.ne.s32.totalorder %s186, %s200
      %p202 = scmp.eq.s32.totalorder %s29, 0
      %p203 = por %p201, %p202
      %s205 = sadd.s32 %s204, 1
      %p208 = scmp.eq.s32.totalorder %s23, 1
      %p209 = scmp.ne.s32.totalorder %s204, %s206
      %p210 = scmp.eq.s32.totalorder %s23, 0
      %p211 = por %p209, %p210
      %p212 = scmp.ne.s32.totalorder %s204, %s206
      %p213 = scmp.eq.s32.totalorder %s28, 1
      %p214 = por %p212, %p213
      %p215 = scmp.ne.s32.totalorder %s206, %s207
      %p216 = scmp.eq.s32.totalorder %s28, 0
      %p217 = por %p215, %p216
      %p218 = scmp.ne.s32.totalorder %s206, %s207
      %p219 = scmp.eq.s32.totalorder %s29, 1
      %p220 = por %p218, %p219
      %p222 = scmp.ne.s32.totalorder %s207, %s221
      %p223 = scmp.eq.s32.totalorder %s29, 0
      %p224 = por %p222, %p223
      %s226 = sadd.s32 %s225, 1
      %p229 = scmp.eq.s32.totalorder %s23, 1
      %p230 = scmp.ne.s32.totalorder %s225, %s227
      %p231 = scmp.eq.s32.totalorder %s23, 0
      %p232 = por %p230, %p231
      %p233 = scmp.ne.s32.totalorder %s225, %s227
      %p234 = scmp.eq.s32.totalorder %s28, 1
      %p235 = por %p233, %p234
      %p236 = scmp.ne.s32.totalorder %s227, %s228
      %p237 = scmp.eq.s32.totalorder %s28, 0
      %p238 = por %p236, %p237
      %p239 = scmp.ne.s32.totalorder %s227, %s228
      %p240 = scmp.eq.s32.totalorder %s29, 1
      %p241 = por %p239, %p240
      %p243 = scmp.ne.s32.totalorder %s228, %s242
      %p244 = scmp.eq.s32.totalorder %s29, 0
      %p245 = por %p243, %p244
      %s246 = ssub.s32 %s23, %s30
      %p247 = scmp.eq.s32.totalorder %s246, 0
      %s249 = sadd.s32 %s248, 1
      %s250 = scalar_select %p247, %s248, %s249
      %p253 = pneg %p247
      %p254 = scmp.eq.s32.totalorder %s23, 1
      %p255 = por %p253, %p254
      %p256 = scmp.ne.s32.totalorder %s248, %s251
      %p257 = scmp.eq.s32.totalorder %s23, 0
      %p258 = por %p256, %p257
      %p259 = scmp.ne.s32.totalorder %s248, %s251
      %p260 = scmp.eq.s32.totalorder %s28, 1
      %p261 = por %p259, %p260
      %p262 = scmp.ne.s32.totalorder %s251, %s252
      %p263 = scmp.eq.s32.totalorder %s28, 0
      %p264 = por %p262, %p263
      %p265 = scmp.ne.s32.totalorder %s251, %s252
      %p266 = scmp.eq.s32.totalorder %s29, 1
      %p267 = por %p265, %p266
      %p269 = scmp.ne.s32.totalorder %s252, %s268
      %p270 = scmp.eq.s32.totalorder %s29, 0
      %p271 = por %p269, %p270
      %p272 = scmp.le.s32.totalorder 1, %s23
      %p273 = scmp.lt.s32.totalorder %s23, 3
      %p274 = pnand %p272, %p273
      %p275 = pneg %p274
      // Predicated region
      $region9: #{tpu_custom_call.1} parent=5 // pred_check
        _
      $region10: #{tpu_custom_call.1} parent=5 // pred_check_branch
        %277 = sbr.rel (%p274) target = $region12
      $region11: #{tpu_custom_call.1} parent=5 // pred_region
        %s278 = ssub.s32 %s23, 1
        // Predicated region
        $region13: #{tpu_custom_call.1} parent=11 // pred_check
          %p279 = pneg %p70
        $region14: #{tpu_custom_call.1} parent=11 // pred_check_branch
          %281 = sbr.rel (%p279) target = $region16
        $region15: #{tpu_custom_call.1} parent=11 // pred_region
          _
        $region16: #{tpu_custom_call.1} parent=11 // pred_fallthru
          _
        // Predicated region
        $region17: #{tpu_custom_call.1} parent=11 // pred_check
          %p282 = pneg %p91
        $region18: #{tpu_custom_call.1} parent=11 // pred_check_branch
          %284 = sbr.rel (%p282) target = $region20
        $region19: #{tpu_custom_call.1} parent=11 // pred_region
          %s286 = ssub.s32 2048, 2048
          %287 = vsyncadd [#allocation6], %s286
          %s288 = sshll.u32 [#allocation5], 4
          %s289 = int_to_ptr.vmem [resolvable:$true] %s288
          %294 = dma.hbm_to_vmem [thread:$0]  %s2, 2048, %s289, [#allocation6], 128, 128, 8
        $region20: #{tpu_custom_call.1} parent=11 // pred_fallthru
          _
        // Predicated region
        $region21: #{tpu_custom_call.1} parent=11 // pred_check
          %p295 = pneg %p112
        $region22: #{tpu_custom_call.1} parent=11 // pred_check_branch
          %297 = sbr.rel (%p295) target = $region24
        $region23: #{tpu_custom_call.1} parent=11 // pred_region
          _
        $region24: #{tpu_custom_call.1} parent=11 // pred_fallthru
          _
        // Predicated region
        $region25: #{tpu_custom_call.1} parent=11 // pred_check
          %p298 = pneg %p133
        $region26: #{tpu_custom_call.1} parent=11 // pred_check_branch
          %300 = sbr.rel (%p298) target = $region28
        $region27: #{tpu_custom_call.1} parent=11 // pred_region
          _
        $region28: #{tpu_custom_call.1} parent=11 // pred_fallthru
          _
        // Predicated region
        $region29: #{tpu_custom_call.1} parent=11 // pred_check
          %p301 = pneg %p154
        $region30: #{tpu_custom_call.1} parent=11 // pred_check_branch
          %303 = sbr.rel (%p301) target = $region32
        $region31: #{tpu_custom_call.1} parent=11 // pred_region
          _
        $region32: #{tpu_custom_call.1} parent=11 // pred_fallthru
          _
        // Predicated region
        $region33: #{tpu_custom_call.1} parent=11 // pred_check
          %p304 = pneg %p175
        $region34: #{tpu_custom_call.1} parent=11 // pred_check_branch
          %306 = sbr.rel (%p304) target = $region36
        $region35: #{tpu_custom_call.1} parent=11 // pred_region
          _
        $region36: #{tpu_custom_call.1} parent=11 // pred_fallthru
          _
        // Predicated region
        $region37: #{tpu_custom_call.1} parent=11 // pred_check
          %p307 = pneg %p196
        $region38: #{tpu_custom_call.1} parent=11 // pred_check_branch
          %309 = sbr.rel (%p307) target = $region40
        $region39: #{tpu_custom_call.1} parent=11 // pred_region
          %s311 = ssub.s32 256, 256
          %312 = vsyncadd [#allocation6], %s311
          %s313 = sshll.u32 [#allocation7], 4
          %s314 = int_to_ptr.vmem [resolvable:$true] %s313
          %319 = dma.hbm_to_vmem [thread:$0]  %s7, 256, %s314, [#allocation6], 64, 64, 4
        $region40: #{tpu_custom_call.1} parent=11 // pred_fallthru
          _
        // Predicated region
        $region41: #{tpu_custom_call.1} parent=11 // pred_check
          %p320 = pneg %p217
        $region42: #{tpu_custom_call.1} parent=11 // pred_check_branch
          %322 = sbr.rel (%p320) target = $region44
        $region43: #{tpu_custom_call.1} parent=11 // pred_region
          _
        $region44: #{tpu_custom_call.1} parent=11 // pred_fallthru
          _
        // Predicated region
        $region45: #{tpu_custom_call.1} parent=11 // pred_check
          %p323 = pneg %p238
        $region46: #{tpu_custom_call.1} parent=11 // pred_check_branch
          %325 = sbr.rel (%p323) target = $region48
        $region47: #{tpu_custom_call.1} parent=11 // pred_region
          _
        $region48: #{tpu_custom_call.1} parent=11 // pred_fallthru
          _
      $region12: #{tpu_custom_call.1} parent=5 // pred_fallthru
        _
      %p326 = scmp.lt.s32.totalorder %s23, 2
      // Predicated region
      $region49: #{tpu_custom_call.1} parent=5 // pred_check
        %p327 = pneg %p326
      $region50: #{tpu_custom_call.1} parent=5 // pred_check_branch
        %329 = sbr.rel (%p327) target = $region52
      $region51: #{tpu_custom_call.1} parent=5 // pred_region
        // Predicated region
        $region53: #{tpu_custom_call.1} parent=51 // pred_check
          %p330 = pneg %p43
        $region54: #{tpu_custom_call.1} parent=51 // pred_check_branch
          %332 = sbr.rel (%p330) target = $region56
        $region55: #{tpu_custom_call.1} parent=51 // pred_region
          %s333 = sand.u32 %s33, 1
          %s334 = scalar_lea.sflag [#allocation3], %s333
          %s335 = sand.u32 %s33, 1
          %s336 = smul.addr %s335, 128
          %s337 = scalar_lea.vmem [#allocation2], %s336
          %s338 = smul.u32 16, %s23
          %s340 = ssub.s32 2048, 2048
          %341 = vsyncadd %s334, %s340
          %s342 = smul.addr %s338, 128
          %s343 = scalar_lea.hbm %s0, %s342
          %s344 = sshll.u32 %s337, 4
          %s345 = int_to_ptr.vmem [resolvable:$true] %s344
          %350 = dma.hbm_to_vmem [thread:$0]  %s343, 2048, %s345, %s334, 128, 128, 8
        $region56: #{tpu_custom_call.1} parent=51 // pred_fallthru
          _
      $region52: #{tpu_custom_call.1} parent=5 // pred_fallthru
        _
      %p351 = scmp.le.s32.totalorder 1, %s23
      %p352 = scmp.lt.s32.totalorder %s23, 3
      %p353 = pnand %p351, %p352
      %p354 = pneg %p353
      // Predicated region
      $region57: #{tpu_custom_call.1} parent=5 // pred_check
        _
      $region58: #{tpu_custom_call.1} parent=5 // pred_check_branch
        %356 = sbr.rel (%p353) target = $region60
      $region59: #{tpu_custom_call.1} parent=5 // pred_region
        %s357 = ssub.s32 %s23, 1
        %s358 = sand.u32 %s36, 1
        %s359 = scalar_lea.sflag [#allocation3], %s358
        %s360 = sand.u32 %s36, 1
        %s361 = smul.addr %s360, 128
        %s362 = scalar_lea.vmem [#allocation2], %s361
        // Predicated region
        $region61: #{tpu_custom_call.1} parent=59 // pred_check
          %p363 = pneg %p49
        $region62: #{tpu_custom_call.1} parent=59 // pred_check_branch
          %365 = sbr.rel (%p363) target = $region64
        $region63: #{tpu_custom_call.1} parent=59 // pred_region
          %366 = dma.done %s359, 2048
        $region64: #{tpu_custom_call.1} parent=59 // pred_fallthru
          _
        // Predicated region
        $region65: #{tpu_custom_call.1} parent=59 // pred_check
          %p367 = pneg %p91
        $region66: #{tpu_custom_call.1} parent=59 // pred_check_branch
          %369 = sbr.rel (%p367) target = $region68
        $region67: #{tpu_custom_call.1} parent=59 // pred_region
          %370 = dma.done [#allocation6], 2048
        $region68: #{tpu_custom_call.1} parent=59 // pred_fallthru
          _
        // Predicated region
        $region69: #{tpu_custom_call.1} parent=59 // pred_check
          %p371 = pneg %p196
        $region70: #{tpu_custom_call.1} parent=59 // pred_check_branch
          %373 = sbr.rel (%p371) target = $region72
        $region71: #{tpu_custom_call.1} parent=59 // pred_region
          %374 = dma.done [#allocation6], 256
        $region72: #{tpu_custom_call.1} parent=59 // pred_fallthru
          _
        %s375 = sand.u32 %s36, 1
        %s376 = scalar_lea.sflag [#allocation3], %s375
        %s377 = sand.u32 %s36, 1
        %s378 = smul.addr %s377, 128
        %s379 = scalar_lea.vmem [#allocation2], %s378
        %p380 = pneg %p49
        %p381 = pneg %p46
        %p382 = pneg %p70
        %p383 = pneg %p67
        %p384 = pneg %p91
        %p385 = pneg %p88
        %p386 = pneg %p112
        %p387 = pneg %p109
        %p388 = pneg %p133
        %p389 = pneg %p130
        %p390 = pneg %p154
        %p391 = pneg %p151
        %p392 = pneg %p175
        %p393 = pneg %p172
        %p394 = pneg %p196
        %p395 = pneg %p193
        %p396 = pneg %p217
        %p397 = pneg %p214
        %p398 = pneg %p238
        %p399 = pneg %p235
        %p400 = pneg %p264
        %p401 = pneg %p261
        %s402 = sand.u32 %s251, 1
        %s403 = scalar_lea.sflag [#allocation4], %s402
        %s404 = sand.u32 %s251, 1
        %s405 = smul.addr %s404, 128
        %s406 = scalar_lea.vmem [#allocation8], %s405
        %s407 = smul.u32 16, %s28
        %s408 = smul.u32 16, %s28
        %v410 = vld [vmem:[%s362] sm:$0xff]
        %v411 = vld [vmem:[%s362 + $0x8] sm:$0xff]
        %v412 = vld [vmem:[%s362 + $0x10] sm:$0xff]
        %v413 = vld [vmem:[%s362 + $0x18] sm:$0xff]
        %v414 = vld [vmem:[%s362 + $0x20] sm:$0xff]
        %v415 = vld [vmem:[%s362 + $0x28] sm:$0xff]
        %v416 = vld [vmem:[%s362 + $0x30] sm:$0xff]
        %v417 = vld [vmem:[%s362 + $0x38] sm:$0xff]
        %v418 = vld [vmem:[%s362 + $0x40] sm:$0xff]
        %v419 = vld [vmem:[%s362 + $0x48] sm:$0xff]
        %v420 = vld [vmem:[%s362 + $0x50] sm:$0xff]
        %v421 = vld [vmem:[%s362 + $0x58] sm:$0xff]
        %v422 = vld [vmem:[%s362 + $0x60] sm:$0xff]
        %v423 = vld [vmem:[%s362 + $0x68] sm:$0xff]
        %v424 = vld [vmem:[%s362 + $0x70] sm:$0xff]
        %v425 = vld [vmem:[%s362 + $0x78] sm:$0xff]
        %v426 = vld [vmem:[%s1] sm:$0x1]
        %v427 = vld [vmem:[%s1 + $0x1] sm:$0x1]
        %vm428 = vcmask 261120
        %v429 = vsel %vm428, %v410, 0.0
        %430 = vadd.xlane.f32.xlu0 %v429
        %v431 = vpop.xlane.xlu0 %430
        %v432 = vsel %vm428, %v411, 0.0
        %433 = vadd.xlane.f32.xlu0 %v432
        %v434 = vpop.xlane.xlu0 %433
        %v435 = vsel %vm428, %v412, 0.0
        %436 = vadd.xlane.f32.xlu0 %v435
        %v437 = vpop.xlane.xlu0 %436
        %v438 = vsel %vm428, %v413, 0.0
        %439 = vadd.xlane.f32.xlu0 %v438
        %v440 = vpop.xlane.xlu0 %439
        %v441 = vsel %vm428, %v414, 0.0
        %442 = vadd.xlane.f32.xlu0 %v441
        %v443 = vpop.xlane.xlu0 %442
        %v444 = vsel %vm428, %v415, 0.0
        %445 = vadd.xlane.f32.xlu0 %v444
        %v446 = vpop.xlane.xlu0 %445
        %v447 = vsel %vm428, %v416, 0.0
        %448 = vadd.xlane.f32.xlu0 %v447
        %v449 = vpop.xlane.xlu0 %448
        %v450 = vsel %vm428, %v417, 0.0
        %451 = vadd.xlane.f32.xlu0 %v450
        %v452 = vpop.xlane.xlu0 %451
        %v453 = vsel %vm428, %v418, 0.0
        %454 = vadd.xlane.f32.xlu0 %v453
        %v455 = vpop.xlane.xlu0 %454
        %v456 = vsel %vm428, %v419, 0.0
        %457 = vadd.xlane.f32.xlu0 %v456
        %v458 = vpop.xlane.xlu0 %457
        %v459 = vsel %vm428, %v420, 0.0
        %460 = vadd.xlane.f32.xlu0 %v459
        %v461 = vpop.xlane.xlu0 %460
        %v462 = vsel %vm428, %v421, 0.0
        %463 = vadd.xlane.f32.xlu0 %v462
        %v464 = vpop.xlane.xlu0 %463
        %v465 = vsel %vm428, %v422, 0.0
        %466 = vadd.xlane.f32.xlu0 %v465
        %v467 = vpop.xlane.xlu0 %466
        %v468 = vsel %vm428, %v423, 0.0
        %469 = vadd.xlane.f32.xlu0 %v468
        %v470 = vpop.xlane.xlu0 %469
        %v471 = vsel %vm428, %v424, 0.0
        %472 = vadd.xlane.f32.xlu0 %v471
        %v473 = vpop.xlane.xlu0 %472
        %v474 = vsel %vm428, %v425, 0.0
        %475 = vadd.xlane.f32.xlu0 %v474
        %v476 = vpop.xlane.xlu0 %475
        %v477 = vrcp.pop 32.0
        %v478 = vmul.f32 %v431, %v477
        %v479 = vmul.f32 %v434, %v477
        %v480 = vmul.f32 %v437, %v477
        %v481 = vmul.f32 %v440, %v477
        %v482 = vmul.f32 %v443, %v477
        %v483 = vmul.f32 %v446, %v477
        %v484 = vmul.f32 %v449, %v477
        %v485 = vmul.f32 %v452, %v477
        %v486 = vmul.f32 %v455, %v477
        %v487 = vmul.f32 %v458, %v477
        %v488 = vmul.f32 %v461, %v477
        %v489 = vmul.f32 %v464, %v477
        %v490 = vmul.f32 %v467, %v477
        %v491 = vmul.f32 %v470, %v477
        %v492 = vmul.f32 %v473, %v477
        %v493 = vmul.f32 %v476, %v477
        %v494 = vsub.f32 %v410, %v478
        %v495 = vsub.f32 %v411, %v479
        %v496 = vsub.f32 %v412, %v480
        %v497 = vsub.f32 %v413, %v481
        %v498 = vsub.f32 %v414, %v482
        %v499 = vsub.f32 %v415, %v483
        %v500 = vsub.f32 %v416, %v484
        %v501 = vsub.f32 %v417, %v485
        %v502 = vsub.f32 %v418, %v486
        %v503 = vsub.f32 %v419, %v487
        %v504 = vsub.f32 %v420, %v488
        %v505 = vsub.f32 %v421, %v489
        %v506 = vsub.f32 %v422, %v490
        %v507 = vsub.f32 %v423, %v491
        %v508 = vsub.f32 %v424, %v492
        %v509 = vsub.f32 %v425, %v493
        %v510 = vmul.f32 %v494, %v494
        %v511 = vmul.f32 %v495, %v495
        %v512 = vmul.f32 %v496, %v496
        %v513 = vmul.f32 %v497, %v497
        %v514 = vmul.f32 %v498, %v498
        %v515 = vmul.f32 %v499, %v499
        %v516 = vmul.f32 %v500, %v500
        %v517 = vmul.f32 %v501, %v501
        %v518 = vmul.f32 %v502, %v502
        %v519 = vmul.f32 %v503, %v503
        %v520 = vmul.f32 %v504, %v504
        %v521 = vmul.f32 %v505, %v505
        %v522 = vmul.f32 %v506, %v506
        %v523 = vmul.f32 %v507, %v507
        %v524 = vmul.f32 %v508, %v508
        %v525 = vmul.f32 %v509, %v509
        %v526 = vsel %vm428, %v510, 0.0
        %527 = vadd.xlane.f32.xlu0 %v526
        %v528 = vpop.xlane.xlu0 %527
        %v529 = vsel %vm428, %v511, 0.0
        %530 = vadd.xlane.f32.xlu0 %v529
        %v531 = vpop.xlane.xlu0 %530
        %v532 = vsel %vm428, %v512, 0.0
        %533 = vadd.xlane.f32.xlu0 %v532
        %v534 = vpop.xlane.xlu0 %533
        %v535 = vsel %vm428, %v513, 0.0
        %536 = vadd.xlane.f32.xlu0 %v535
        %v537 = vpop.xlane.xlu0 %536
        %v538 = vsel %vm428, %v514, 0.0
        %539 = vadd.xlane.f32.xlu0 %v538
        %v540 = vpop.xlane.xlu0 %539
        %v541 = vsel %vm428, %v515, 0.0
        %542 = vadd.xlane.f32.xlu0 %v541
        %v543 = vpop.xlane.xlu0 %542
        %v544 = vsel %vm428, %v516, 0.0
        %545 = vadd.xlane.f32.xlu0 %v544
        %v546 = vpop.xlane.xlu0 %545
        %v547 = vsel %vm428, %v517, 0.0
        %548 = vadd.xlane.f32.xlu0 %v547
        %v549 = vpop.xlane.xlu0 %548
        %v550 = vsel %vm428, %v518, 0.0
        %551 = vadd.xlane.f32.xlu0 %v550
        %v552 = vpop.xlane.xlu0 %551
        %v553 = vsel %vm428, %v519, 0.0
        %554 = vadd.xlane.f32.xlu0 %v553
        %v555 = vpop.xlane.xlu0 %554
        %v556 = vsel %vm428, %v520, 0.0
        %557 = vadd.xlane.f32.xlu0 %v556
        %v558 = vpop.xlane.xlu0 %557
        %v559 = vsel %vm428, %v521, 0.0
        %560 = vadd.xlane.f32.xlu0 %v559
        %v561 = vpop.xlane.xlu0 %560
        %v562 = vsel %vm428, %v522, 0.0
        %563 = vadd.xlane.f32.xlu0 %v562
        %v564 = vpop.xlane.xlu0 %563
        %v565 = vsel %vm428, %v523, 0.0
        %566 = vadd.xlane.f32.xlu0 %v565
        %v567 = vpop.xlane.xlu0 %566
        %v568 = vsel %vm428, %v524, 0.0
        %569 = vadd.xlane.f32.xlu0 %v568
        %v570 = vpop.xlane.xlu0 %569
        %v571 = vsel %vm428, %v525, 0.0
        %572 = vadd.xlane.f32.xlu0 %v571
        %v573 = vpop.xlane.xlu0 %572
        %v574 = vmul.f32 %v528, %v477
        %v575 = vmul.f32 %v531, %v477
        %v576 = vmul.f32 %v534, %v477
        %v577 = vmul.f32 %v537, %v477
        %v578 = vmul.f32 %v540, %v477
        %v579 = vmul.f32 %v543, %v477
        %v580 = vmul.f32 %v546, %v477
        %v581 = vmul.f32 %v549, %v477
        %v582 = vmul.f32 %v552, %v477
        %v583 = vmul.f32 %v555, %v477
        %v584 = vmul.f32 %v558, %v477
        %v585 = vmul.f32 %v561, %v477
        %v586 = vmul.f32 %v564, %v477
        %v587 = vmul.f32 %v567, %v477
        %v588 = vmul.f32 %v570, %v477
        %v589 = vmul.f32 %v573, %v477
        %v590 = vadd.f32 %v574, 1e-05
        %v591 = vadd.f32 %v575, 1e-05
        %v592 = vadd.f32 %v576, 1e-05
        %v593 = vadd.f32 %v577, 1e-05
        %v594 = vadd.f32 %v578, 1e-05
        %v595 = vadd.f32 %v579, 1e-05
        %v596 = vadd.f32 %v580, 1e-05
        %v597 = vadd.f32 %v581, 1e-05
        %v598 = vadd.f32 %v582, 1e-05
        %v599 = vadd.f32 %v583, 1e-05
        %v600 = vadd.f32 %v584, 1e-05
        %v601 = vadd.f32 %v585, 1e-05
        %v602 = vadd.f32 %v586, 1e-05
        %v603 = vadd.f32 %v587, 1e-05
        %v604 = vadd.f32 %v588, 1e-05
        %v605 = vadd.f32 %v589, 1e-05
        %v606 = vrsqrt.pop %v590
        %v607 = vrsqrt.pop %v591
        %v608 = vrsqrt.pop %v592
        %v609 = vrsqrt.pop %v593
        %v610 = vrsqrt.pop %v594
        %v611 = vrsqrt.pop %v595
        %v612 = vrsqrt.pop %v596
        %v613 = vrsqrt.pop %v597
        %v614 = vrsqrt.pop %v598
        %v615 = vrsqrt.pop %v599
        %v616 = vrsqrt.pop %v600
        %v617 = vrsqrt.pop %v601
        %v618 = vrsqrt.pop %v602
        %v619 = vrsqrt.pop %v603
        %v620 = vrsqrt.pop %v604
        %v621 = vrsqrt.pop %v605
        %v622 = vmul.f32 %v494, %v606
        %v623 = vmul.f32 %v495, %v607
        %v624 = vmul.f32 %v496, %v608
        %v625 = vmul.f32 %v497, %v609
        %v626 = vmul.f32 %v498, %v610
        %v627 = vmul.f32 %v499, %v611
        %v628 = vmul.f32 %v500, %v612
        %v629 = vmul.f32 %v501, %v613
        %v630 = vmul.f32 %v502, %v614
        %v631 = vmul.f32 %v503, %v615
        %v632 = vmul.f32 %v504, %v616
        %v633 = vmul.f32 %v505, %v617
        %v634 = vmul.f32 %v506, %v618
        %v635 = vmul.f32 %v507, %v619
        %v636 = vmul.f32 %v508, %v620
        %v637 = vmul.f32 %v509, %v621
        %v638 = vlaneseq
        %v639 = vshrl.u32 %v638, 7
        %v640 = vsub.s32 0, %v639
        %v641 = vrot.slane %v426, %v640
        %v642 = vmul.f32 %v622, %v641
        %v643 = vmul.f32 %v623, %v641
        %v644 = vmul.f32 %v624, %v641
        %v645 = vmul.f32 %v625, %v641
        %v646 = vmul.f32 %v626, %v641
        %v647 = vmul.f32 %v627, %v641
        %v648 = vmul.f32 %v628, %v641
        %v649 = vmul.f32 %v629, %v641
        %v650 = vmul.f32 %v630, %v641
        %v651 = vmul.f32 %v631, %v641
        %v652 = vmul.f32 %v632, %v641
        %v653 = vmul.f32 %v633, %v641
        %v654 = vmul.f32 %v634, %v641
        %v655 = vmul.f32 %v635, %v641
        %v656 = vmul.f32 %v636, %v641
        %v657 = vmul.f32 %v637, %v641
        %v658 = vlaneseq
        %v659 = vshrl.u32 %v658, 7
        %v660 = vsub.s32 0, %v659
        %v661 = vrot.slane %v427, %v660
        %v662 = vadd.f32 %v642, %v661
        %v663 = vadd.f32 %v643, %v661
        %v664 = vadd.f32 %v644, %v661
        %v665 = vadd.f32 %v645, %v661
        %v666 = vadd.f32 %v646, %v661
        %v667 = vadd.f32 %v647, %v661
        %v668 = vadd.f32 %v648, %v661
        %v669 = vadd.f32 %v649, %v661
        %v670 = vadd.f32 %v650, %v661
        %v671 = vadd.f32 %v651, %v661
        %v672 = vadd.f32 %v652, %v661
        %v673 = vadd.f32 %v653, %v661
        %v674 = vadd.f32 %v654, %v661
        %v675 = vadd.f32 %v655, %v661
        %v676 = vadd.f32 %v656, %v661
        %v677 = vadd.f32 %v657, %v661
        %v678 = vpack.c.bf16 %v663, %v662
        %v679 = vpack.c.bf16 %v665, %v664
        %v680 = vpack.c.bf16 %v667, %v666
        %v681 = vpack.c.bf16 %v669, %v668
        %v682 = vpack.c.bf16 %v671, %v670
        %v683 = vpack.c.bf16 %v673, %v672
        %v684 = vpack.c.bf16 %v675, %v674
        %v685 = vpack.c.bf16 %v677, %v676
        %v686 = vld [vmem:[%s3] sm:$0xf]
        %v687 = vld [vmem:[%s3 + $0x4] sm:$0xf]
        %v688 = vld [vmem:[%s3 + $0x8] sm:$0xf]
        %v689 = vld [vmem:[%s3 + $0xc] sm:$0xf]
        %v690 = vld [vmem:[%s1 + $0x2] sm:$0x1]
        %v691 = vlaneseq
        %v692 = vshrl.u32 %v691, 7
        %v693 = vsub.s32 0, %v692
        %v694 = vrot.slane %v690, %v693
        %v699 = vunpack.c.l.b16 %v686
        %v700 = vunpack.c.l.b16 %v687
        %v701 = vunpack.c.l.b16 %v688
        %v702 = vunpack.c.l.b16 %v689
        %v703 = vpack.c.b16 %v700, %v699
        %v704 = vpack.c.b16 %v702, %v701
        %v708 = vsel %vm428, %v678, 0
        %v711 = vsel %vm428, %v679, 0
        %v714 = vsel %vm428, %v680, 0
        %v717 = vsel %vm428, %v681, 0
        %v720 = vsel %vm428, %v682, 0
        %v723 = vsel %vm428, %v683, 0
        %v726 = vsel %vm428, %v684, 0
        %v729 = vsel %vm428, %v685, 0
        %731 = vmatprep.subr.bf16.mxu0 0
        %732 = vmatpush1.bf16.msra.mxu0 0
        %733 = vmatprep.subr.bf16.mxu0 0
        %734 = vmatpush1.bf16.msra.mxu0 0
        %735 = vmatprep.subr.bf16.mxu0 0
        %736 = vmatpush1.bf16.msra.mxu0 0
        %737 = vmatprep.subr.bf16.mxu0 0
        %738 = vmatpush1.bf16.msra.mxu0 0
        %739 = vmatprep.subr.bf16.mxu0 0
        %740 = vmatpush1.bf16.msra.mxu0 0
        %741 = vmatprep.subr.bf16.mxu0 0
        %742 = vmatpush1.bf16.msra.mxu0 0
        %743 = vmatprep.subr.bf16.mxu0 0
        %744 = vmatpush1.bf16.msra.mxu0 %v704
        %745 = vmatprep.subr.bf16.mxu0 0
        %746 = vmatpush1.bf16.msra.mxu0 %v703
        %747 = vmatprep.subr.bf16.mxu0 0
        %748 = vmatpush2.bf16.msra.mxu0 0
        %749 = vmatprep.subr.bf16.mxu0 0
        %750 = vmatpush2.bf16.msra.mxu0 0
        %751 = vmatprep.subr.bf16.mxu0 0
        %752 = vmatpush2.bf16.msra.mxu0 0
        %753 = vmatprep.subr.bf16.mxu0 0
        %754 = vmatpush2.bf16.msra.mxu0 0
        %755 = vmatprep.subr.bf16.mxu0 0
        %756 = vmatpush2.bf16.msra.mxu0 0
        %757 = vmatprep.subr.bf16.mxu0 0
        %758 = vmatpush2.bf16.msra.mxu0 0
        %759 = vmatprep.subr.bf16.mxu0 0
        %760 = vmatpush2.bf16.msra.mxu0 0
        %761 = vmatprep.subr.bf16.mxu0 0
        %762 = vmatpush2.bf16.msra.mxu0 0
        %763 = vmatprep.mubr.bf16.mxu0 0
        %764 = vmatmul.mubr.bf16.gmra.mxu0 %v708
        %v765 = vpop.f32.mrf.mxu0
        %v766 = vadd.f32 %v694, %v765
        %v767 = vpop.f32.mrf.mxu0
        %v768 = vpop.f32.mrf.mxu0
        %v769 = vadd.f32 %v694, %v768
        %v770 = vpop.f32.mrf.mxu0
        %771 = vmatprep.mubr.bf16.mxu0 0
        %772 = vmatmul.mubr.bf16.gmra.mxu0 %v711
        %v773 = vpop.f32.mrf.mxu0
        %v774 = vadd.f32 %v694, %v773
        %v775 = vpop.f32.mrf.mxu0
        %v776 = vpop.f32.mrf.mxu0
        %v777 = vadd.f32 %v694, %v776
        %v778 = vpop.f32.mrf.mxu0
        %779 = vmatprep.mubr.bf16.mxu0 0
        %780 = vmatmul.mubr.bf16.gmra.mxu0 %v714
        %v781 = vpop.f32.mrf.mxu0
        %v782 = vadd.f32 %v694, %v781
        %v783 = vpop.f32.mrf.mxu0
        %v784 = vpop.f32.mrf.mxu0
        %v785 = vadd.f32 %v694, %v784
        %v786 = vpop.f32.mrf.mxu0
        %787 = vmatprep.mubr.bf16.mxu0 0
        %788 = vmatmul.mubr.bf16.gmra.mxu0 %v717
        %v789 = vpop.f32.mrf.mxu0
        %v790 = vadd.f32 %v694, %v789
        %v791 = vpop.f32.mrf.mxu0
        %v792 = vpop.f32.mrf.mxu0
        %v793 = vadd.f32 %v694, %v792
        %v794 = vpop.f32.mrf.mxu0
        %795 = vmatprep.mubr.bf16.mxu0 0
        %796 = vmatmul.mubr.bf16.gmra.mxu0 %v720
        %v797 = vpop.f32.mrf.mxu0
        %v798 = vadd.f32 %v694, %v797
        %v799 = vpop.f32.mrf.mxu0
        %v800 = vpop.f32.mrf.mxu0
        %v801 = vadd.f32 %v694, %v800
        %v802 = vpop.f32.mrf.mxu0
        %803 = vmatprep.mubr.bf16.mxu0 0
        %804 = vmatmul.mubr.bf16.gmra.mxu0 %v723
        %v805 = vpop.f32.mrf.mxu0
        %v806 = vadd.f32 %v694, %v805
        %v807 = vpop.f32.mrf.mxu0
        %v808 = vpop.f32.mrf.mxu0
        %v809 = vadd.f32 %v694, %v808
        %v810 = vpop.f32.mrf.mxu0
        %811 = vmatprep.mubr.bf16.mxu0 0
        %812 = vmatmul.mubr.bf16.gmra.mxu0 %v726
        %v813 = vpop.f32.mrf.mxu0
        %v814 = vadd.f32 %v694, %v813
        %v815 = vpop.f32.mrf.mxu0
        %v816 = vpop.f32.mrf.mxu0
        %v817 = vadd.f32 %v694, %v816
        %v818 = vpop.f32.mrf.mxu0
        %819 = vmatprep.mubr.bf16.mxu0 0
        %820 = vmatmul.mubr.bf16.gmra.mxu0 %v729
        %v821 = vpop.f32.mrf.mxu0
        %v822 = vadd.f32 %v694, %v821
        %v823 = vpop.f32.mrf.mxu0
        %v824 = vpop.f32.mrf.mxu0
        %v825 = vadd.f32 %v694, %v824
        %v826 = vpop.f32.mrf.mxu0
        %827 = vdwg.mxu0
        %v828 = vld [vmem:[%s4] sm:$0xf]
        %v829 = vld [vmem:[%s4 + $0x4] sm:$0xf]
        %v830 = vld [vmem:[%s4 + $0x8] sm:$0xf]
        %v831 = vld [vmem:[%s4 + $0xc] sm:$0xf]
        %v832 = vld [vmem:[%s1 + $0x3] sm:$0x1]
        %v833 = vlaneseq
        %v834 = vshrl.u32 %v833, 7
        %v835 = vsub.s32 0, %v834
        %v836 = vrot.slane %v832, %v835
        %v841 = vunpack.c.l.b16 %v828
        %v842 = vunpack.c.l.b16 %v829
        %v843 = vunpack.c.l.b16 %v830
        %v844 = vunpack.c.l.b16 %v831
        %v845 = vpack.c.b16 %v842, %v841
        %v846 = vpack.c.b16 %v844, %v843
        %849 = vmatprep.subr.bf16.mxu0 0
        %850 = vmatpush1.bf16.msra.mxu0 0
        %851 = vmatprep.subr.bf16.mxu0 0
        %852 = vmatpush1.bf16.msra.mxu0 0
        %853 = vmatprep.subr.bf16.mxu0 0
        %854 = vmatpush1.bf16.msra.mxu0 0
        %855 = vmatprep.subr.bf16.mxu0 0
        %856 = vmatpush1.bf16.msra.mxu0 0
        %857 = vmatprep.subr.bf16.mxu0 0
        %858 = vmatpush1.bf16.msra.mxu0 0
        %859 = vmatprep.subr.bf16.mxu0 0
        %860 = vmatpush1.bf16.msra.mxu0 0
        %861 = vmatprep.subr.bf16.mxu0 0
        %862 = vmatpush1.bf16.msra.mxu0 %v846
        %863 = vmatprep.subr.bf16.mxu0 0
        %864 = vmatpush1.bf16.msra.mxu0 %v845
        %865 = vmatprep.subr.bf16.mxu0 0
        %866 = vmatpush2.bf16.msra.mxu0 0
        %867 = vmatprep.subr.bf16.mxu0 0
        %868 = vmatpush2.bf16.msra.mxu0 0
        %869 = vmatprep.subr.bf16.mxu0 0
        %870 = vmatpush2.bf16.msra.mxu0 0
        %871 = vmatprep.subr.bf16.mxu0 0
        %872 = vmatpush2.bf16.msra.mxu0 0
        %873 = vmatprep.subr.bf16.mxu0 0
        %874 = vmatpush2.bf16.msra.mxu0 0
        %875 = vmatprep.subr.bf16.mxu0 0
        %876 = vmatpush2.bf16.msra.mxu0 0
        %877 = vmatprep.subr.bf16.mxu0 0
        %878 = vmatpush2.bf16.msra.mxu0 0
        %879 = vmatprep.subr.bf16.mxu0 0
        %880 = vmatpush2.bf16.msra.mxu0 0
        %881 = vmatprep.mubr.bf16.mxu0 0
        %882 = vmatmul.mubr.bf16.gmra.mxu0 %v708
        %v883 = vpop.f32.mrf.mxu0
        %v884 = vadd.f32 %v836, %v883
        %v885 = vpop.f32.mrf.mxu0
        %v886 = vpop.f32.mrf.mxu0
        %v887 = vadd.f32 %v836, %v886
        %v888 = vpop.f32.mrf.mxu0
        %889 = vmatprep.mubr.bf16.mxu0 0
        %890 = vmatmul.mubr.bf16.gmra.mxu0 %v711
        %v891 = vpop.f32.mrf.mxu0
        %v892 = vadd.f32 %v836, %v891
        %v893 = vpop.f32.mrf.mxu0
        %v894 = vpop.f32.mrf.mxu0
        %v895 = vadd.f32 %v836, %v894
        %v896 = vpop.f32.mrf.mxu0
        %897 = vmatprep.mubr.bf16.mxu0 0
        %898 = vmatmul.mubr.bf16.gmra.mxu0 %v714
        %v899 = vpop.f32.mrf.mxu0
        %v900 = vadd.f32 %v836, %v899
        %v901 = vpop.f32.mrf.mxu0
        %v902 = vpop.f32.mrf.mxu0
        %v903 = vadd.f32 %v836, %v902
        %v904 = vpop.f32.mrf.mxu0
        %905 = vmatprep.mubr.bf16.mxu0 0
        %906 = vmatmul.mubr.bf16.gmra.mxu0 %v717
        %v907 = vpop.f32.mrf.mxu0
        %v908 = vadd.f32 %v836, %v907
        %v909 = vpop.f32.mrf.mxu0
        %v910 = vpop.f32.mrf.mxu0
        %v911 = vadd.f32 %v836, %v910
        %v912 = vpop.f32.mrf.mxu0
        %913 = vmatprep.mubr.bf16.mxu0 0
        %914 = vmatmul.mubr.bf16.gmra.mxu0 %v720
        %v915 = vpop.f32.mrf.mxu0
        %v916 = vadd.f32 %v836, %v915
        %v917 = vpop.f32.mrf.mxu0
        %v918 = vpop.f32.mrf.mxu0
        %v919 = vadd.f32 %v836, %v918
        %v920 = vpop.f32.mrf.mxu0
        %921 = vmatprep.mubr.bf16.mxu0 0
        %922 = vmatmul.mubr.bf16.gmra.mxu0 %v723
        %v923 = vpop.f32.mrf.mxu0
        %v924 = vadd.f32 %v836, %v923
        %v925 = vpop.f32.mrf.mxu0
        %v926 = vpop.f32.mrf.mxu0
        %v927 = vadd.f32 %v836, %v926
        %v928 = vpop.f32.mrf.mxu0
        %929 = vmatprep.mubr.bf16.mxu0 0
        %930 = vmatmul.mubr.bf16.gmra.mxu0 %v726
        %v931 = vpop.f32.mrf.mxu0
        %v932 = vadd.f32 %v836, %v931
        %v933 = vpop.f32.mrf.mxu0
        %v934 = vpop.f32.mrf.mxu0
        %v935 = vadd.f32 %v836, %v934
        %v936 = vpop.f32.mrf.mxu0
        %937 = vmatprep.mubr.bf16.mxu0 0
        %938 = vmatmul.mubr.bf16.gmra.mxu0 %v729
        %v939 = vpop.f32.mrf.mxu0
        %v940 = vadd.f32 %v836, %v939
        %v941 = vpop.f32.mrf.mxu0
        %v942 = vpop.f32.mrf.mxu0
        %v943 = vadd.f32 %v836, %v942
        %v944 = vpop.f32.mrf.mxu0
        %945 = vdwg.mxu0
        %v946 = vld [vmem:[%s5] sm:$0xf]
        %v947 = vld [vmem:[%s5 + $0x4] sm:$0xf]
        %v948 = vld [vmem:[%s5 + $0x8] sm:$0xf]
        %v949 = vld [vmem:[%s5 + $0xc] sm:$0xf]
        %v950 = vld [vmem:[%s1 + $0x4] sm:$0x1]
        %v951 = vlaneseq
        %v952 = vshrl.u32 %v951, 7
        %v953 = vsub.s32 0, %v952
        %v954 = vrot.slane %v950, %v953
        %v959 = vunpack.c.l.b16 %v946
        %v960 = vunpack.c.l.b16 %v947
        %v961 = vunpack.c.l.b16 %v948
        %v962 = vunpack.c.l.b16 %v949
        %v963 = vpack.c.b16 %v960, %v959
        %v964 = vpack.c.b16 %v962, %v961
        %967 = vmatprep.subr.bf16.mxu0 0
        %968 = vmatpush1.bf16.msra.mxu0 0
        %969 = vmatprep.subr.bf16.mxu0 0
        %970 = vmatpush1.bf16.msra.mxu0 0
        %971 = vmatprep.subr.bf16.mxu0 0
        %972 = vmatpush1.bf16.msra.mxu0 0
        %973 = vmatprep.subr.bf16.mxu0 0
        %974 = vmatpush1.bf16.msra.mxu0 0
        %975 = vmatprep.subr.bf16.mxu0 0
        %976 = vmatpush1.bf16.msra.mxu0 0
        %977 = vmatprep.subr.bf16.mxu0 0
        %978 = vmatpush1.bf16.msra.mxu0 0
        %979 = vmatprep.subr.bf16.mxu0 0
        %980 = vmatpush1.bf16.msra.mxu0 %v964
        %981 = vmatprep.subr.bf16.mxu0 0
        %982 = vmatpush1.bf16.msra.mxu0 %v963
        %983 = vmatprep.subr.bf16.mxu0 0
        %984 = vmatpush2.bf16.msra.mxu0 0
        %985 = vmatprep.subr.bf16.mxu0 0
        %986 = vmatpush2.bf16.msra.mxu0 0
        %987 = vmatprep.subr.bf16.mxu0 0
        %988 = vmatpush2.bf16.msra.mxu0 0
        %989 = vmatprep.subr.bf16.mxu0 0
        %990 = vmatpush2.bf16.msra.mxu0 0
        %991 = vmatprep.subr.bf16.mxu0 0
        %992 = vmatpush2.bf16.msra.mxu0 0
        %993 = vmatprep.subr.bf16.mxu0 0
        %994 = vmatpush2.bf16.msra.mxu0 0
        %995 = vmatprep.subr.bf16.mxu0 0
        %996 = vmatpush2.bf16.msra.mxu0 0
        %997 = vmatprep.subr.bf16.mxu0 0
        %998 = vmatpush2.bf16.msra.mxu0 0
        %999 = vmatprep.mubr.bf16.mxu0 0
        %1000 = vmatmul.mubr.bf16.gmra.mxu0 %v708
        %v1001 = vpop.f32.mrf.mxu0
        %v1002 = vadd.f32 %v954, %v1001
        %v1003 = vpop.f32.mrf.mxu0
        %v1004 = vpop.f32.mrf.mxu0
        %v1005 = vadd.f32 %v954, %v1004
        %v1006 = vpop.f32.mrf.mxu0
        %1007 = vmatprep.mubr.bf16.mxu0 0
        %1008 = vmatmul.mubr.bf16.gmra.mxu0 %v711
        %v1009 = vpop.f32.mrf.mxu0
        %v1010 = vadd.f32 %v954, %v1009
        %v1011 = vpop.f32.mrf.mxu0
        %v1012 = vpop.f32.mrf.mxu0
        %v1013 = vadd.f32 %v954, %v1012
        %v1014 = vpop.f32.mrf.mxu0
        %1015 = vmatprep.mubr.bf16.mxu0 0
        %1016 = vmatmul.mubr.bf16.gmra.mxu0 %v714
        %v1017 = vpop.f32.mrf.mxu0
        %v1018 = vadd.f32 %v954, %v1017
        %v1019 = vpop.f32.mrf.mxu0
        %v1020 = vpop.f32.mrf.mxu0
        %v1021 = vadd.f32 %v954, %v1020
        %v1022 = vpop.f32.mrf.mxu0
        %1023 = vmatprep.mubr.bf16.mxu0 0
        %1024 = vmatmul.mubr.bf16.gmra.mxu0 %v717
        %v1025 = vpop.f32.mrf.mxu0
        %v1026 = vadd.f32 %v954, %v1025
        %v1027 = vpop.f32.mrf.mxu0
        %v1028 = vpop.f32.mrf.mxu0
        %v1029 = vadd.f32 %v954, %v1028
        %v1030 = vpop.f32.mrf.mxu0
        %1031 = vmatprep.mubr.bf16.mxu0 0
        %1032 = vmatmul.mubr.bf16.gmra.mxu0 %v720
        %v1033 = vpop.f32.mrf.mxu0
        %v1034 = vadd.f32 %v954, %v1033
        %v1035 = vpop.f32.mrf.mxu0
        %v1036 = vpop.f32.mrf.mxu0
        %v1037 = vadd.f32 %v954, %v1036
        %v1038 = vpop.f32.mrf.mxu0
        %1039 = vmatprep.mubr.bf16.mxu0 0
        %1040 = vmatmul.mubr.bf16.gmra.mxu0 %v723
        %v1041 = vpop.f32.mrf.mxu0
        %v1042 = vadd.f32 %v954, %v1041
        %v1043 = vpop.f32.mrf.mxu0
        %v1044 = vpop.f32.mrf.mxu0
        %v1045 = vadd.f32 %v954, %v1044
        %v1046 = vpop.f32.mrf.mxu0
        %1047 = vmatprep.mubr.bf16.mxu0 0
        %1048 = vmatmul.mubr.bf16.gmra.mxu0 %v726
        %v1049 = vpop.f32.mrf.mxu0
        %v1050 = vadd.f32 %v954, %v1049
        %v1051 = vpop.f32.mrf.mxu0
        %v1052 = vpop.f32.mrf.mxu0
        %v1053 = vadd.f32 %v954, %v1052
        %v1054 = vpop.f32.mrf.mxu0
        %1055 = vmatprep.mubr.bf16.mxu0 0
        %1056 = vmatmul.mubr.bf16.gmra.mxu0 %v729
        %v1057 = vpop.f32.mrf.mxu0
        %v1058 = vadd.f32 %v954, %v1057
        %v1059 = vpop.f32.mrf.mxu0
        %v1060 = vpop.f32.mrf.mxu0
        %v1061 = vadd.f32 %v954, %v1060
        %v1062 = vpop.f32.mrf.mxu0
        %1063 = vdwg.mxu0
        %v1064 = vpack.c.bf16 %v769, %v766
        %v1065 = vpack.c.bf16 %v777, %v774
        %v1066 = vpack.c.bf16 %v785, %v782
        %v1067 = vpack.c.bf16 %v793, %v790
        %v1068 = vpack.c.bf16 %v801, %v798
        %v1069 = vpack.c.bf16 %v809, %v806
        %v1070 = vpack.c.bf16 %v817, %v814
        %v1071 = vpack.c.bf16 %v825, %v822
        %v1072 = vpack.c.bf16 %v887, %v884
        %v1073 = vpack.c.bf16 %v895, %v892
        %v1074 = vpack.c.bf16 %v903, %v900
        %v1075 = vpack.c.bf16 %v911, %v908
        %v1076 = vpack.c.bf16 %v919, %v916
        %v1077 = vpack.c.bf16 %v927, %v924
        %v1078 = vpack.c.bf16 %v935, %v932
        %v1079 = vpack.c.bf16 %v943, %v940
        %v1080 = vpack.c.bf16 %v1005, %v1002
        %v1081 = vpack.c.bf16 %v1013, %v1010
        %v1082 = vpack.c.bf16 %v1021, %v1018
        %v1083 = vpack.c.bf16 %v1029, %v1026
        %v1084 = vpack.c.bf16 %v1037, %v1034
        %v1085 = vpack.c.bf16 %v1045, %v1042
        %v1086 = vpack.c.bf16 %v1053, %v1050
        %v1087 = vpack.c.bf16 %v1061, %v1058
        %v1088 = vld [vmem:[#allocation5] sm:$0xff]
        %v1089 = vld [vmem:[#allocation5 + $0x8] sm:$0xff]
        %v1090 = vld [vmem:[#allocation5 + $0x10] sm:$0xff]
        %v1091 = vld [vmem:[#allocation5 + $0x18] sm:$0xff]
        %v1092 = vld [vmem:[#allocation5 + $0x20] sm:$0xff]
        %v1093 = vld [vmem:[#allocation5 + $0x28] sm:$0xff]
        %v1094 = vld [vmem:[#allocation5 + $0x30] sm:$0xff]
        %v1095 = vld [vmem:[#allocation5 + $0x38] sm:$0xff]
        %v1096 = vld [vmem:[#allocation5 + $0x40] sm:$0xff]
        %v1097 = vld [vmem:[#allocation5 + $0x48] sm:$0xff]
        %v1098 = vld [vmem:[#allocation5 + $0x50] sm:$0xff]
        %v1099 = vld [vmem:[#allocation5 + $0x58] sm:$0xff]
        %v1100 = vld [vmem:[#allocation5 + $0x60] sm:$0xff]
        %v1101 = vld [vmem:[#allocation5 + $0x68] sm:$0xff]
        %v1102 = vld [vmem:[#allocation5 + $0x70] sm:$0xff]
        %v1103 = vld [vmem:[#allocation5 + $0x78] sm:$0xff]
        %v1104 = vld [vmem:[%s1 + $0xc] sm:$0x1]
        %v1105 = vpack.c.bf16 %v1104, %v1104
        %v1107 = vpack.i.b16 %v1105, %v1105
        %v1109 = vlaneseq
        %v1110 = vshrl.u32 %v1109, 7
        %v1111 = vsub.s32 0, %v1110
        %v1112 = vrot.slane %v1107, %v1111
        %v1113 = vmul.bf16 %v1064, %v1112
        %v1114 = vmul.bf16 %v1065, %v1112
        %v1115 = vmul.bf16 %v1066, %v1112
        %v1116 = vmul.bf16 %v1067, %v1112
        %v1117 = vmul.bf16 %v1068, %v1112
        %v1118 = vmul.bf16 %v1069, %v1112
        %v1119 = vmul.bf16 %v1070, %v1112
        %v1120 = vmul.bf16 %v1071, %v1112
        %v1122 = vsel %vm428, %v1113, 0
        %v1125 = vsel %vm428, %v1114, 0
        %v1128 = vsel %vm428, %v1115, 0
        %v1131 = vsel %vm428, %v1116, 0
        %v1134 = vsel %vm428, %v1117, 0
        %v1137 = vsel %vm428, %v1118, 0
        %v1140 = vsel %vm428, %v1119, 0
        %v1143 = vsel %vm428, %v1120, 0
        %v1146 = vsel %vm428, %v1072, 0
        %v1149 = vsel %vm428, %v1073, 0
        %v1152 = vsel %vm428, %v1074, 0
        %v1155 = vsel %vm428, %v1075, 0
        %v1158 = vsel %vm428, %v1076, 0
        %v1161 = vsel %vm428, %v1077, 0
        %v1164 = vsel %vm428, %v1078, 0
        %v1167 = vsel %vm428, %v1079, 0
        %1169 = vmatprep.subr.bf16.mxu0 0
        %1170 = vmatpush1.bf16.xpose.msra.mxu0 %v1167
        %1171 = vmatprep.subr.bf16.mxu0 0
        %1172 = vmatpush1.bf16.xpose.msra.mxu0 %v1164
        %1173 = vmatprep.subr.bf16.mxu0 0
        %1174 = vmatpush1.bf16.xpose.msra.mxu0 %v1161
        %1175 = vmatprep.subr.bf16.mxu0 0
        %1176 = vmatpush1.bf16.xpose.msra.mxu0 %v1158
        %1177 = vmatprep.subr.bf16.mxu0 0
        %1178 = vmatpush1.bf16.xpose.msra.mxu0 %v1155
        %1179 = vmatprep.subr.bf16.mxu0 0
        %1180 = vmatpush1.bf16.xpose.msra.mxu0 %v1152
        %1181 = vmatprep.subr.bf16.mxu0 0
        %1182 = vmatpush1.bf16.xpose.msra.mxu0 %v1149
        %1183 = vmatprep.subr.bf16.mxu0 0
        %1184 = vmatpush1.bf16.xpose.msra.mxu0 %v1146
        %1185 = vmatprep.subr.bf16.mxu0 0
        %1186 = vmatpush2.bf16.xpose.msra.mxu0 0
        %1187 = vmatprep.subr.bf16.mxu0 0
        %1188 = vmatpush2.bf16.xpose.msra.mxu0 0
        %1189 = vmatprep.subr.bf16.mxu0 0
        %1190 = vmatpush2.bf16.xpose.msra.mxu0 0
        %1191 = vmatprep.subr.bf16.mxu0 0
        %1192 = vmatpush2.bf16.xpose.msra.mxu0 0
        %1193 = vmatprep.subr.bf16.mxu0 0
        %1194 = vmatpush2.bf16.xpose.msra.mxu0 0
        %1195 = vmatprep.subr.bf16.mxu0 0
        %1196 = vmatpush2.bf16.xpose.msra.mxu0 0
        %1197 = vmatprep.subr.bf16.mxu0 0
        %1198 = vmatpush2.bf16.xpose.msra.mxu0 0
        %1199 = vmatprep.subr.bf16.mxu0 0
        %1200 = vmatpush2.bf16.xpose.msra.mxu0 0
        %1201 = vmatprep.mubr.bf16.mxu0 0
        %1202 = vmatmul.mubr.bf16.gmra.mxu0 %v1122
        %v1203 = vpop.f32.mrf.mxu0
        %v1204 = vadd.f32 %v1088, %v1203
        %v1205 = vpop.f32.mrf.mxu0
        %v1206 = vpop.f32.mrf.mxu0
        %v1207 = vadd.f32 %v1089, %v1206
        %v1208 = vpop.f32.mrf.mxu0
        %1209 = vmatprep.mubr.bf16.mxu0 0
        %1210 = vmatmul.mubr.bf16.gmra.mxu0 %v1125
        %v1211 = vpop.f32.mrf.mxu0
        %v1212 = vadd.f32 %v1090, %v1211
        %v1213 = vpop.f32.mrf.mxu0
        %v1214 = vpop.f32.mrf.mxu0
        %v1215 = vadd.f32 %v1091, %v1214
        %v1216 = vpop.f32.mrf.mxu0
        %1217 = vmatprep.mubr.bf16.mxu0 0
        %1218 = vmatmul.mubr.bf16.gmra.mxu0 %v1128
        %v1219 = vpop.f32.mrf.mxu0
        %v1220 = vadd.f32 %v1092, %v1219
        %v1221 = vpop.f32.mrf.mxu0
        %v1222 = vpop.f32.mrf.mxu0
        %v1223 = vadd.f32 %v1093, %v1222
        %v1224 = vpop.f32.mrf.mxu0
        %1225 = vmatprep.mubr.bf16.mxu0 0
        %1226 = vmatmul.mubr.bf16.gmra.mxu0 %v1131
        %v1227 = vpop.f32.mrf.mxu0
        %v1228 = vadd.f32 %v1094, %v1227
        %v1229 = vpop.f32.mrf.mxu0
        %v1230 = vpop.f32.mrf.mxu0
        %v1231 = vadd.f32 %v1095, %v1230
        %v1232 = vpop.f32.mrf.mxu0
        %1233 = vmatprep.mubr.bf16.mxu0 0
        %1234 = vmatmul.mubr.bf16.gmra.mxu0 %v1134
        %v1235 = vpop.f32.mrf.mxu0
        %v1236 = vadd.f32 %v1096, %v1235
        %v1237 = vpop.f32.mrf.mxu0
        %v1238 = vpop.f32.mrf.mxu0
        %v1239 = vadd.f32 %v1097, %v1238
        %v1240 = vpop.f32.mrf.mxu0
        %1241 = vmatprep.mubr.bf16.mxu0 0
        %1242 = vmatmul.mubr.bf16.gmra.mxu0 %v1137
        %v1243 = vpop.f32.mrf.mxu0
        %v1244 = vadd.f32 %v1098, %v1243
        %v1245 = vpop.f32.mrf.mxu0
        %v1246 = vpop.f32.mrf.mxu0
        %v1247 = vadd.f32 %v1099, %v1246
        %v1248 = vpop.f32.mrf.mxu0
        %1249 = vmatprep.mubr.bf16.mxu0 0
        %1250 = vmatmul.mubr.bf16.gmra.mxu0 %v1140
        %v1251 = vpop.f32.mrf.mxu0
        %v1252 = vadd.f32 %v1100, %v1251
        %v1253 = vpop.f32.mrf.mxu0
        %v1254 = vpop.f32.mrf.mxu0
        %v1255 = vadd.f32 %v1101, %v1254
        %v1256 = vpop.f32.mrf.mxu0
        %1257 = vmatprep.mubr.bf16.mxu0 0
        %1258 = vmatmul.mubr.bf16.gmra.mxu0 %v1143
        %v1259 = vpop.f32.mrf.mxu0
        %v1260 = vadd.f32 %v1102, %v1259
        %v1261 = vpop.f32.mrf.mxu0
        %v1262 = vpop.f32.mrf.mxu0
        %v1263 = vadd.f32 %v1103, %v1262
        %v1264 = vpop.f32.mrf.mxu0
        %1265 = vdwg.mxu0
        %1266 = vmax.xlane.f32.xlu0 %v1204
        %v1267 = vpop.xlane.xlu0 %1266
        %1268 = vmax.xlane.f32.xlu0 %v1207
        %v1269 = vpop.xlane.xlu0 %1268
        %1270 = vmax.xlane.f32.xlu0 %v1212
        %v1271 = vpop.xlane.xlu0 %1270
        %1272 = vmax.xlane.f32.xlu0 %v1215
        %v1273 = vpop.xlane.xlu0 %1272
        %1274 = vmax.xlane.f32.xlu0 %v1220
        %v1275 = vpop.xlane.xlu0 %1274
        %1276 = vmax.xlane.f32.xlu0 %v1223
        %v1277 = vpop.xlane.xlu0 %1276
        %1278 = vmax.xlane.f32.xlu0 %v1228
        %v1279 = vpop.xlane.xlu0 %1278
        %1280 = vmax.xlane.f32.xlu0 %v1231
        %v1281 = vpop.xlane.xlu0 %1280
        %1282 = vmax.xlane.f32.xlu0 %v1236
        %v1283 = vpop.xlane.xlu0 %1282
        %1284 = vmax.xlane.f32.xlu0 %v1239
        %v1285 = vpop.xlane.xlu0 %1284
        %1286 = vmax.xlane.f32.xlu0 %v1244
        %v1287 = vpop.xlane.xlu0 %1286
        %1288 = vmax.xlane.f32.xlu0 %v1247
        %v1289 = vpop.xlane.xlu0 %1288
        %1290 = vmax.xlane.f32.xlu0 %v1252
        %v1291 = vpop.xlane.xlu0 %1290
        %1292 = vmax.xlane.f32.xlu0 %v1255
        %v1293 = vpop.xlane.xlu0 %1292
        %1294 = vmax.xlane.f32.xlu0 %v1260
        %v1295 = vpop.xlane.xlu0 %1294
        %1296 = vmax.xlane.f32.xlu0 %v1263
        %v1297 = vpop.xlane.xlu0 %1296
        %v1298 = vsub.f32 %v1204, %v1267
        %v1299 = vsub.f32 %v1207, %v1269
        %v1300 = vsub.f32 %v1212, %v1271
        %v1301 = vsub.f32 %v1215, %v1273
        %v1302 = vsub.f32 %v1220, %v1275
        %v1303 = vsub.f32 %v1223, %v1277
        %v1304 = vsub.f32 %v1228, %v1279
        %v1305 = vsub.f32 %v1231, %v1281
        %v1306 = vsub.f32 %v1236, %v1283
        %v1307 = vsub.f32 %v1239, %v1285
        %v1308 = vsub.f32 %v1244, %v1287
        %v1309 = vsub.f32 %v1247, %v1289
        %v1310 = vsub.f32 %v1252, %v1291
        %v1311 = vsub.f32 %v1255, %v1293
        %v1312 = vsub.f32 %v1260, %v1295
        %v1313 = vsub.f32 %v1263, %v1297
        %v1314 = vmul.f32 %v1298, 1.442695
        %v1315 = vpow.pop %v1314
        %v1316 = vmul.f32 %v1299, 1.442695
        %v1317 = vpow.pop %v1316
        %v1318 = vmul.f32 %v1300, 1.442695
        %v1319 = vpow.pop %v1318
        %v1320 = vmul.f32 %v1301, 1.442695
        %v1321 = vpow.pop %v1320
        %v1322 = vmul.f32 %v1302, 1.442695
        %v1323 = vpow.pop %v1322
        %v1324 = vmul.f32 %v1303, 1.442695
        %v1325 = vpow.pop %v1324
        %v1326 = vmul.f32 %v1304, 1.442695
        %v1327 = vpow.pop %v1326
        %v1328 = vmul.f32 %v1305, 1.442695
        %v1329 = vpow.pop %v1328
        %v1330 = vmul.f32 %v1306, 1.442695
        %v1331 = vpow.pop %v1330
        %v1332 = vmul.f32 %v1307, 1.442695
        %v1333 = vpow.pop %v1332
        %v1334 = vmul.f32 %v1308, 1.442695
        %v1335 = vpow.pop %v1334
        %v1336 = vmul.f32 %v1309, 1.442695
        %v1337 = vpow.pop %v1336
        %v1338 = vmul.f32 %v1310, 1.442695
        %v1339 = vpow.pop %v1338
        %v1340 = vmul.f32 %v1311, 1.442695
        %v1341 = vpow.pop %v1340
        %v1342 = vmul.f32 %v1312, 1.442695
        %v1343 = vpow.pop %v1342
        %v1344 = vmul.f32 %v1313, 1.442695
        %v1345 = vpow.pop %v1344
        %1346 = vadd.xlane.f32.xlu0 %v1315
        %v1347 = vpop.xlane.xlu0 %1346
        %1348 = vadd.xlane.f32.xlu0 %v1317
        %v1349 = vpop.xlane.xlu0 %1348
        %1350 = vadd.xlane.f32.xlu0 %v1319
        %v1351 = vpop.xlane.xlu0 %1350
        %1352 = vadd.xlane.f32.xlu0 %v1321
        %v1353 = vpop.xlane.xlu0 %1352
        %1354 = vadd.xlane.f32.xlu0 %v1323
        %v1355 = vpop.xlane.xlu0 %1354
        %1356 = vadd.xlane.f32.xlu0 %v1325
        %v1357 = vpop.xlane.xlu0 %1356
        %1358 = vadd.xlane.f32.xlu0 %v1327
        %v1359 = vpop.xlane.xlu0 %1358
        %1360 = vadd.xlane.f32.xlu0 %v1329
        %v1361 = vpop.xlane.xlu0 %1360
        %1362 = vadd.xlane.f32.xlu0 %v1331
        %v1363 = vpop.xlane.xlu0 %1362
        %1364 = vadd.xlane.f32.xlu0 %v1333
        %v1365 = vpop.xlane.xlu0 %1364
        %1366 = vadd.xlane.f32.xlu0 %v1335
        %v1367 = vpop.xlane.xlu0 %1366
        %1368 = vadd.xlane.f32.xlu0 %v1337
        %v1369 = vpop.xlane.xlu0 %1368
        %1370 = vadd.xlane.f32.xlu0 %v1339
        %v1371 = vpop.xlane.xlu0 %1370
        %1372 = vadd.xlane.f32.xlu0 %v1341
        %v1373 = vpop.xlane.xlu0 %1372
        %1374 = vadd.xlane.f32.xlu0 %v1343
        %v1375 = vpop.xlane.xlu0 %1374
        %1376 = vadd.xlane.f32.xlu0 %v1345
        %v1377 = vpop.xlane.xlu0 %1376
        %v1378 = vrcp.pop %v1347
        %v1379 = vrcp.pop %v1349
        %v1380 = vrcp.pop %v1351
        %v1381 = vrcp.pop %v1353
        %v1382 = vrcp.pop %v1355
        %v1383 = vrcp.pop %v1357
        %v1384 = vrcp.pop %v1359
        %v1385 = vrcp.pop %v1361
        %v1386 = vrcp.pop %v1363
        %v1387 = vrcp.pop %v1365
        %v1388 = vrcp.pop %v1367
        %v1389 = vrcp.pop %v1369
        %v1390 = vrcp.pop %v1371
        %v1391 = vrcp.pop %v1373
        %v1392 = vrcp.pop %v1375
        %v1393 = vrcp.pop %v1377
        %v1394 = vmul.f32 %v1315, %v1378
        %v1395 = vmul.f32 %v1317, %v1379
        %v1396 = vmul.f32 %v1319, %v1380
        %v1397 = vmul.f32 %v1321, %v1381
        %v1398 = vmul.f32 %v1323, %v1382
        %v1399 = vmul.f32 %v1325, %v1383
        %v1400 = vmul.f32 %v1327, %v1384
        %v1401 = vmul.f32 %v1329, %v1385
        %v1402 = vmul.f32 %v1331, %v1386
        %v1403 = vmul.f32 %v1333, %v1387
        %v1404 = vmul.f32 %v1335, %v1388
        %v1405 = vmul.f32 %v1337, %v1389
        %v1406 = vmul.f32 %v1339, %v1390
        %v1407 = vmul.f32 %v1341, %v1391
        %v1408 = vmul.f32 %v1343, %v1392
        %v1409 = vmul.f32 %v1345, %v1393
        %v1410 = vpack.c.bf16 %v1395, %v1394
        %v1411 = vpack.c.bf16 %v1397, %v1396
        %v1412 = vpack.c.bf16 %v1399, %v1398
        %v1413 = vpack.c.bf16 %v1401, %v1400
        %v1414 = vpack.c.bf16 %v1403, %v1402
        %v1415 = vpack.c.bf16 %v1405, %v1404
        %v1416 = vpack.c.bf16 %v1407, %v1406
        %v1417 = vpack.c.bf16 %v1409, %v1408
        %v1418 = vmul.bf16 %v1080, %v1112
        %v1419 = vmul.bf16 %v1081, %v1112
        %v1420 = vmul.bf16 %v1082, %v1112
        %v1421 = vmul.bf16 %v1083, %v1112
        %v1422 = vmul.bf16 %v1084, %v1112
        %v1423 = vmul.bf16 %v1085, %v1112
        %v1424 = vmul.bf16 %v1086, %v1112
        %v1425 = vmul.bf16 %v1087, %v1112
        %v1426 = vld [vmem:[%s1 + $0xd] sm:$0x1]
        %v1427 = vpack.c.bf16 %v1426, %v1426
        %v1429 = vpack.i.b16 %v1427, %v1427
        %v1431 = vlaneseq
        %v1432 = vshrl.u32 %v1431, 7
        %v1433 = vsub.s32 0, %v1432
        %v1434 = vrot.slane %v1429, %v1433
        %v1435 = vmul.bf16 %v1064, %v1434
        %v1436 = vmul.bf16 %v1065, %v1434
        %v1437 = vmul.bf16 %v1066, %v1434
        %v1438 = vmul.bf16 %v1067, %v1434
        %v1439 = vmul.bf16 %v1068, %v1434
        %v1440 = vmul.bf16 %v1069, %v1434
        %v1441 = vmul.bf16 %v1070, %v1434
        %v1442 = vmul.bf16 %v1071, %v1434
        %v1444 = vsel %vm428, %v1435, 0
        %v1447 = vsel %vm428, %v1436, 0
        %v1450 = vsel %vm428, %v1437, 0
        %v1453 = vsel %vm428, %v1438, 0
        %v1456 = vsel %vm428, %v1439, 0
        %v1459 = vsel %vm428, %v1440, 0
        %v1462 = vsel %vm428, %v1441, 0
        %v1465 = vsel %vm428, %v1442, 0
        %1467 = vmatprep.subr.bf16.mxu0 0
        %1468 = vmatpush1.bf16.xpose.msra.mxu0 %v1167
        %1469 = vmatprep.subr.bf16.mxu0 0
        %1470 = vmatpush1.bf16.xpose.msra.mxu0 %v1164
        %1471 = vmatprep.subr.bf16.mxu0 0
        %1472 = vmatpush1.bf16.xpose.msra.mxu0 %v1161
        %1473 = vmatprep.subr.bf16.mxu0 0
        %1474 = vmatpush1.bf16.xpose.msra.mxu0 %v1158
        %1475 = vmatprep.subr.bf16.mxu0 0
        %1476 = vmatpush1.bf16.xpose.msra.mxu0 %v1155
        %1477 = vmatprep.subr.bf16.mxu0 0
        %1478 = vmatpush1.bf16.xpose.msra.mxu0 %v1152
        %1479 = vmatprep.subr.bf16.mxu0 0
        %1480 = vmatpush1.bf16.xpose.msra.mxu0 %v1149
        %1481 = vmatprep.subr.bf16.mxu0 0
        %1482 = vmatpush1.bf16.xpose.msra.mxu0 %v1146
        %1483 = vmatprep.subr.bf16.mxu0 0
        %1484 = vmatpush2.bf16.xpose.msra.mxu0 0
        %1485 = vmatprep.subr.bf16.mxu0 0
        %1486 = vmatpush2.bf16.xpose.msra.mxu0 0
        %1487 = vmatprep.subr.bf16.mxu0 0
        %1488 = vmatpush2.bf16.xpose.msra.mxu0 0
        %1489 = vmatprep.subr.bf16.mxu0 0
        %1490 = vmatpush2.bf16.xpose.msra.mxu0 0
        %1491 = vmatprep.subr.bf16.mxu0 0
        %1492 = vmatpush2.bf16.xpose.msra.mxu0 0
        %1493 = vmatprep.subr.bf16.mxu0 0
        %1494 = vmatpush2.bf16.xpose.msra.mxu0 0
        %1495 = vmatprep.subr.bf16.mxu0 0
        %1496 = vmatpush2.bf16.xpose.msra.mxu0 0
        %1497 = vmatprep.subr.bf16.mxu0 0
        %1498 = vmatpush2.bf16.xpose.msra.mxu0 0
        %1499 = vmatprep.mubr.bf16.mxu0 0
        %1500 = vmatmul.mubr.bf16.gmra.mxu0 %v1444
        %v1501 = vpop.f32.mrf.mxu0
        %v1502 = vadd.f32 %v1088, %v1501
        %v1503 = vpop.f32.mrf.mxu0
        %v1504 = vpop.f32.mrf.mxu0
        %v1505 = vadd.f32 %v1089, %v1504
        %v1506 = vpop.f32.mrf.mxu0
        %1507 = vmatprep.mubr.bf16.mxu0 0
        %1508 = vmatmul.mubr.bf16.gmra.mxu0 %v1447
        %v1509 = vpop.f32.mrf.mxu0
        %v1510 = vadd.f32 %v1090, %v1509
        %v1511 = vpop.f32.mrf.mxu0
        %v1512 = vpop.f32.mrf.mxu0
        %v1513 = vadd.f32 %v1091, %v1512
        %v1514 = vpop.f32.mrf.mxu0
        %1515 = vmatprep.mubr.bf16.mxu0 0
        %1516 = vmatmul.mubr.bf16.gmra.mxu0 %v1450
        %v1517 = vpop.f32.mrf.mxu0
        %v1518 = vadd.f32 %v1092, %v1517
        %v1519 = vpop.f32.mrf.mxu0
        %v1520 = vpop.f32.mrf.mxu0
        %v1521 = vadd.f32 %v1093, %v1520
        %v1522 = vpop.f32.mrf.mxu0
        %1523 = vmatprep.mubr.bf16.mxu0 0
        %1524 = vmatmul.mubr.bf16.gmra.mxu0 %v1453
        %v1525 = vpop.f32.mrf.mxu0
        %v1526 = vadd.f32 %v1094, %v1525
        %v1527 = vpop.f32.mrf.mxu0
        %v1528 = vpop.f32.mrf.mxu0
        %v1529 = vadd.f32 %v1095, %v1528
        %v1530 = vpop.f32.mrf.mxu0
        %1531 = vmatprep.mubr.bf16.mxu0 0
        %1532 = vmatmul.mubr.bf16.gmra.mxu0 %v1456
        %v1533 = vpop.f32.mrf.mxu0
        %v1534 = vadd.f32 %v1096, %v1533
        %v1535 = vpop.f32.mrf.mxu0
        %v1536 = vpop.f32.mrf.mxu0
        %v1537 = vadd.f32 %v1097, %v1536
        %v1538 = vpop.f32.mrf.mxu0
        %1539 = vmatprep.mubr.bf16.mxu0 0
        %1540 = vmatmul.mubr.bf16.gmra.mxu0 %v1459
        %v1541 = vpop.f32.mrf.mxu0
        %v1542 = vadd.f32 %v1098, %v1541
        %v1543 = vpop.f32.mrf.mxu0
        %v1544 = vpop.f32.mrf.mxu0
        %v1545 = vadd.f32 %v1099, %v1544
        %v1546 = vpop.f32.mrf.mxu0
        %1547 = vmatprep.mubr.bf16.mxu0 0
        %1548 = vmatmul.mubr.bf16.gmra.mxu0 %v1462
        %v1549 = vpop.f32.mrf.mxu0
        %v1550 = vadd.f32 %v1100, %v1549
        %v1551 = vpop.f32.mrf.mxu0
        %v1552 = vpop.f32.mrf.mxu0
        %v1553 = vadd.f32 %v1101, %v1552
        %v1554 = vpop.f32.mrf.mxu0
        %1555 = vmatprep.mubr.bf16.mxu0 0
        %1556 = vmatmul.mubr.bf16.gmra.mxu0 %v1465
        %v1557 = vpop.f32.mrf.mxu0
        %v1558 = vadd.f32 %v1102, %v1557
        %v1559 = vpop.f32.mrf.mxu0
        %v1560 = vpop.f32.mrf.mxu0
        %v1561 = vadd.f32 %v1103, %v1560
        %v1562 = vpop.f32.mrf.mxu0
        %1563 = vdwg.mxu0
        %1564 = vmax.xlane.f32.xlu0 %v1502
        %v1565 = vpop.xlane.xlu0 %1564
        %1566 = vmax.xlane.f32.xlu0 %v1505
        %v1567 = vpop.xlane.xlu0 %1566
        %1568 = vmax.xlane.f32.xlu0 %v1510
        %v1569 = vpop.xlane.xlu0 %1568
        %1570 = vmax.xlane.f32.xlu0 %v1513
        %v1571 = vpop.xlane.xlu0 %1570
        %1572 = vmax.xlane.f32.xlu0 %v1518
        %v1573 = vpop.xlane.xlu0 %1572
        %1574 = vmax.xlane.f32.xlu0 %v1521
        %v1575 = vpop.xlane.xlu0 %1574
        %1576 = vmax.xlane.f32.xlu0 %v1526
        %v1577 = vpop.xlane.xlu0 %1576
        %1578 = vmax.xlane.f32.xlu0 %v1529
        %v1579 = vpop.xlane.xlu0 %1578
        %1580 = vmax.xlane.f32.xlu0 %v1534
        %v1581 = vpop.xlane.xlu0 %1580
        %1582 = vmax.xlane.f32.xlu0 %v1537
        %v1583 = vpop.xlane.xlu0 %1582
        %1584 = vmax.xlane.f32.xlu0 %v1542
        %v1585 = vpop.xlane.xlu0 %1584
        %1586 = vmax.xlane.f32.xlu0 %v1545
        %v1587 = vpop.xlane.xlu0 %1586
        %1588 = vmax.xlane.f32.xlu0 %v1550
        %v1589 = vpop.xlane.xlu0 %1588
        %1590 = vmax.xlane.f32.xlu0 %v1553
        %v1591 = vpop.xlane.xlu0 %1590
        %1592 = vmax.xlane.f32.xlu0 %v1558
        %v1593 = vpop.xlane.xlu0 %1592
        %1594 = vmax.xlane.f32.xlu0 %v1561
        %v1595 = vpop.xlane.xlu0 %1594
        %v1596 = vsub.f32 %v1502, %v1565
        %v1597 = vsub.f32 %v1505, %v1567
        %v1598 = vsub.f32 %v1510, %v1569
        %v1599 = vsub.f32 %v1513, %v1571
        %v1600 = vsub.f32 %v1518, %v1573
        %v1601 = vsub.f32 %v1521, %v1575
        %v1602 = vsub.f32 %v1526, %v1577
        %v1603 = vsub.f32 %v1529, %v1579
        %v1604 = vsub.f32 %v1534, %v1581
        %v1605 = vsub.f32 %v1537, %v1583
        %v1606 = vsub.f32 %v1542, %v1585
        %v1607 = vsub.f32 %v1545, %v1587
        %v1608 = vsub.f32 %v1550, %v1589
        %v1609 = vsub.f32 %v1553, %v1591
        %v1610 = vsub.f32 %v1558, %v1593
        %v1611 = vsub.f32 %v1561, %v1595
        %v1612 = vmul.f32 %v1596, 1.442695
        %v1613 = vpow.pop %v1612
        %v1614 = vmul.f32 %v1597, 1.442695
        %v1615 = vpow.pop %v1614
        %v1616 = vmul.f32 %v1598, 1.442695
        %v1617 = vpow.pop %v1616
        %v1618 = vmul.f32 %v1599, 1.442695
        %v1619 = vpow.pop %v1618
        %v1620 = vmul.f32 %v1600, 1.442695
        %v1621 = vpow.pop %v1620
        %v1622 = vmul.f32 %v1601, 1.442695
        %v1623 = vpow.pop %v1622
        %v1624 = vmul.f32 %v1602, 1.442695
        %v1625 = vpow.pop %v1624
        %v1626 = vmul.f32 %v1603, 1.442695
        %v1627 = vpow.pop %v1626
        %v1628 = vmul.f32 %v1604, 1.442695
        %v1629 = vpow.pop %v1628
        %v1630 = vmul.f32 %v1605, 1.442695
        %v1631 = vpow.pop %v1630
        %v1632 = vmul.f32 %v1606, 1.442695
        %v1633 = vpow.pop %v1632
        %v1634 = vmul.f32 %v1607, 1.442695
        %v1635 = vpow.pop %v1634
        %v1636 = vmul.f32 %v1608, 1.442695
        %v1637 = vpow.pop %v1636
        %v1638 = vmul.f32 %v1609, 1.442695
        %v1639 = vpow.pop %v1638
        %v1640 = vmul.f32 %v1610, 1.442695
        %v1641 = vpow.pop %v1640
        %v1642 = vmul.f32 %v1611, 1.442695
        %v1643 = vpow.pop %v1642
        %1644 = vadd.xlane.f32.xlu0 %v1613
        %v1645 = vpop.xlane.xlu0 %1644
        %1646 = vadd.xlane.f32.xlu0 %v1615
        %v1647 = vpop.xlane.xlu0 %1646
        %1648 = vadd.xlane.f32.xlu0 %v1617
        %v1649 = vpop.xlane.xlu0 %1648
        %1650 = vadd.xlane.f32.xlu0 %v1619
        %v1651 = vpop.xlane.xlu0 %1650
        %1652 = vadd.xlane.f32.xlu0 %v1621
        %v1653 = vpop.xlane.xlu0 %1652
        %1654 = vadd.xlane.f32.xlu0 %v1623
        %v1655 = vpop.xlane.xlu0 %1654
        %1656 = vadd.xlane.f32.xlu0 %v1625
        %v1657 = vpop.xlane.xlu0 %1656
        %1658 = vadd.xlane.f32.xlu0 %v1627
        %v1659 = vpop.xlane.xlu0 %1658
        %1660 = vadd.xlane.f32.xlu0 %v1629
        %v1661 = vpop.xlane.xlu0 %1660
        %1662 = vadd.xlane.f32.xlu0 %v1631
        %v1663 = vpop.xlane.xlu0 %1662
        %1664 = vadd.xlane.f32.xlu0 %v1633
        %v1665 = vpop.xlane.xlu0 %1664
        %1666 = vadd.xlane.f32.xlu0 %v1635
        %v1667 = vpop.xlane.xlu0 %1666
        %1668 = vadd.xlane.f32.xlu0 %v1637
        %v1669 = vpop.xlane.xlu0 %1668
        %1670 = vadd.xlane.f32.xlu0 %v1639
        %v1671 = vpop.xlane.xlu0 %1670
        %1672 = vadd.xlane.f32.xlu0 %v1641
        %v1673 = vpop.xlane.xlu0 %1672
        %1674 = vadd.xlane.f32.xlu0 %v1643
        %v1675 = vpop.xlane.xlu0 %1674
        %v1676 = vrcp.pop %v1645
        %v1677 = vrcp.pop %v1647
        %v1678 = vrcp.pop %v1649
        %v1679 = vrcp.pop %v1651
        %v1680 = vrcp.pop %v1653
        %v1681 = vrcp.pop %v1655
        %v1682 = vrcp.pop %v1657
        %v1683 = vrcp.pop %v1659
        %v1684 = vrcp.pop %v1661
        %v1685 = vrcp.pop %v1663
        %v1686 = vrcp.pop %v1665
        %v1687 = vrcp.pop %v1667
        %v1688 = vrcp.pop %v1669
        %v1689 = vrcp.pop %v1671
        %v1690 = vrcp.pop %v1673
        %v1691 = vrcp.pop %v1675
        %v1692 = vmul.f32 %v1613, %v1676
        %v1693 = vmul.f32 %v1615, %v1677
        %v1694 = vmul.f32 %v1617, %v1678
        %v1695 = vmul.f32 %v1619, %v1679
        %v1696 = vmul.f32 %v1621, %v1680
        %v1697 = vmul.f32 %v1623, %v1681
        %v1698 = vmul.f32 %v1625, %v1682
        %v1699 = vmul.f32 %v1627, %v1683
        %v1700 = vmul.f32 %v1629, %v1684
        %v1701 = vmul.f32 %v1631, %v1685
        %v1702 = vmul.f32 %v1633, %v1686
        %v1703 = vmul.f32 %v1635, %v1687
        %v1704 = vmul.f32 %v1637, %v1688
        %v1705 = vmul.f32 %v1639, %v1689
        %v1706 = vmul.f32 %v1641, %v1690
        %v1707 = vmul.f32 %v1643, %v1691
        %v1708 = vpack.c.bf16 %v1693, %v1692
        %v1709 = vpack.c.bf16 %v1695, %v1694
        %v1710 = vpack.c.bf16 %v1697, %v1696
        %v1711 = vpack.c.bf16 %v1699, %v1698
        %v1712 = vpack.c.bf16 %v1701, %v1700
        %v1713 = vpack.c.bf16 %v1703, %v1702
        %v1714 = vpack.c.bf16 %v1705, %v1704
        %v1715 = vpack.c.bf16 %v1707, %v1706
        %v1716 = vmul.bf16 %v1080, %v1434
        %v1717 = vmul.bf16 %v1081, %v1434
        %v1718 = vmul.bf16 %v1082, %v1434
        %v1719 = vmul.bf16 %v1083, %v1434
        %v1720 = vmul.bf16 %v1084, %v1434
        %v1721 = vmul.bf16 %v1085, %v1434
        %v1722 = vmul.bf16 %v1086, %v1434
        %v1723 = vmul.bf16 %v1087, %v1434
        %1724 = vmatprep.subr.bf16.mxu0 0
        %1725 = vmatpush1.bf16.msra.mxu0 %v1723
        %1726 = vmatprep.subr.bf16.mxu0 0
        %1727 = vmatpush1.bf16.msra.mxu0 %v1722
        %1728 = vmatprep.subr.bf16.mxu0 0
        %1729 = vmatpush1.bf16.msra.mxu0 %v1721
        %1730 = vmatprep.subr.bf16.mxu0 0
        %1731 = vmatpush1.bf16.msra.mxu0 %v1720
        %1732 = vmatprep.subr.bf16.mxu0 0
        %1733 = vmatpush1.bf16.msra.mxu0 %v1719
        %1734 = vmatprep.subr.bf16.mxu0 0
        %1735 = vmatpush1.bf16.msra.mxu0 %v1718
        %1736 = vmatprep.subr.bf16.mxu0 0
        %1737 = vmatpush1.bf16.msra.mxu0 %v1717
        %1738 = vmatprep.subr.bf16.mxu0 0
        %1739 = vmatpush1.bf16.msra.mxu0 %v1716
        %1740 = vmatprep.subr.bf16.mxu0 0
        %1741 = vmatpush2.bf16.msra.mxu0 0
        %1742 = vmatprep.subr.bf16.mxu0 0
        %1743 = vmatpush2.bf16.msra.mxu0 0
        %1744 = vmatprep.subr.bf16.mxu0 0
        %1745 = vmatpush2.bf16.msra.mxu0 0
        %1746 = vmatprep.subr.bf16.mxu0 0
        %1747 = vmatpush2.bf16.msra.mxu0 0
        %1748 = vmatprep.subr.bf16.mxu0 0
        %1749 = vmatpush2.bf16.msra.mxu0 0
        %1750 = vmatprep.subr.bf16.mxu0 0
        %1751 = vmatpush2.bf16.msra.mxu0 0
        %1752 = vmatprep.subr.bf16.mxu0 0
        %1753 = vmatpush2.bf16.msra.mxu0 0
        %1754 = vmatprep.subr.bf16.mxu0 0
        %1755 = vmatpush2.bf16.msra.mxu0 0
        %1756 = vmatprep.mubr.bf16.mxu0 0
        %1757 = vmatmul.mubr.bf16.gmra.mxu0 %v1708
        %v1758 = vpop.f32.mrf.mxu0
        %v1759 = vadd.f32 0.0, %v1758
        %v1760 = vpop.f32.mrf.mxu0
        %v1761 = vpop.f32.mrf.mxu0
        %v1762 = vadd.f32 0.0, %v1761
        %v1763 = vpop.f32.mrf.mxu0
        %1764 = vmatprep.mubr.bf16.mxu0 0
        %1765 = vmatmul.mubr.bf16.gmra.mxu0 %v1709
        %v1766 = vpop.f32.mrf.mxu0
        %v1767 = vadd.f32 0.0, %v1766
        %v1768 = vpop.f32.mrf.mxu0
        %v1769 = vpop.f32.mrf.mxu0
        %v1770 = vadd.f32 0.0, %v1769
        %v1771 = vpop.f32.mrf.mxu0
        %1772 = vmatprep.mubr.bf16.mxu0 0
        %1773 = vmatmul.mubr.bf16.gmra.mxu0 %v1710
        %v1774 = vpop.f32.mrf.mxu0
        %v1775 = vadd.f32 0.0, %v1774
        %v1776 = vpop.f32.mrf.mxu0
        %v1777 = vpop.f32.mrf.mxu0
        %v1778 = vadd.f32 0.0, %v1777
        %v1779 = vpop.f32.mrf.mxu0
        %1780 = vmatprep.mubr.bf16.mxu0 0
        %1781 = vmatmul.mubr.bf16.gmra.mxu0 %v1711
        %v1782 = vpop.f32.mrf.mxu0
        %v1783 = vadd.f32 0.0, %v1782
        %v1784 = vpop.f32.mrf.mxu0
        %v1785 = vpop.f32.mrf.mxu0
        %v1786 = vadd.f32 0.0, %v1785
        %v1787 = vpop.f32.mrf.mxu0
        %1788 = vmatprep.mubr.bf16.mxu0 0
        %1789 = vmatmul.mubr.bf16.gmra.mxu0 %v1712
        %v1790 = vpop.f32.mrf.mxu0
        %v1791 = vadd.f32 0.0, %v1790
        %v1792 = vpop.f32.mrf.mxu0
        %v1793 = vpop.f32.mrf.mxu0
        %v1794 = vadd.f32 0.0, %v1793
        %v1795 = vpop.f32.mrf.mxu0
        %1796 = vmatprep.mubr.bf16.mxu0 0
        %1797 = vmatmul.mubr.bf16.gmra.mxu0 %v1713
        %v1798 = vpop.f32.mrf.mxu0
        %v1799 = vadd.f32 0.0, %v1798
        %v1800 = vpop.f32.mrf.mxu0
        %v1801 = vpop.f32.mrf.mxu0
        %v1802 = vadd.f32 0.0, %v1801
        %v1803 = vpop.f32.mrf.mxu0
        %1804 = vmatprep.mubr.bf16.mxu0 0
        %1805 = vmatmul.mubr.bf16.gmra.mxu0 %v1714
        %v1806 = vpop.f32.mrf.mxu0
        %v1807 = vadd.f32 0.0, %v1806
        %v1808 = vpop.f32.mrf.mxu0
        %v1809 = vpop.f32.mrf.mxu0
        %v1810 = vadd.f32 0.0, %v1809
        %v1811 = vpop.f32.mrf.mxu0
        %1812 = vmatprep.mubr.bf16.mxu0 0
        %1813 = vmatmul.mubr.bf16.gmra.mxu0 %v1715
        %v1814 = vpop.f32.mrf.mxu0
        %v1815 = vadd.f32 0.0, %v1814
        %v1816 = vpop.f32.mrf.mxu0
        %v1817 = vpop.f32.mrf.mxu0
        %v1818 = vadd.f32 0.0, %v1817
        %v1819 = vpop.f32.mrf.mxu0
        %1820 = vdwg.mxu0
        %1821 = vmatprep.subr.bf16.mxu0 0
        %1822 = vmatpush1.bf16.msra.mxu0 %v1425
        %1823 = vmatprep.subr.bf16.mxu0 0
        %1824 = vmatpush1.bf16.msra.mxu0 %v1424
        %1825 = vmatprep.subr.bf16.mxu0 0
        %1826 = vmatpush1.bf16.msra.mxu0 %v1423
        %1827 = vmatprep.subr.bf16.mxu0 0
        %1828 = vmatpush1.bf16.msra.mxu0 %v1422
        %1829 = vmatprep.subr.bf16.mxu0 0
        %1830 = vmatpush1.bf16.msra.mxu0 %v1421
        %1831 = vmatprep.subr.bf16.mxu0 0
        %1832 = vmatpush1.bf16.msra.mxu0 %v1420
        %1833 = vmatprep.subr.bf16.mxu0 0
        %1834 = vmatpush1.bf16.msra.mxu0 %v1419
        %1835 = vmatprep.subr.bf16.mxu0 0
        %1836 = vmatpush1.bf16.msra.mxu0 %v1418
        %1837 = vmatprep.subr.bf16.mxu0 0
        %1838 = vmatpush2.bf16.msra.mxu0 0
        %1839 = vmatprep.subr.bf16.mxu0 0
        %1840 = vmatpush2.bf16.msra.mxu0 0
        %1841 = vmatprep.subr.bf16.mxu0 0
        %1842 = vmatpush2.bf16.msra.mxu0 0
        %1843 = vmatprep.subr.bf16.mxu0 0
        %1844 = vmatpush2.bf16.msra.mxu0 0
        %1845 = vmatprep.subr.bf16.mxu0 0
        %1846 = vmatpush2.bf16.msra.mxu0 0
        %1847 = vmatprep.subr.bf16.mxu0 0
        %1848 = vmatpush2.bf16.msra.mxu0 0
        %1849 = vmatprep.subr.bf16.mxu0 0
        %1850 = vmatpush2.bf16.msra.mxu0 0
        %1851 = vmatprep.subr.bf16.mxu0 0
        %1852 = vmatpush2.bf16.msra.mxu0 0
        %1853 = vmatprep.mubr.bf16.mxu0 0
        %1854 = vmatmul.mubr.bf16.gmra.mxu0 %v1410
        %v1855 = vpop.f32.mrf.mxu0
        %v1856 = vadd.f32 %v1759, %v1855
        %v1857 = vpop.f32.mrf.mxu0
        %v1858 = vpop.f32.mrf.mxu0
        %v1859 = vadd.f32 %v1762, %v1858
        %v1860 = vpop.f32.mrf.mxu0
        %1861 = vmatprep.mubr.bf16.mxu0 0
        %1862 = vmatmul.mubr.bf16.gmra.mxu0 %v1411
        %v1863 = vpop.f32.mrf.mxu0
        %v1864 = vadd.f32 %v1767, %v1863
        %v1865 = vpop.f32.mrf.mxu0
        %v1866 = vpop.f32.mrf.mxu0
        %v1867 = vadd.f32 %v1770, %v1866
        %v1868 = vpop.f32.mrf.mxu0
        %1869 = vmatprep.mubr.bf16.mxu0 0
        %1870 = vmatmul.mubr.bf16.gmra.mxu0 %v1412
        %v1871 = vpop.f32.mrf.mxu0
        %v1872 = vadd.f32 %v1775, %v1871
        %v1873 = vpop.f32.mrf.mxu0
        %v1874 = vpop.f32.mrf.mxu0
        %v1875 = vadd.f32 %v1778, %v1874
        %v1876 = vpop.f32.mrf.mxu0
        %1877 = vmatprep.mubr.bf16.mxu0 0
        %1878 = vmatmul.mubr.bf16.gmra.mxu0 %v1413
        %v1879 = vpop.f32.mrf.mxu0
        %v1880 = vadd.f32 %v1783, %v1879
        %v1881 = vpop.f32.mrf.mxu0
        %v1882 = vpop.f32.mrf.mxu0
        %v1883 = vadd.f32 %v1786, %v1882
        %v1884 = vpop.f32.mrf.mxu0
        %1885 = vmatprep.mubr.bf16.mxu0 0
        %1886 = vmatmul.mubr.bf16.gmra.mxu0 %v1414
        %v1887 = vpop.f32.mrf.mxu0
        %v1888 = vadd.f32 %v1791, %v1887
        %v1889 = vpop.f32.mrf.mxu0
        %v1890 = vpop.f32.mrf.mxu0
        %v1891 = vadd.f32 %v1794, %v1890
        %v1892 = vpop.f32.mrf.mxu0
        %1893 = vmatprep.mubr.bf16.mxu0 0
        %1894 = vmatmul.mubr.bf16.gmra.mxu0 %v1415
        %v1895 = vpop.f32.mrf.mxu0
        %v1896 = vadd.f32 %v1799, %v1895
        %v1897 = vpop.f32.mrf.mxu0
        %v1898 = vpop.f32.mrf.mxu0
        %v1899 = vadd.f32 %v1802, %v1898
        %v1900 = vpop.f32.mrf.mxu0
        %1901 = vmatprep.mubr.bf16.mxu0 0
        %1902 = vmatmul.mubr.bf16.gmra.mxu0 %v1416
        %v1903 = vpop.f32.mrf.mxu0
        %v1904 = vadd.f32 %v1807, %v1903
        %v1905 = vpop.f32.mrf.mxu0
        %v1906 = vpop.f32.mrf.mxu0
        %v1907 = vadd.f32 %v1810, %v1906
        %v1908 = vpop.f32.mrf.mxu0
        %1909 = vmatprep.mubr.bf16.mxu0 0
        %1910 = vmatmul.mubr.bf16.gmra.mxu0 %v1417
        %v1911 = vpop.f32.mrf.mxu0
        %v1912 = vadd.f32 %v1815, %v1911
        %v1913 = vpop.f32.mrf.mxu0
        %v1914 = vpop.f32.mrf.mxu0
        %v1915 = vadd.f32 %v1818, %v1914
        %v1916 = vpop.f32.mrf.mxu0
        %1917 = vdwg.mxu0
        %v1918 = vld [vmem:[%s1 + $0xe] sm:$0x1]
        %v1919 = vpack.c.bf16 %v1918, %v1918
        %v1921 = vpack.i.b16 %v1919, %v1919
        %v1923 = vlaneseq
        %v1924 = vshrl.u32 %v1923, 7
        %v1925 = vsub.s32 0, %v1924
        %v1926 = vrot.slane %v1921, %v1925
        %v1927 = vmul.bf16 %v1064, %v1926
        %v1928 = vmul.bf16 %v1065, %v1926
        %v1929 = vmul.bf16 %v1066, %v1926
        %v1930 = vmul.bf16 %v1067, %v1926
        %v1931 = vmul.bf16 %v1068, %v1926
        %v1932 = vmul.bf16 %v1069, %v1926
        %v1933 = vmul.bf16 %v1070, %v1926
        %v1934 = vmul.bf16 %v1071, %v1926
        %v1936 = vsel %vm428, %v1927, 0
        %v1939 = vsel %vm428, %v1928, 0
        %v1942 = vsel %vm428, %v1929, 0
        %v1945 = vsel %vm428, %v1930, 0
        %v1948 = vsel %vm428, %v1931, 0
        %v1951 = vsel %vm428, %v1932, 0
        %v1954 = vsel %vm428, %v1933, 0
        %v1957 = vsel %vm428, %v1934, 0
        %1959 = vmatprep.subr.bf16.mxu0 0
        %1960 = vmatpush1.bf16.xpose.msra.mxu0 %v1167
        %1961 = vmatprep.subr.bf16.mxu0 0
        %1962 = vmatpush1.bf16.xpose.msra.mxu0 %v1164
        %1963 = vmatprep.subr.bf16.mxu0 0
        %1964 = vmatpush1.bf16.xpose.msra.mxu0 %v1161
        %1965 = vmatprep.subr.bf16.mxu0 0
        %1966 = vmatpush1.bf16.xpose.msra.mxu0 %v1158
        %1967 = vmatprep.subr.bf16.mxu0 0
        %1968 = vmatpush1.bf16.xpose.msra.mxu0 %v1155
        %1969 = vmatprep.subr.bf16.mxu0 0
        %1970 = vmatpush1.bf16.xpose.msra.mxu0 %v1152
        %1971 = vmatprep.subr.bf16.mxu0 0
        %1972 = vmatpush1.bf16.xpose.msra.mxu0 %v1149
        %1973 = vmatprep.subr.bf16.mxu0 0
        %1974 = vmatpush1.bf16.xpose.msra.mxu0 %v1146
        %1975 = vmatprep.subr.bf16.mxu0 0
        %1976 = vmatpush2.bf16.xpose.msra.mxu0 0
        %1977 = vmatprep.subr.bf16.mxu0 0
        %1978 = vmatpush2.bf16.xpose.msra.mxu0 0
        %1979 = vmatprep.subr.bf16.mxu0 0
        %1980 = vmatpush2.bf16.xpose.msra.mxu0 0
        %1981 = vmatprep.subr.bf16.mxu0 0
        %1982 = vmatpush2.bf16.xpose.msra.mxu0 0
        %1983 = vmatprep.subr.bf16.mxu0 0
        %1984 = vmatpush2.bf16.xpose.msra.mxu0 0
        %1985 = vmatprep.subr.bf16.mxu0 0
        %1986 = vmatpush2.bf16.xpose.msra.mxu0 0
        %1987 = vmatprep.subr.bf16.mxu0 0
        %1988 = vmatpush2.bf16.xpose.msra.mxu0 0
        %1989 = vmatprep.subr.bf16.mxu0 0
        %1990 = vmatpush2.bf16.xpose.msra.mxu0 0
        %1991 = vmatprep.mubr.bf16.mxu0 0
        %1992 = vmatmul.mubr.bf16.gmra.mxu0 %v1936
        %v1993 = vpop.f32.mrf.mxu0
        %v1994 = vadd.f32 %v1088, %v1993
        %v1995 = vpop.f32.mrf.mxu0
        %v1996 = vpop.f32.mrf.mxu0
        %v1997 = vadd.f32 %v1089, %v1996
        %v1998 = vpop.f32.mrf.mxu0
        %1999 = vmatprep.mubr.bf16.mxu0 0
        %2000 = vmatmul.mubr.bf16.gmra.mxu0 %v1939
        %v2001 = vpop.f32.mrf.mxu0
        %v2002 = vadd.f32 %v1090, %v2001
        %v2003 = vpop.f32.mrf.mxu0
        %v2004 = vpop.f32.mrf.mxu0
        %v2005 = vadd.f32 %v1091, %v2004
        %v2006 = vpop.f32.mrf.mxu0
        %2007 = vmatprep.mubr.bf16.mxu0 0
        %2008 = vmatmul.mubr.bf16.gmra.mxu0 %v1942
        %v2009 = vpop.f32.mrf.mxu0
        %v2010 = vadd.f32 %v1092, %v2009
        %v2011 = vpop.f32.mrf.mxu0
        %v2012 = vpop.f32.mrf.mxu0
        %v2013 = vadd.f32 %v1093, %v2012
        %v2014 = vpop.f32.mrf.mxu0
        %2015 = vmatprep.mubr.bf16.mxu0 0
        %2016 = vmatmul.mubr.bf16.gmra.mxu0 %v1945
        %v2017 = vpop.f32.mrf.mxu0
        %v2018 = vadd.f32 %v1094, %v2017
        %v2019 = vpop.f32.mrf.mxu0
        %v2020 = vpop.f32.mrf.mxu0
        %v2021 = vadd.f32 %v1095, %v2020
        %v2022 = vpop.f32.mrf.mxu0
        %2023 = vmatprep.mubr.bf16.mxu0 0
        %2024 = vmatmul.mubr.bf16.gmra.mxu0 %v1948
        %v2025 = vpop.f32.mrf.mxu0
        %v2026 = vadd.f32 %v1096, %v2025
        %v2027 = vpop.f32.mrf.mxu0
        %v2028 = vpop.f32.mrf.mxu0
        %v2029 = vadd.f32 %v1097, %v2028
        %v2030 = vpop.f32.mrf.mxu0
        %2031 = vmatprep.mubr.bf16.mxu0 0
        %2032 = vmatmul.mubr.bf16.gmra.mxu0 %v1951
        %v2033 = vpop.f32.mrf.mxu0
        %v2034 = vadd.f32 %v1098, %v2033
        %v2035 = vpop.f32.mrf.mxu0
        %v2036 = vpop.f32.mrf.mxu0
        %v2037 = vadd.f32 %v1099, %v2036
        %v2038 = vpop.f32.mrf.mxu0
        %2039 = vmatprep.mubr.bf16.mxu0 0
        %2040 = vmatmul.mubr.bf16.gmra.mxu0 %v1954
        %v2041 = vpop.f32.mrf.mxu0
        %v2042 = vadd.f32 %v1100, %v2041
        %v2043 = vpop.f32.mrf.mxu0
        %v2044 = vpop.f32.mrf.mxu0
        %v2045 = vadd.f32 %v1101, %v2044
        %v2046 = vpop.f32.mrf.mxu0
        %2047 = vmatprep.mubr.bf16.mxu0 0
        %2048 = vmatmul.mubr.bf16.gmra.mxu0 %v1957
        %v2049 = vpop.f32.mrf.mxu0
        %v2050 = vadd.f32 %v1102, %v2049
        %v2051 = vpop.f32.mrf.mxu0
        %v2052 = vpop.f32.mrf.mxu0
        %v2053 = vadd.f32 %v1103, %v2052
        %v2054 = vpop.f32.mrf.mxu0
        %2055 = vdwg.mxu0
        %2056 = vmax.xlane.f32.xlu0 %v1994
        %v2057 = vpop.xlane.xlu0 %2056
        %2058 = vmax.xlane.f32.xlu0 %v1997
        %v2059 = vpop.xlane.xlu0 %2058
        %2060 = vmax.xlane.f32.xlu0 %v2002
        %v2061 = vpop.xlane.xlu0 %2060
        %2062 = vmax.xlane.f32.xlu0 %v2005
        %v2063 = vpop.xlane.xlu0 %2062
        %2064 = vmax.xlane.f32.xlu0 %v2010
        %v2065 = vpop.xlane.xlu0 %2064
        %2066 = vmax.xlane.f32.xlu0 %v2013
        %v2067 = vpop.xlane.xlu0 %2066
        %2068 = vmax.xlane.f32.xlu0 %v2018
        %v2069 = vpop.xlane.xlu0 %2068
        %2070 = vmax.xlane.f32.xlu0 %v2021
        %v2071 = vpop.xlane.xlu0 %2070
        %2072 = vmax.xlane.f32.xlu0 %v2026
        %v2073 = vpop.xlane.xlu0 %2072
        %2074 = vmax.xlane.f32.xlu0 %v2029
        %v2075 = vpop.xlane.xlu0 %2074
        %2076 = vmax.xlane.f32.xlu0 %v2034
        %v2077 = vpop.xlane.xlu0 %2076
        %2078 = vmax.xlane.f32.xlu0 %v2037
        %v2079 = vpop.xlane.xlu0 %2078
        %2080 = vmax.xlane.f32.xlu0 %v2042
        %v2081 = vpop.xlane.xlu0 %2080
        %2082 = vmax.xlane.f32.xlu0 %v2045
        %v2083 = vpop.xlane.xlu0 %2082
        %2084 = vmax.xlane.f32.xlu0 %v2050
        %v2085 = vpop.xlane.xlu0 %2084
        %2086 = vmax.xlane.f32.xlu0 %v2053
        %v2087 = vpop.xlane.xlu0 %2086
        %v2088 = vsub.f32 %v1994, %v2057
        %v2089 = vsub.f32 %v1997, %v2059
        %v2090 = vsub.f32 %v2002, %v2061
        %v2091 = vsub.f32 %v2005, %v2063
        %v2092 = vsub.f32 %v2010, %v2065
        %v2093 = vsub.f32 %v2013, %v2067
        %v2094 = vsub.f32 %v2018, %v2069
        %v2095 = vsub.f32 %v2021, %v2071
        %v2096 = vsub.f32 %v2026, %v2073
        %v2097 = vsub.f32 %v2029, %v2075
        %v2098 = vsub.f32 %v2034, %v2077
        %v2099 = vsub.f32 %v2037, %v2079
        %v2100 = vsub.f32 %v2042, %v2081
        %v2101 = vsub.f32 %v2045, %v2083
        %v2102 = vsub.f32 %v2050, %v2085
        %v2103 = vsub.f32 %v2053, %v2087
        %v2104 = vmul.f32 %v2088, 1.442695
        %v2105 = vpow.pop %v2104
        %v2106 = vmul.f32 %v2089, 1.442695
        %v2107 = vpow.pop %v2106
        %v2108 = vmul.f32 %v2090, 1.442695
        %v2109 = vpow.pop %v2108
        %v2110 = vmul.f32 %v2091, 1.442695
        %v2111 = vpow.pop %v2110
        %v2112 = vmul.f32 %v2092, 1.442695
        %v2113 = vpow.pop %v2112
        %v2114 = vmul.f32 %v2093, 1.442695
        %v2115 = vpow.pop %v2114
        %v2116 = vmul.f32 %v2094, 1.442695
        %v2117 = vpow.pop %v2116
        %v2118 = vmul.f32 %v2095, 1.442695
        %v2119 = vpow.pop %v2118
        %v2120 = vmul.f32 %v2096, 1.442695
        %v2121 = vpow.pop %v2120
        %v2122 = vmul.f32 %v2097, 1.442695
        %v2123 = vpow.pop %v2122
        %v2124 = vmul.f32 %v2098, 1.442695
        %v2125 = vpow.pop %v2124
        %v2126 = vmul.f32 %v2099, 1.442695
        %v2127 = vpow.pop %v2126
        %v2128 = vmul.f32 %v2100, 1.442695
        %v2129 = vpow.pop %v2128
        %v2130 = vmul.f32 %v2101, 1.442695
        %v2131 = vpow.pop %v2130
        %v2132 = vmul.f32 %v2102, 1.442695
        %v2133 = vpow.pop %v2132
        %v2134 = vmul.f32 %v2103, 1.442695
        %v2135 = vpow.pop %v2134
        %2136 = vadd.xlane.f32.xlu0 %v2105
        %v2137 = vpop.xlane.xlu0 %2136
        %2138 = vadd.xlane.f32.xlu0 %v2107
        %v2139 = vpop.xlane.xlu0 %2138
        %2140 = vadd.xlane.f32.xlu0 %v2109
        %v2141 = vpop.xlane.xlu0 %2140
        %2142 = vadd.xlane.f32.xlu0 %v2111
        %v2143 = vpop.xlane.xlu0 %2142
        %2144 = vadd.xlane.f32.xlu0 %v2113
        %v2145 = vpop.xlane.xlu0 %2144
        %2146 = vadd.xlane.f32.xlu0 %v2115
        %v2147 = vpop.xlane.xlu0 %2146
        %2148 = vadd.xlane.f32.xlu0 %v2117
        %v2149 = vpop.xlane.xlu0 %2148
        %2150 = vadd.xlane.f32.xlu0 %v2119
        %v2151 = vpop.xlane.xlu0 %2150
        %2152 = vadd.xlane.f32.xlu0 %v2121
        %v2153 = vpop.xlane.xlu0 %2152
        %2154 = vadd.xlane.f32.xlu0 %v2123
        %v2155 = vpop.xlane.xlu0 %2154
        %2156 = vadd.xlane.f32.xlu0 %v2125
        %v2157 = vpop.xlane.xlu0 %2156
        %2158 = vadd.xlane.f32.xlu0 %v2127
        %v2159 = vpop.xlane.xlu0 %2158
        %2160 = vadd.xlane.f32.xlu0 %v2129
        %v2161 = vpop.xlane.xlu0 %2160
        %2162 = vadd.xlane.f32.xlu0 %v2131
        %v2163 = vpop.xlane.xlu0 %2162
        %2164 = vadd.xlane.f32.xlu0 %v2133
        %v2165 = vpop.xlane.xlu0 %2164
        %2166 = vadd.xlane.f32.xlu0 %v2135
        %v2167 = vpop.xlane.xlu0 %2166
        %v2168 = vrcp.pop %v2137
        %v2169 = vrcp.pop %v2139
        %v2170 = vrcp.pop %v2141
        %v2171 = vrcp.pop %v2143
        %v2172 = vrcp.pop %v2145
        %v2173 = vrcp.pop %v2147
        %v2174 = vrcp.pop %v2149
        %v2175 = vrcp.pop %v2151
        %v2176 = vrcp.pop %v2153
        %v2177 = vrcp.pop %v2155
        %v2178 = vrcp.pop %v2157
        %v2179 = vrcp.pop %v2159
        %v2180 = vrcp.pop %v2161
        %v2181 = vrcp.pop %v2163
        %v2182 = vrcp.pop %v2165
        %v2183 = vrcp.pop %v2167
        %v2184 = vmul.f32 %v2105, %v2168
        %v2185 = vmul.f32 %v2107, %v2169
        %v2186 = vmul.f32 %v2109, %v2170
        %v2187 = vmul.f32 %v2111, %v2171
        %v2188 = vmul.f32 %v2113, %v2172
        %v2189 = vmul.f32 %v2115, %v2173
        %v2190 = vmul.f32 %v2117, %v2174
        %v2191 = vmul.f32 %v2119, %v2175
        %v2192 = vmul.f32 %v2121, %v2176
        %v2193 = vmul.f32 %v2123, %v2177
        %v2194 = vmul.f32 %v2125, %v2178
        %v2195 = vmul.f32 %v2127, %v2179
        %v2196 = vmul.f32 %v2129, %v2180
        %v2197 = vmul.f32 %v2131, %v2181
        %v2198 = vmul.f32 %v2133, %v2182
        %v2199 = vmul.f32 %v2135, %v2183
        %v2200 = vpack.c.bf16 %v2185, %v2184
        %v2201 = vpack.c.bf16 %v2187, %v2186
        %v2202 = vpack.c.bf16 %v2189, %v2188
        %v2203 = vpack.c.bf16 %v2191, %v2190
        %v2204 = vpack.c.bf16 %v2193, %v2192
        %v2205 = vpack.c.bf16 %v2195, %v2194
        %v2206 = vpack.c.bf16 %v2197, %v2196
        %v2207 = vpack.c.bf16 %v2199, %v2198
        %v2208 = vmul.bf16 %v1080, %v1926
        %v2209 = vmul.bf16 %v1081, %v1926
        %v2210 = vmul.bf16 %v1082, %v1926
        %v2211 = vmul.bf16 %v1083, %v1926
        %v2212 = vmul.bf16 %v1084, %v1926
        %v2213 = vmul.bf16 %v1085, %v1926
        %v2214 = vmul.bf16 %v1086, %v1926
        %v2215 = vmul.bf16 %v1087, %v1926
        %2216 = vmatprep.subr.bf16.mxu0 0
        %2217 = vmatpush1.bf16.msra.mxu0 %v2215
        %2218 = vmatprep.subr.bf16.mxu0 0
        %2219 = vmatpush1.bf16.msra.mxu0 %v2214
        %2220 = vmatprep.subr.bf16.mxu0 0
        %2221 = vmatpush1.bf16.msra.mxu0 %v2213
        %2222 = vmatprep.subr.bf16.mxu0 0
        %2223 = vmatpush1.bf16.msra.mxu0 %v2212
        %2224 = vmatprep.subr.bf16.mxu0 0
        %2225 = vmatpush1.bf16.msra.mxu0 %v2211
        %2226 = vmatprep.subr.bf16.mxu0 0
        %2227 = vmatpush1.bf16.msra.mxu0 %v2210
        %2228 = vmatprep.subr.bf16.mxu0 0
        %2229 = vmatpush1.bf16.msra.mxu0 %v2209
        %2230 = vmatprep.subr.bf16.mxu0 0
        %2231 = vmatpush1.bf16.msra.mxu0 %v2208
        %2232 = vmatprep.subr.bf16.mxu0 0
        %2233 = vmatpush2.bf16.msra.mxu0 0
        %2234 = vmatprep.subr.bf16.mxu0 0
        %2235 = vmatpush2.bf16.msra.mxu0 0
        %2236 = vmatprep.subr.bf16.mxu0 0
        %2237 = vmatpush2.bf16.msra.mxu0 0
        %2238 = vmatprep.subr.bf16.mxu0 0
        %2239 = vmatpush2.bf16.msra.mxu0 0
        %2240 = vmatprep.subr.bf16.mxu0 0
        %2241 = vmatpush2.bf16.msra.mxu0 0
        %2242 = vmatprep.subr.bf16.mxu0 0
        %2243 = vmatpush2.bf16.msra.mxu0 0
        %2244 = vmatprep.subr.bf16.mxu0 0
        %2245 = vmatpush2.bf16.msra.mxu0 0
        %2246 = vmatprep.subr.bf16.mxu0 0
        %2247 = vmatpush2.bf16.msra.mxu0 0
        %2248 = vmatprep.mubr.bf16.mxu0 0
        %2249 = vmatmul.mubr.bf16.gmra.mxu0 %v2200
        %v2250 = vpop.f32.mrf.mxu0
        %v2251 = vadd.f32 0.0, %v2250
        %v2252 = vpop.f32.mrf.mxu0
        %v2253 = vpop.f32.mrf.mxu0
        %v2254 = vadd.f32 0.0, %v2253
        %v2255 = vpop.f32.mrf.mxu0
        %2256 = vmatprep.mubr.bf16.mxu0 0
        %2257 = vmatmul.mubr.bf16.gmra.mxu0 %v2201
        %v2258 = vpop.f32.mrf.mxu0
        %v2259 = vadd.f32 0.0, %v2258
        %v2260 = vpop.f32.mrf.mxu0
        %v2261 = vpop.f32.mrf.mxu0
        %v2262 = vadd.f32 0.0, %v2261
        %v2263 = vpop.f32.mrf.mxu0
        %2264 = vmatprep.mubr.bf16.mxu0 0
        %2265 = vmatmul.mubr.bf16.gmra.mxu0 %v2202
        %v2266 = vpop.f32.mrf.mxu0
        %v2267 = vadd.f32 0.0, %v2266
        %v2268 = vpop.f32.mrf.mxu0
        %v2269 = vpop.f32.mrf.mxu0
        %v2270 = vadd.f32 0.0, %v2269
        %v2271 = vpop.f32.mrf.mxu0
        %2272 = vmatprep.mubr.bf16.mxu0 0
        %2273 = vmatmul.mubr.bf16.gmra.mxu0 %v2203
        %v2274 = vpop.f32.mrf.mxu0
        %v2275 = vadd.f32 0.0, %v2274
        %v2276 = vpop.f32.mrf.mxu0
        %v2277 = vpop.f32.mrf.mxu0
        %v2278 = vadd.f32 0.0, %v2277
        %v2279 = vpop.f32.mrf.mxu0
        %2280 = vmatprep.mubr.bf16.mxu0 0
        %2281 = vmatmul.mubr.bf16.gmra.mxu0 %v2204
        %v2282 = vpop.f32.mrf.mxu0
        %v2283 = vadd.f32 0.0, %v2282
        %v2284 = vpop.f32.mrf.mxu0
        %v2285 = vpop.f32.mrf.mxu0
        %v2286 = vadd.f32 0.0, %v2285
        %v2287 = vpop.f32.mrf.mxu0
        %2288 = vmatprep.mubr.bf16.mxu0 0
        %2289 = vmatmul.mubr.bf16.gmra.mxu0 %v2205
        %v2290 = vpop.f32.mrf.mxu0
        %v2291 = vadd.f32 0.0, %v2290
        %v2292 = vpop.f32.mrf.mxu0
        %v2293 = vpop.f32.mrf.mxu0
        %v2294 = vadd.f32 0.0, %v2293
        %v2295 = vpop.f32.mrf.mxu0
        %2296 = vmatprep.mubr.bf16.mxu0 0
        %2297 = vmatmul.mubr.bf16.gmra.mxu0 %v2206
        %v2298 = vpop.f32.mrf.mxu0
        %v2299 = vadd.f32 0.0, %v2298
        %v2300 = vpop.f32.mrf.mxu0
        %v2301 = vpop.f32.mrf.mxu0
        %v2302 = vadd.f32 0.0, %v2301
        %v2303 = vpop.f32.mrf.mxu0
        %2304 = vmatprep.mubr.bf16.mxu0 0
        %2305 = vmatmul.mubr.bf16.gmra.mxu0 %v2207
        %v2306 = vpop.f32.mrf.mxu0
        %v2307 = vadd.f32 0.0, %v2306
        %v2308 = vpop.f32.mrf.mxu0
        %v2309 = vpop.f32.mrf.mxu0
        %v2310 = vadd.f32 0.0, %v2309
        %v2311 = vpop.f32.mrf.mxu0
        %2312 = vdwg.mxu0
        %v2313 = vadd.f32 %v1856, %v2251
        %v2314 = vadd.f32 %v1859, %v2254
        %v2315 = vadd.f32 %v1864, %v2259
        %v2316 = vadd.f32 %v1867, %v2262
        %v2317 = vadd.f32 %v1872, %v2267
        %v2318 = vadd.f32 %v1875, %v2270
        %v2319 = vadd.f32 %v1880, %v2275
        %v2320 = vadd.f32 %v1883, %v2278
        %v2321 = vadd.f32 %v1888, %v2283
        %v2322 = vadd.f32 %v1891, %v2286
        %v2323 = vadd.f32 %v1896, %v2291
        %v2324 = vadd.f32 %v1899, %v2294
        %v2325 = vadd.f32 %v1904, %v2299
        %v2326 = vadd.f32 %v1907, %v2302
        %v2327 = vadd.f32 %v1912, %v2307
        %v2328 = vadd.f32 %v1915, %v2310
        %v2329 = vld [vmem:[%s1 + $0xf] sm:$0x1]
        %v2330 = vpack.c.bf16 %v2329, %v2329
        %v2332 = vpack.i.b16 %v2330, %v2330
        %v2334 = vlaneseq
        %v2335 = vshrl.u32 %v2334, 7
        %v2336 = vsub.s32 0, %v2335
        %v2337 = vrot.slane %v2332, %v2336
        %v2338 = vmul.bf16 %v1064, %v2337
        %v2339 = vmul.bf16 %v1065, %v2337
        %v2340 = vmul.bf16 %v1066, %v2337
        %v2341 = vmul.bf16 %v1067, %v2337
        %v2342 = vmul.bf16 %v1068, %v2337
        %v2343 = vmul.bf16 %v1069, %v2337
        %v2344 = vmul.bf16 %v1070, %v2337
        %v2345 = vmul.bf16 %v1071, %v2337
        %v2347 = vsel %vm428, %v2338, 0
        %v2350 = vsel %vm428, %v2339, 0
        %v2353 = vsel %vm428, %v2340, 0
        %v2356 = vsel %vm428, %v2341, 0
        %v2359 = vsel %vm428, %v2342, 0
        %v2362 = vsel %vm428, %v2343, 0
        %v2365 = vsel %vm428, %v2344, 0
        %v2368 = vsel %vm428, %v2345, 0
        %2370 = vmatprep.subr.bf16.mxu0 0
        %2371 = vmatpush1.bf16.xpose.msra.mxu0 %v1167
        %2372 = vmatprep.subr.bf16.mxu0 0
        %2373 = vmatpush1.bf16.xpose.msra.mxu0 %v1164
        %2374 = vmatprep.subr.bf16.mxu0 0
        %2375 = vmatpush1.bf16.xpose.msra.mxu0 %v1161
        %2376 = vmatprep.subr.bf16.mxu0 0
        %2377 = vmatpush1.bf16.xpose.msra.mxu0 %v1158
        %2378 = vmatprep.subr.bf16.mxu0 0
        %2379 = vmatpush1.bf16.xpose.msra.mxu0 %v1155
        %2380 = vmatprep.subr.bf16.mxu0 0
        %2381 = vmatpush1.bf16.xpose.msra.mxu0 %v1152
        %2382 = vmatprep.subr.bf16.mxu0 0
        %2383 = vmatpush1.bf16.xpose.msra.mxu0 %v1149
        %2384 = vmatprep.subr.bf16.mxu0 0
        %2385 = vmatpush1.bf16.xpose.msra.mxu0 %v1146
        %2386 = vmatprep.subr.bf16.mxu0 0
        %2387 = vmatpush2.bf16.xpose.msra.mxu0 0
        %2388 = vmatprep.subr.bf16.mxu0 0
        %2389 = vmatpush2.bf16.xpose.msra.mxu0 0
        %2390 = vmatprep.subr.bf16.mxu0 0
        %2391 = vmatpush2.bf16.xpose.msra.mxu0 0
        %2392 = vmatprep.subr.bf16.mxu0 0
        %2393 = vmatpush2.bf16.xpose.msra.mxu0 0
        %2394 = vmatprep.subr.bf16.mxu0 0
        %2395 = vmatpush2.bf16.xpose.msra.mxu0 0
        %2396 = vmatprep.subr.bf16.mxu0 0
        %2397 = vmatpush2.bf16.xpose.msra.mxu0 0
        %2398 = vmatprep.subr.bf16.mxu0 0
        %2399 = vmatpush2.bf16.xpose.msra.mxu0 0
        %2400 = vmatprep.subr.bf16.mxu0 0
        %2401 = vmatpush2.bf16.xpose.msra.mxu0 0
        %2402 = vmatprep.mubr.bf16.mxu0 0
        %2403 = vmatmul.mubr.bf16.gmra.mxu0 %v2347
        %v2404 = vpop.f32.mrf.mxu0
        %v2405 = vadd.f32 %v1088, %v2404
        %v2406 = vpop.f32.mrf.mxu0
        %v2407 = vpop.f32.mrf.mxu0
        %v2408 = vadd.f32 %v1089, %v2407
        %v2409 = vpop.f32.mrf.mxu0
        %2410 = vmatprep.mubr.bf16.mxu0 0
        %2411 = vmatmul.mubr.bf16.gmra.mxu0 %v2350
        %v2412 = vpop.f32.mrf.mxu0
        %v2413 = vadd.f32 %v1090, %v2412
        %v2414 = vpop.f32.mrf.mxu0
        %v2415 = vpop.f32.mrf.mxu0
        %v2416 = vadd.f32 %v1091, %v2415
        %v2417 = vpop.f32.mrf.mxu0
        %2418 = vmatprep.mubr.bf16.mxu0 0
        %2419 = vmatmul.mubr.bf16.gmra.mxu0 %v2353
        %v2420 = vpop.f32.mrf.mxu0
        %v2421 = vadd.f32 %v1092, %v2420
        %v2422 = vpop.f32.mrf.mxu0
        %v2423 = vpop.f32.mrf.mxu0
        %v2424 = vadd.f32 %v1093, %v2423
        %v2425 = vpop.f32.mrf.mxu0
        %2426 = vmatprep.mubr.bf16.mxu0 0
        %2427 = vmatmul.mubr.bf16.gmra.mxu0 %v2356
        %v2428 = vpop.f32.mrf.mxu0
        %v2429 = vadd.f32 %v1094, %v2428
        %v2430 = vpop.f32.mrf.mxu0
        %v2431 = vpop.f32.mrf.mxu0
        %v2432 = vadd.f32 %v1095, %v2431
        %v2433 = vpop.f32.mrf.mxu0
        %2434 = vmatprep.mubr.bf16.mxu0 0
        %2435 = vmatmul.mubr.bf16.gmra.mxu0 %v2359
        %v2436 = vpop.f32.mrf.mxu0
        %v2437 = vadd.f32 %v1096, %v2436
        %v2438 = vpop.f32.mrf.mxu0
        %v2439 = vpop.f32.mrf.mxu0
        %v2440 = vadd.f32 %v1097, %v2439
        %v2441 = vpop.f32.mrf.mxu0
        %2442 = vmatprep.mubr.bf16.mxu0 0
        %2443 = vmatmul.mubr.bf16.gmra.mxu0 %v2362
        %v2444 = vpop.f32.mrf.mxu0
        %v2445 = vadd.f32 %v1098, %v2444
        %v2446 = vpop.f32.mrf.mxu0
        %v2447 = vpop.f32.mrf.mxu0
        %v2448 = vadd.f32 %v1099, %v2447
        %v2449 = vpop.f32.mrf.mxu0
        %2450 = vmatprep.mubr.bf16.mxu0 0
        %2451 = vmatmul.mubr.bf16.gmra.mxu0 %v2365
        %v2452 = vpop.f32.mrf.mxu0
        %v2453 = vadd.f32 %v1100, %v2452
        %v2454 = vpop.f32.mrf.mxu0
        %v2455 = vpop.f32.mrf.mxu0
        %v2456 = vadd.f32 %v1101, %v2455
        %v2457 = vpop.f32.mrf.mxu0
        %2458 = vmatprep.mubr.bf16.mxu0 0
        %2459 = vmatmul.mubr.bf16.gmra.mxu0 %v2368
        %v2460 = vpop.f32.mrf.mxu0
        %v2461 = vadd.f32 %v1102, %v2460
        %v2462 = vpop.f32.mrf.mxu0
        %v2463 = vpop.f32.mrf.mxu0
        %v2464 = vadd.f32 %v1103, %v2463
        %v2465 = vpop.f32.mrf.mxu0
        %2466 = vdwg.mxu0
        %2467 = vmax.xlane.f32.xlu0 %v2405
        %v2468 = vpop.xlane.xlu0 %2467
        %2469 = vmax.xlane.f32.xlu0 %v2408
        %v2470 = vpop.xlane.xlu0 %2469
        %2471 = vmax.xlane.f32.xlu0 %v2413
        %v2472 = vpop.xlane.xlu0 %2471
        %2473 = vmax.xlane.f32.xlu0 %v2416
        %v2474 = vpop.xlane.xlu0 %2473
        %2475 = vmax.xlane.f32.xlu0 %v2421
        %v2476 = vpop.xlane.xlu0 %2475
        %2477 = vmax.xlane.f32.xlu0 %v2424
        %v2478 = vpop.xlane.xlu0 %2477
        %2479 = vmax.xlane.f32.xlu0 %v2429
        %v2480 = vpop.xlane.xlu0 %2479
        %2481 = vmax.xlane.f32.xlu0 %v2432
        %v2482 = vpop.xlane.xlu0 %2481
        %2483 = vmax.xlane.f32.xlu0 %v2437
        %v2484 = vpop.xlane.xlu0 %2483
        %2485 = vmax.xlane.f32.xlu0 %v2440
        %v2486 = vpop.xlane.xlu0 %2485
        %2487 = vmax.xlane.f32.xlu0 %v2445
        %v2488 = vpop.xlane.xlu0 %2487
        %2489 = vmax.xlane.f32.xlu0 %v2448
        %v2490 = vpop.xlane.xlu0 %2489
        %2491 = vmax.xlane.f32.xlu0 %v2453
        %v2492 = vpop.xlane.xlu0 %2491
        %2493 = vmax.xlane.f32.xlu0 %v2456
        %v2494 = vpop.xlane.xlu0 %2493
        %2495 = vmax.xlane.f32.xlu0 %v2461
        %v2496 = vpop.xlane.xlu0 %2495
        %2497 = vmax.xlane.f32.xlu0 %v2464
        %v2498 = vpop.xlane.xlu0 %2497
        %v2499 = vsub.f32 %v2405, %v2468
        %v2500 = vsub.f32 %v2408, %v2470
        %v2501 = vsub.f32 %v2413, %v2472
        %v2502 = vsub.f32 %v2416, %v2474
        %v2503 = vsub.f32 %v2421, %v2476
        %v2504 = vsub.f32 %v2424, %v2478
        %v2505 = vsub.f32 %v2429, %v2480
        %v2506 = vsub.f32 %v2432, %v2482
        %v2507 = vsub.f32 %v2437, %v2484
        %v2508 = vsub.f32 %v2440, %v2486
        %v2509 = vsub.f32 %v2445, %v2488
        %v2510 = vsub.f32 %v2448, %v2490
        %v2511 = vsub.f32 %v2453, %v2492
        %v2512 = vsub.f32 %v2456, %v2494
        %v2513 = vsub.f32 %v2461, %v2496
        %v2514 = vsub.f32 %v2464, %v2498
        %v2515 = vmul.f32 %v2499, 1.442695
        %v2516 = vpow.pop %v2515
        %v2517 = vmul.f32 %v2500, 1.442695
        %v2518 = vpow.pop %v2517
        %v2519 = vmul.f32 %v2501, 1.442695
        %v2520 = vpow.pop %v2519
        %v2521 = vmul.f32 %v2502, 1.442695
        %v2522 = vpow.pop %v2521
        %v2523 = vmul.f32 %v2503, 1.442695
        %v2524 = vpow.pop %v2523
        %v2525 = vmul.f32 %v2504, 1.442695
        %v2526 = vpow.pop %v2525
        %v2527 = vmul.f32 %v2505, 1.442695
        %v2528 = vpow.pop %v2527
        %v2529 = vmul.f32 %v2506, 1.442695
        %v2530 = vpow.pop %v2529
        %v2531 = vmul.f32 %v2507, 1.442695
        %v2532 = vpow.pop %v2531
        %v2533 = vmul.f32 %v2508, 1.442695
        %v2534 = vpow.pop %v2533
        %v2535 = vmul.f32 %v2509, 1.442695
        %v2536 = vpow.pop %v2535
        %v2537 = vmul.f32 %v2510, 1.442695
        %v2538 = vpow.pop %v2537
        %v2539 = vmul.f32 %v2511, 1.442695
        %v2540 = vpow.pop %v2539
        %v2541 = vmul.f32 %v2512, 1.442695
        %v2542 = vpow.pop %v2541
        %v2543 = vmul.f32 %v2513, 1.442695
        %v2544 = vpow.pop %v2543
        %v2545 = vmul.f32 %v2514, 1.442695
        %v2546 = vpow.pop %v2545
        %2547 = vadd.xlane.f32.xlu0 %v2516
        %v2548 = vpop.xlane.xlu0 %2547
        %2549 = vadd.xlane.f32.xlu0 %v2518
        %v2550 = vpop.xlane.xlu0 %2549
        %2551 = vadd.xlane.f32.xlu0 %v2520
        %v2552 = vpop.xlane.xlu0 %2551
        %2553 = vadd.xlane.f32.xlu0 %v2522
        %v2554 = vpop.xlane.xlu0 %2553
        %2555 = vadd.xlane.f32.xlu0 %v2524
        %v2556 = vpop.xlane.xlu0 %2555
        %2557 = vadd.xlane.f32.xlu0 %v2526
        %v2558 = vpop.xlane.xlu0 %2557
        %2559 = vadd.xlane.f32.xlu0 %v2528
        %v2560 = vpop.xlane.xlu0 %2559
        %2561 = vadd.xlane.f32.xlu0 %v2530
        %v2562 = vpop.xlane.xlu0 %2561
        %2563 = vadd.xlane.f32.xlu0 %v2532
        %v2564 = vpop.xlane.xlu0 %2563
        %2565 = vadd.xlane.f32.xlu0 %v2534
        %v2566 = vpop.xlane.xlu0 %2565
        %2567 = vadd.xlane.f32.xlu0 %v2536
        %v2568 = vpop.xlane.xlu0 %2567
        %2569 = vadd.xlane.f32.xlu0 %v2538
        %v2570 = vpop.xlane.xlu0 %2569
        %2571 = vadd.xlane.f32.xlu0 %v2540
        %v2572 = vpop.xlane.xlu0 %2571
        %2573 = vadd.xlane.f32.xlu0 %v2542
        %v2574 = vpop.xlane.xlu0 %2573
        %2575 = vadd.xlane.f32.xlu0 %v2544
        %v2576 = vpop.xlane.xlu0 %2575
        %2577 = vadd.xlane.f32.xlu0 %v2546
        %v2578 = vpop.xlane.xlu0 %2577
        %v2579 = vrcp.pop %v2548
        %v2580 = vrcp.pop %v2550
        %v2581 = vrcp.pop %v2552
        %v2582 = vrcp.pop %v2554
        %v2583 = vrcp.pop %v2556
        %v2584 = vrcp.pop %v2558
        %v2585 = vrcp.pop %v2560
        %v2586 = vrcp.pop %v2562
        %v2587 = vrcp.pop %v2564
        %v2588 = vrcp.pop %v2566
        %v2589 = vrcp.pop %v2568
        %v2590 = vrcp.pop %v2570
        %v2591 = vrcp.pop %v2572
        %v2592 = vrcp.pop %v2574
        %v2593 = vrcp.pop %v2576
        %v2594 = vrcp.pop %v2578
        %v2595 = vmul.f32 %v2516, %v2579
        %v2596 = vmul.f32 %v2518, %v2580
        %v2597 = vmul.f32 %v2520, %v2581
        %v2598 = vmul.f32 %v2522, %v2582
        %v2599 = vmul.f32 %v2524, %v2583
        %v2600 = vmul.f32 %v2526, %v2584
        %v2601 = vmul.f32 %v2528, %v2585
        %v2602 = vmul.f32 %v2530, %v2586
        %v2603 = vmul.f32 %v2532, %v2587
        %v2604 = vmul.f32 %v2534, %v2588
        %v2605 = vmul.f32 %v2536, %v2589
        %v2606 = vmul.f32 %v2538, %v2590
        %v2607 = vmul.f32 %v2540, %v2591
        %v2608 = vmul.f32 %v2542, %v2592
        %v2609 = vmul.f32 %v2544, %v2593
        %v2610 = vmul.f32 %v2546, %v2594
        %v2611 = vpack.c.bf16 %v2596, %v2595
        %v2612 = vpack.c.bf16 %v2598, %v2597
        %v2613 = vpack.c.bf16 %v2600, %v2599
        %v2614 = vpack.c.bf16 %v2602, %v2601
        %v2615 = vpack.c.bf16 %v2604, %v2603
        %v2616 = vpack.c.bf16 %v2606, %v2605
        %v2617 = vpack.c.bf16 %v2608, %v2607
        %v2618 = vpack.c.bf16 %v2610, %v2609
        %v2619 = vmul.bf16 %v1080, %v2337
        %v2620 = vmul.bf16 %v1081, %v2337
        %v2621 = vmul.bf16 %v1082, %v2337
        %v2622 = vmul.bf16 %v1083, %v2337
        %v2623 = vmul.bf16 %v1084, %v2337
        %v2624 = vmul.bf16 %v1085, %v2337
        %v2625 = vmul.bf16 %v1086, %v2337
        %v2626 = vmul.bf16 %v1087, %v2337
        %2627 = vmatprep.subr.bf16.mxu0 0
        %2628 = vmatpush1.bf16.msra.mxu0 %v2626
        %2629 = vmatprep.subr.bf16.mxu0 0
        %2630 = vmatpush1.bf16.msra.mxu0 %v2625
        %2631 = vmatprep.subr.bf16.mxu0 0
        %2632 = vmatpush1.bf16.msra.mxu0 %v2624
        %2633 = vmatprep.subr.bf16.mxu0 0
        %2634 = vmatpush1.bf16.msra.mxu0 %v2623
        %2635 = vmatprep.subr.bf16.mxu0 0
        %2636 = vmatpush1.bf16.msra.mxu0 %v2622
        %2637 = vmatprep.subr.bf16.mxu0 0
        %2638 = vmatpush1.bf16.msra.mxu0 %v2621
        %2639 = vmatprep.subr.bf16.mxu0 0
        %2640 = vmatpush1.bf16.msra.mxu0 %v2620
        %2641 = vmatprep.subr.bf16.mxu0 0
        %2642 = vmatpush1.bf16.msra.mxu0 %v2619
        %2643 = vmatprep.subr.bf16.mxu0 0
        %2644 = vmatpush2.bf16.msra.mxu0 0
        %2645 = vmatprep.subr.bf16.mxu0 0
        %2646 = vmatpush2.bf16.msra.mxu0 0
        %2647 = vmatprep.subr.bf16.mxu0 0
        %2648 = vmatpush2.bf16.msra.mxu0 0
        %2649 = vmatprep.subr.bf16.mxu0 0
        %2650 = vmatpush2.bf16.msra.mxu0 0
        %2651 = vmatprep.subr.bf16.mxu0 0
        %2652 = vmatpush2.bf16.msra.mxu0 0
        %2653 = vmatprep.subr.bf16.mxu0 0
        %2654 = vmatpush2.bf16.msra.mxu0 0
        %2655 = vmatprep.subr.bf16.mxu0 0
        %2656 = vmatpush2.bf16.msra.mxu0 0
        %2657 = vmatprep.subr.bf16.mxu0 0
        %2658 = vmatpush2.bf16.msra.mxu0 0
        %2659 = vmatprep.mubr.bf16.mxu0 0
        %2660 = vmatmul.mubr.bf16.gmra.mxu0 %v2611
        %v2661 = vpop.f32.mrf.mxu0
        %v2662 = vadd.f32 0.0, %v2661
        %v2663 = vpop.f32.mrf.mxu0
        %v2664 = vpop.f32.mrf.mxu0
        %v2665 = vadd.f32 0.0, %v2664
        %v2666 = vpop.f32.mrf.mxu0
        %2667 = vmatprep.mubr.bf16.mxu0 0
        %2668 = vmatmul.mubr.bf16.gmra.mxu0 %v2612
        %v2669 = vpop.f32.mrf.mxu0
        %v2670 = vadd.f32 0.0, %v2669
        %v2671 = vpop.f32.mrf.mxu0
        %v2672 = vpop.f32.mrf.mxu0
        %v2673 = vadd.f32 0.0, %v2672
        %v2674 = vpop.f32.mrf.mxu0
        %2675 = vmatprep.mubr.bf16.mxu0 0
        %2676 = vmatmul.mubr.bf16.gmra.mxu0 %v2613
        %v2677 = vpop.f32.mrf.mxu0
        %v2678 = vadd.f32 0.0, %v2677
        %v2679 = vpop.f32.mrf.mxu0
        %v2680 = vpop.f32.mrf.mxu0
        %v2681 = vadd.f32 0.0, %v2680
        %v2682 = vpop.f32.mrf.mxu0
        %2683 = vmatprep.mubr.bf16.mxu0 0
        %2684 = vmatmul.mubr.bf16.gmra.mxu0 %v2614
        %v2685 = vpop.f32.mrf.mxu0
        %v2686 = vadd.f32 0.0, %v2685
        %v2687 = vpop.f32.mrf.mxu0
        %v2688 = vpop.f32.mrf.mxu0
        %v2689 = vadd.f32 0.0, %v2688
        %v2690 = vpop.f32.mrf.mxu0
        %2691 = vmatprep.mubr.bf16.mxu0 0
        %2692 = vmatmul.mubr.bf16.gmra.mxu0 %v2615
        %v2693 = vpop.f32.mrf.mxu0
        %v2694 = vadd.f32 0.0, %v2693
        %v2695 = vpop.f32.mrf.mxu0
        %v2696 = vpop.f32.mrf.mxu0
        %v2697 = vadd.f32 0.0, %v2696
        %v2698 = vpop.f32.mrf.mxu0
        %2699 = vmatprep.mubr.bf16.mxu0 0
        %2700 = vmatmul.mubr.bf16.gmra.mxu0 %v2616
        %v2701 = vpop.f32.mrf.mxu0
        %v2702 = vadd.f32 0.0, %v2701
        %v2703 = vpop.f32.mrf.mxu0
        %v2704 = vpop.f32.mrf.mxu0
        %v2705 = vadd.f32 0.0, %v2704
        %v2706 = vpop.f32.mrf.mxu0
        %2707 = vmatprep.mubr.bf16.mxu0 0
        %2708 = vmatmul.mubr.bf16.gmra.mxu0 %v2617
        %v2709 = vpop.f32.mrf.mxu0
        %v2710 = vadd.f32 0.0, %v2709
        %v2711 = vpop.f32.mrf.mxu0
        %v2712 = vpop.f32.mrf.mxu0
        %v2713 = vadd.f32 0.0, %v2712
        %v2714 = vpop.f32.mrf.mxu0
        %2715 = vmatprep.mubr.bf16.mxu0 0
        %2716 = vmatmul.mubr.bf16.gmra.mxu0 %v2618
        %v2717 = vpop.f32.mrf.mxu0
        %v2718 = vadd.f32 0.0, %v2717
        %v2719 = vpop.f32.mrf.mxu0
        %v2720 = vpop.f32.mrf.mxu0
        %v2721 = vadd.f32 0.0, %v2720
        %v2722 = vpop.f32.mrf.mxu0
        %2723 = vdwg.mxu0
        %v2724 = vadd.f32 %v2313, %v2662
        %v2725 = vadd.f32 %v2314, %v2665
        %v2726 = vadd.f32 %v2315, %v2670
        %v2727 = vadd.f32 %v2316, %v2673
        %v2728 = vadd.f32 %v2317, %v2678
        %v2729 = vadd.f32 %v2318, %v2681
        %v2730 = vadd.f32 %v2319, %v2686
        %v2731 = vadd.f32 %v2320, %v2689
        %v2732 = vadd.f32 %v2321, %v2694
        %v2733 = vadd.f32 %v2322, %v2697
        %v2734 = vadd.f32 %v2323, %v2702
        %v2735 = vadd.f32 %v2324, %v2705
        %v2736 = vadd.f32 %v2325, %v2710
        %v2737 = vadd.f32 %v2326, %v2713
        %v2738 = vadd.f32 %v2327, %v2718
        %v2739 = vadd.f32 %v2328, %v2721
        %v2740 = vpack.c.bf16 %v2725, %v2724
        %v2741 = vpack.c.bf16 %v2727, %v2726
        %v2742 = vpack.c.bf16 %v2729, %v2728
        %v2743 = vpack.c.bf16 %v2731, %v2730
        %v2744 = vpack.c.bf16 %v2733, %v2732
        %v2745 = vpack.c.bf16 %v2735, %v2734
        %v2746 = vpack.c.bf16 %v2737, %v2736
        %v2747 = vpack.c.bf16 %v2739, %v2738
        %v2748 = vld [vmem:[%s6] sm:$0xf]
        %v2749 = vld [vmem:[%s6 + $0x4] sm:$0xf]
        %v2750 = vld [vmem:[%s6 + $0x8] sm:$0xf]
        %v2751 = vld [vmem:[%s6 + $0xc] sm:$0xf]
        %v2756 = vunpack.c.l.b16 %v2748
        %v2757 = vunpack.c.l.b16 %v2749
        %v2758 = vunpack.c.l.b16 %v2750
        %v2759 = vunpack.c.l.b16 %v2751
        %v2760 = vpack.c.b16 %v2757, %v2756
        %v2761 = vpack.c.b16 %v2759, %v2758
        %v2765 = vsel %vm428, %v2740, 0
        %v2768 = vsel %vm428, %v2741, 0
        %v2771 = vsel %vm428, %v2742, 0
        %v2774 = vsel %vm428, %v2743, 0
        %v2777 = vsel %vm428, %v2744, 0
        %v2780 = vsel %vm428, %v2745, 0
        %v2783 = vsel %vm428, %v2746, 0
        %v2786 = vsel %vm428, %v2747, 0
        %2788 = vmatprep.subr.bf16.mxu0 0
        %2789 = vmatpush1.bf16.msra.mxu0 0
        %2790 = vmatprep.subr.bf16.mxu0 0
        %2791 = vmatpush1.bf16.msra.mxu0 0
        %2792 = vmatprep.subr.bf16.mxu0 0
        %2793 = vmatpush1.bf16.msra.mxu0 0
        %2794 = vmatprep.subr.bf16.mxu0 0
        %2795 = vmatpush1.bf16.msra.mxu0 0
        %2796 = vmatprep.subr.bf16.mxu0 0
        %2797 = vmatpush1.bf16.msra.mxu0 0
        %2798 = vmatprep.subr.bf16.mxu0 0
        %2799 = vmatpush1.bf16.msra.mxu0 0
        %2800 = vmatprep.subr.bf16.mxu0 0
        %2801 = vmatpush1.bf16.msra.mxu0 %v2761
        %2802 = vmatprep.subr.bf16.mxu0 0
        %2803 = vmatpush1.bf16.msra.mxu0 %v2760
        %2804 = vmatprep.subr.bf16.mxu0 0
        %2805 = vmatpush2.bf16.msra.mxu0 0
        %2806 = vmatprep.subr.bf16.mxu0 0
        %2807 = vmatpush2.bf16.msra.mxu0 0
        %2808 = vmatprep.subr.bf16.mxu0 0
        %2809 = vmatpush2.bf16.msra.mxu0 0
        %2810 = vmatprep.subr.bf16.mxu0 0
        %2811 = vmatpush2.bf16.msra.mxu0 0
        %2812 = vmatprep.subr.bf16.mxu0 0
        %2813 = vmatpush2.bf16.msra.mxu0 0
        %2814 = vmatprep.subr.bf16.mxu0 0
        %2815 = vmatpush2.bf16.msra.mxu0 0
        %2816 = vmatprep.subr.bf16.mxu0 0
        %2817 = vmatpush2.bf16.msra.mxu0 0
        %2818 = vmatprep.subr.bf16.mxu0 0
        %2819 = vmatpush2.bf16.msra.mxu0 0
        %2820 = vmatprep.mubr.bf16.mxu0 0
        %2821 = vmatmul.mubr.bf16.gmra.mxu0 %v2765
        %v2822 = vpop.f32.mrf.mxu0
        %v2823 = vadd.f32 0.0, %v2822
        %v2824 = vpop.f32.mrf.mxu0
        %v2825 = vpop.f32.mrf.mxu0
        %v2826 = vadd.f32 0.0, %v2825
        %v2827 = vpop.f32.mrf.mxu0
        %2828 = vmatprep.mubr.bf16.mxu0 0
        %2829 = vmatmul.mubr.bf16.gmra.mxu0 %v2768
        %v2830 = vpop.f32.mrf.mxu0
        %v2831 = vadd.f32 0.0, %v2830
        %v2832 = vpop.f32.mrf.mxu0
        %v2833 = vpop.f32.mrf.mxu0
        %v2834 = vadd.f32 0.0, %v2833
        %v2835 = vpop.f32.mrf.mxu0
        %2836 = vmatprep.mubr.bf16.mxu0 0
        %2837 = vmatmul.mubr.bf16.gmra.mxu0 %v2771
        %v2838 = vpop.f32.mrf.mxu0
        %v2839 = vadd.f32 0.0, %v2838
        %v2840 = vpop.f32.mrf.mxu0
        %v2841 = vpop.f32.mrf.mxu0
        %v2842 = vadd.f32 0.0, %v2841
        %v2843 = vpop.f32.mrf.mxu0
        %2844 = vmatprep.mubr.bf16.mxu0 0
        %2845 = vmatmul.mubr.bf16.gmra.mxu0 %v2774
        %v2846 = vpop.f32.mrf.mxu0
        %v2847 = vadd.f32 0.0, %v2846
        %v2848 = vpop.f32.mrf.mxu0
        %v2849 = vpop.f32.mrf.mxu0
        %v2850 = vadd.f32 0.0, %v2849
        %v2851 = vpop.f32.mrf.mxu0
        %2852 = vmatprep.mubr.bf16.mxu0 0
        %2853 = vmatmul.mubr.bf16.gmra.mxu0 %v2777
        %v2854 = vpop.f32.mrf.mxu0
        %v2855 = vadd.f32 0.0, %v2854
        %v2856 = vpop.f32.mrf.mxu0
        %v2857 = vpop.f32.mrf.mxu0
        %v2858 = vadd.f32 0.0, %v2857
        %v2859 = vpop.f32.mrf.mxu0
        %2860 = vmatprep.mubr.bf16.mxu0 0
        %2861 = vmatmul.mubr.bf16.gmra.mxu0 %v2780
        %v2862 = vpop.f32.mrf.mxu0
        %v2863 = vadd.f32 0.0, %v2862
        %v2864 = vpop.f32.mrf.mxu0
        %v2865 = vpop.f32.mrf.mxu0
        %v2866 = vadd.f32 0.0, %v2865
        %v2867 = vpop.f32.mrf.mxu0
        %2868 = vmatprep.mubr.bf16.mxu0 0
        %2869 = vmatmul.mubr.bf16.gmra.mxu0 %v2783
        %v2870 = vpop.f32.mrf.mxu0
        %v2871 = vadd.f32 0.0, %v2870
        %v2872 = vpop.f32.mrf.mxu0
        %v2873 = vpop.f32.mrf.mxu0
        %v2874 = vadd.f32 0.0, %v2873
        %v2875 = vpop.f32.mrf.mxu0
        %2876 = vmatprep.mubr.bf16.mxu0 0
        %2877 = vmatmul.mubr.bf16.gmra.mxu0 %v2786
        %v2878 = vpop.f32.mrf.mxu0
        %v2879 = vadd.f32 0.0, %v2878
        %v2880 = vpop.f32.mrf.mxu0
        %v2881 = vpop.f32.mrf.mxu0
        %v2882 = vadd.f32 0.0, %v2881
        %v2883 = vpop.f32.mrf.mxu0
        %2884 = vdwg.mxu0
        %v2885 = vadd.f32 %v410, %v2823
        %v2886 = vadd.f32 %v411, %v2826
        %v2887 = vadd.f32 %v412, %v2831
        %v2888 = vadd.f32 %v413, %v2834
        %v2889 = vadd.f32 %v414, %v2839
        %v2890 = vadd.f32 %v415, %v2842
        %v2891 = vadd.f32 %v416, %v2847
        %v2892 = vadd.f32 %v417, %v2850
        %v2893 = vadd.f32 %v418, %v2855
        %v2894 = vadd.f32 %v419, %v2858
        %v2895 = vadd.f32 %v420, %v2863
        %v2896 = vadd.f32 %v421, %v2866
        %v2897 = vadd.f32 %v422, %v2871
        %v2898 = vadd.f32 %v423, %v2874
        %v2899 = vadd.f32 %v424, %v2879
        %v2900 = vadd.f32 %v425, %v2882
        %v2901 = vld [vmem:[%s1 + $0x5] sm:$0x1]
        %v2902 = vlaneseq
        %v2903 = vshrl.u32 %v2902, 7
        %v2904 = vsub.s32 0, %v2903
        %v2905 = vrot.slane %v2901, %v2904
        %v2906 = vadd.f32 %v2885, %v2905
        %v2907 = vadd.f32 %v2886, %v2905
        %v2908 = vadd.f32 %v2887, %v2905
        %v2909 = vadd.f32 %v2888, %v2905
        %v2910 = vadd.f32 %v2889, %v2905
        %v2911 = vadd.f32 %v2890, %v2905
        %v2912 = vadd.f32 %v2891, %v2905
        %v2913 = vadd.f32 %v2892, %v2905
        %v2914 = vadd.f32 %v2893, %v2905
        %v2915 = vadd.f32 %v2894, %v2905
        %v2916 = vadd.f32 %v2895, %v2905
        %v2917 = vadd.f32 %v2896, %v2905
        %v2918 = vadd.f32 %v2897, %v2905
        %v2919 = vadd.f32 %v2898, %v2905
        %v2920 = vadd.f32 %v2899, %v2905
        %v2921 = vadd.f32 %v2900, %v2905
        %v2922 = vld [vmem:[%s1 + $0x6] sm:$0x1]
        %v2923 = vld [vmem:[%s1 + $0x7] sm:$0x1]
        %v2924 = vsel %vm428, %v2906, 0.0
        %2925 = vadd.xlane.f32.xlu0 %v2924
        %v2926 = vpop.xlane.xlu0 %2925
        %v2927 = vsel %vm428, %v2907, 0.0
        %2928 = vadd.xlane.f32.xlu0 %v2927
        %v2929 = vpop.xlane.xlu0 %2928
        %v2930 = vsel %vm428, %v2908, 0.0
        %2931 = vadd.xlane.f32.xlu0 %v2930
        %v2932 = vpop.xlane.xlu0 %2931
        %v2933 = vsel %vm428, %v2909, 0.0
        %2934 = vadd.xlane.f32.xlu0 %v2933
        %v2935 = vpop.xlane.xlu0 %2934
        %v2936 = vsel %vm428, %v2910, 0.0
        %2937 = vadd.xlane.f32.xlu0 %v2936
        %v2938 = vpop.xlane.xlu0 %2937
        %v2939 = vsel %vm428, %v2911, 0.0
        %2940 = vadd.xlane.f32.xlu0 %v2939
        %v2941 = vpop.xlane.xlu0 %2940
        %v2942 = vsel %vm428, %v2912, 0.0
        %2943 = vadd.xlane.f32.xlu0 %v2942
        %v2944 = vpop.xlane.xlu0 %2943
        %v2945 = vsel %vm428, %v2913, 0.0
        %2946 = vadd.xlane.f32.xlu0 %v2945
        %v2947 = vpop.xlane.xlu0 %2946
        %v2948 = vsel %vm428, %v2914, 0.0
        %2949 = vadd.xlane.f32.xlu0 %v2948
        %v2950 = vpop.xlane.xlu0 %2949
        %v2951 = vsel %vm428, %v2915, 0.0
        %2952 = vadd.xlane.f32.xlu0 %v2951
        %v2953 = vpop.xlane.xlu0 %2952
        %v2954 = vsel %vm428, %v2916, 0.0
        %2955 = vadd.xlane.f32.xlu0 %v2954
        %v2956 = vpop.xlane.xlu0 %2955
        %v2957 = vsel %vm428, %v2917, 0.0
        %2958 = vadd.xlane.f32.xlu0 %v2957
        %v2959 = vpop.xlane.xlu0 %2958
        %v2960 = vsel %vm428, %v2918, 0.0
        %2961 = vadd.xlane.f32.xlu0 %v2960
        %v2962 = vpop.xlane.xlu0 %2961
        %v2963 = vsel %vm428, %v2919, 0.0
        %2964 = vadd.xlane.f32.xlu0 %v2963
        %v2965 = vpop.xlane.xlu0 %2964
        %v2966 = vsel %vm428, %v2920, 0.0
        %2967 = vadd.xlane.f32.xlu0 %v2966
        %v2968 = vpop.xlane.xlu0 %2967
        %v2969 = vsel %vm428, %v2921, 0.0
        %2970 = vadd.xlane.f32.xlu0 %v2969
        %v2971 = vpop.xlane.xlu0 %2970
        %v2972 = vmul.f32 %v2926, %v477
        %v2973 = vmul.f32 %v2929, %v477
        %v2974 = vmul.f32 %v2932, %v477
        %v2975 = vmul.f32 %v2935, %v477
        %v2976 = vmul.f32 %v2938, %v477
        %v2977 = vmul.f32 %v2941, %v477
        %v2978 = vmul.f32 %v2944, %v477
        %v2979 = vmul.f32 %v2947, %v477
        %v2980 = vmul.f32 %v2950, %v477
        %v2981 = vmul.f32 %v2953, %v477
        %v2982 = vmul.f32 %v2956, %v477
        %v2983 = vmul.f32 %v2959, %v477
        %v2984 = vmul.f32 %v2962, %v477
        %v2985 = vmul.f32 %v2965, %v477
        %v2986 = vmul.f32 %v2968, %v477
        %v2987 = vmul.f32 %v2971, %v477
        %v2988 = vsub.f32 %v2906, %v2972
        %v2989 = vsub.f32 %v2907, %v2973
        %v2990 = vsub.f32 %v2908, %v2974
        %v2991 = vsub.f32 %v2909, %v2975
        %v2992 = vsub.f32 %v2910, %v2976
        %v2993 = vsub.f32 %v2911, %v2977
        %v2994 = vsub.f32 %v2912, %v2978
        %v2995 = vsub.f32 %v2913, %v2979
        %v2996 = vsub.f32 %v2914, %v2980
        %v2997 = vsub.f32 %v2915, %v2981
        %v2998 = vsub.f32 %v2916, %v2982
        %v2999 = vsub.f32 %v2917, %v2983
        %v3000 = vsub.f32 %v2918, %v2984
        %v3001 = vsub.f32 %v2919, %v2985
        %v3002 = vsub.f32 %v2920, %v2986
        %v3003 = vsub.f32 %v2921, %v2987
        %v3004 = vmul.f32 %v2988, %v2988
        %v3005 = vmul.f32 %v2989, %v2989
        %v3006 = vmul.f32 %v2990, %v2990
        %v3007 = vmul.f32 %v2991, %v2991
        %v3008 = vmul.f32 %v2992, %v2992
        %v3009 = vmul.f32 %v2993, %v2993
        %v3010 = vmul.f32 %v2994, %v2994
        %v3011 = vmul.f32 %v2995, %v2995
        %v3012 = vmul.f32 %v2996, %v2996
        %v3013 = vmul.f32 %v2997, %v2997
        %v3014 = vmul.f32 %v2998, %v2998
        %v3015 = vmul.f32 %v2999, %v2999
        %v3016 = vmul.f32 %v3000, %v3000
        %v3017 = vmul.f32 %v3001, %v3001
        %v3018 = vmul.f32 %v3002, %v3002
        %v3019 = vmul.f32 %v3003, %v3003
        %v3020 = vsel %vm428, %v3004, 0.0
        %3021 = vadd.xlane.f32.xlu0 %v3020
        %v3022 = vpop.xlane.xlu0 %3021
        %v3023 = vsel %vm428, %v3005, 0.0
        %3024 = vadd.xlane.f32.xlu0 %v3023
        %v3025 = vpop.xlane.xlu0 %3024
        %v3026 = vsel %vm428, %v3006, 0.0
        %3027 = vadd.xlane.f32.xlu0 %v3026
        %v3028 = vpop.xlane.xlu0 %3027
        %v3029 = vsel %vm428, %v3007, 0.0
        %3030 = vadd.xlane.f32.xlu0 %v3029
        %v3031 = vpop.xlane.xlu0 %3030
        %v3032 = vsel %vm428, %v3008, 0.0
        %3033 = vadd.xlane.f32.xlu0 %v3032
        %v3034 = vpop.xlane.xlu0 %3033
        %v3035 = vsel %vm428, %v3009, 0.0
        %3036 = vadd.xlane.f32.xlu0 %v3035
        %v3037 = vpop.xlane.xlu0 %3036
        %v3038 = vsel %vm428, %v3010, 0.0
        %3039 = vadd.xlane.f32.xlu0 %v3038
        %v3040 = vpop.xlane.xlu0 %3039
        %v3041 = vsel %vm428, %v3011, 0.0
        %3042 = vadd.xlane.f32.xlu0 %v3041
        %v3043 = vpop.xlane.xlu0 %3042
        %v3044 = vsel %vm428, %v3012, 0.0
        %3045 = vadd.xlane.f32.xlu0 %v3044
        %v3046 = vpop.xlane.xlu0 %3045
        %v3047 = vsel %vm428, %v3013, 0.0
        %3048 = vadd.xlane.f32.xlu0 %v3047
        %v3049 = vpop.xlane.xlu0 %3048
        %v3050 = vsel %vm428, %v3014, 0.0
        %3051 = vadd.xlane.f32.xlu0 %v3050
        %v3052 = vpop.xlane.xlu0 %3051
        %v3053 = vsel %vm428, %v3015, 0.0
        %3054 = vadd.xlane.f32.xlu0 %v3053
        %v3055 = vpop.xlane.xlu0 %3054
        %v3056 = vsel %vm428, %v3016, 0.0
        %3057 = vadd.xlane.f32.xlu0 %v3056
        %v3058 = vpop.xlane.xlu0 %3057
        %v3059 = vsel %vm428, %v3017, 0.0
        %3060 = vadd.xlane.f32.xlu0 %v3059
        %v3061 = vpop.xlane.xlu0 %3060
        %v3062 = vsel %vm428, %v3018, 0.0
        %3063 = vadd.xlane.f32.xlu0 %v3062
        %v3064 = vpop.xlane.xlu0 %3063
        %v3065 = vsel %vm428, %v3019, 0.0
        %3066 = vadd.xlane.f32.xlu0 %v3065
        %v3067 = vpop.xlane.xlu0 %3066
        %v3068 = vmul.f32 %v3022, %v477
        %v3069 = vmul.f32 %v3025, %v477
        %v3070 = vmul.f32 %v3028, %v477
        %v3071 = vmul.f32 %v3031, %v477
        %v3072 = vmul.f32 %v3034, %v477
        %v3073 = vmul.f32 %v3037, %v477
        %v3074 = vmul.f32 %v3040, %v477
        %v3075 = vmul.f32 %v3043, %v477
        %v3076 = vmul.f32 %v3046, %v477
        %v3077 = vmul.f32 %v3049, %v477
        %v3078 = vmul.f32 %v3052, %v477
        %v3079 = vmul.f32 %v3055, %v477
        %v3080 = vmul.f32 %v3058, %v477
        %v3081 = vmul.f32 %v3061, %v477
        %v3082 = vmul.f32 %v3064, %v477
        %v3083 = vmul.f32 %v3067, %v477
        %v3084 = vadd.f32 %v3068, 1e-05
        %v3085 = vadd.f32 %v3069, 1e-05
        %v3086 = vadd.f32 %v3070, 1e-05
        %v3087 = vadd.f32 %v3071, 1e-05
        %v3088 = vadd.f32 %v3072, 1e-05
        %v3089 = vadd.f32 %v3073, 1e-05
        %v3090 = vadd.f32 %v3074, 1e-05
        %v3091 = vadd.f32 %v3075, 1e-05
        %v3092 = vadd.f32 %v3076, 1e-05
        %v3093 = vadd.f32 %v3077, 1e-05
        %v3094 = vadd.f32 %v3078, 1e-05
        %v3095 = vadd.f32 %v3079, 1e-05
        %v3096 = vadd.f32 %v3080, 1e-05
        %v3097 = vadd.f32 %v3081, 1e-05
        %v3098 = vadd.f32 %v3082, 1e-05
        %v3099 = vadd.f32 %v3083, 1e-05
        %v3100 = vrsqrt.pop %v3084
        %v3101 = vrsqrt.pop %v3085
        %v3102 = vrsqrt.pop %v3086
        %v3103 = vrsqrt.pop %v3087
        %v3104 = vrsqrt.pop %v3088
        %v3105 = vrsqrt.pop %v3089
        %v3106 = vrsqrt.pop %v3090
        %v3107 = vrsqrt.pop %v3091
        %v3108 = vrsqrt.pop %v3092
        %v3109 = vrsqrt.pop %v3093
        %v3110 = vrsqrt.pop %v3094
        %v3111 = vrsqrt.pop %v3095
        %v3112 = vrsqrt.pop %v3096
        %v3113 = vrsqrt.pop %v3097
        %v3114 = vrsqrt.pop %v3098
        %v3115 = vrsqrt.pop %v3099
        %v3116 = vmul.f32 %v2988, %v3100
        %v3117 = vmul.f32 %v2989, %v3101
        %v3118 = vmul.f32 %v2990, %v3102
        %v3119 = vmul.f32 %v2991, %v3103
        %v3120 = vmul.f32 %v2992, %v3104
        %v3121 = vmul.f32 %v2993, %v3105
        %v3122 = vmul.f32 %v2994, %v3106
        %v3123 = vmul.f32 %v2995, %v3107
        %v3124 = vmul.f32 %v2996, %v3108
        %v3125 = vmul.f32 %v2997, %v3109
        %v3126 = vmul.f32 %v2998, %v3110
        %v3127 = vmul.f32 %v2999, %v3111
        %v3128 = vmul.f32 %v3000, %v3112
        %v3129 = vmul.f32 %v3001, %v3113
        %v3130 = vmul.f32 %v3002, %v3114
        %v3131 = vmul.f32 %v3003, %v3115
        %v3132 = vlaneseq
        %v3133 = vshrl.u32 %v3132, 7
        %v3134 = vsub.s32 0, %v3133
        %v3135 = vrot.slane %v2922, %v3134
        %v3136 = vmul.f32 %v3116, %v3135
        %v3137 = vmul.f32 %v3117, %v3135
        %v3138 = vmul.f32 %v3118, %v3135
        %v3139 = vmul.f32 %v3119, %v3135
        %v3140 = vmul.f32 %v3120, %v3135
        %v3141 = vmul.f32 %v3121, %v3135
        %v3142 = vmul.f32 %v3122, %v3135
        %v3143 = vmul.f32 %v3123, %v3135
        %v3144 = vmul.f32 %v3124, %v3135
        %v3145 = vmul.f32 %v3125, %v3135
        %v3146 = vmul.f32 %v3126, %v3135
        %v3147 = vmul.f32 %v3127, %v3135
        %v3148 = vmul.f32 %v3128, %v3135
        %v3149 = vmul.f32 %v3129, %v3135
        %v3150 = vmul.f32 %v3130, %v3135
        %v3151 = vmul.f32 %v3131, %v3135
        %v3152 = vlaneseq
        %v3153 = vshrl.u32 %v3152, 7
        %v3154 = vsub.s32 0, %v3153
        %v3155 = vrot.slane %v2923, %v3154
        %v3156 = vadd.f32 %v3136, %v3155
        %v3157 = vadd.f32 %v3137, %v3155
        %v3158 = vadd.f32 %v3138, %v3155
        %v3159 = vadd.f32 %v3139, %v3155
        %v3160 = vadd.f32 %v3140, %v3155
        %v3161 = vadd.f32 %v3141, %v3155
        %v3162 = vadd.f32 %v3142, %v3155
        %v3163 = vadd.f32 %v3143, %v3155
        %v3164 = vadd.f32 %v3144, %v3155
        %v3165 = vadd.f32 %v3145, %v3155
        %v3166 = vadd.f32 %v3146, %v3155
        %v3167 = vadd.f32 %v3147, %v3155
        %v3168 = vadd.f32 %v3148, %v3155
        %v3169 = vadd.f32 %v3149, %v3155
        %v3170 = vadd.f32 %v3150, %v3155
        %v3171 = vadd.f32 %v3151, %v3155
        %v3172 = vpack.c.bf16 %v3157, %v3156
        %v3173 = vpack.c.bf16 %v3159, %v3158
        %v3174 = vpack.c.bf16 %v3161, %v3160
        %v3175 = vpack.c.bf16 %v3163, %v3162
        %v3176 = vpack.c.bf16 %v3165, %v3164
        %v3177 = vpack.c.bf16 %v3167, %v3166
        %v3178 = vpack.c.bf16 %v3169, %v3168
        %v3179 = vpack.c.bf16 %v3171, %v3170
        %v3180 = vld [vmem:[#allocation7] sm:$0xf]
        %v3181 = vld [vmem:[#allocation7 + $0x4] sm:$0xf]
        %v3182 = vld [vmem:[#allocation7 + $0x8] sm:$0xf]
        %v3183 = vld [vmem:[#allocation7 + $0xc] sm:$0xf]
        %v3184 = vld [vmem:[%s1 + $0x8] sm:$0x1]
        %v3185 = vlaneseq
        %v3186 = vshrl.u32 %v3185, 7
        %v3187 = vsub.s32 0, %v3186
        %v3188 = vrot.slane %v3184, %v3187
        %v3193 = vunpack.c.l.b16 %v3180
        %v3194 = vunpack.c.l.b16 %v3181
        %v3195 = vunpack.c.l.b16 %v3182
        %v3196 = vunpack.c.l.b16 %v3183
        %v3197 = vpack.c.b16 %v3194, %v3193
        %v3198 = vpack.c.b16 %v3196, %v3195
        %v3202 = vsel %vm428, %v3172, 0
        %v3205 = vsel %vm428, %v3173, 0
        %v3208 = vsel %vm428, %v3174, 0
        %v3211 = vsel %vm428, %v3175, 0
        %v3214 = vsel %vm428, %v3176, 0
        %v3217 = vsel %vm428, %v3177, 0
        %v3220 = vsel %vm428, %v3178, 0
        %v3223 = vsel %vm428, %v3179, 0
        %3225 = vmatprep.subr.bf16.mxu0 0
        %3226 = vmatpush1.bf16.msra.mxu0 0
        %3227 = vmatprep.subr.bf16.mxu0 0
        %3228 = vmatpush1.bf16.msra.mxu0 0
        %3229 = vmatprep.subr.bf16.mxu0 0
        %3230 = vmatpush1.bf16.msra.mxu0 0
        %3231 = vmatprep.subr.bf16.mxu0 0
        %3232 = vmatpush1.bf16.msra.mxu0 0
        %3233 = vmatprep.subr.bf16.mxu0 0
        %3234 = vmatpush1.bf16.msra.mxu0 0
        %3235 = vmatprep.subr.bf16.mxu0 0
        %3236 = vmatpush1.bf16.msra.mxu0 0
        %3237 = vmatprep.subr.bf16.mxu0 0
        %3238 = vmatpush1.bf16.msra.mxu0 %v3198
        %3239 = vmatprep.subr.bf16.mxu0 0
        %3240 = vmatpush1.bf16.msra.mxu0 %v3197
        %3241 = vmatprep.subr.bf16.mxu0 0
        %3242 = vmatpush2.bf16.msra.mxu0 0
        %3243 = vmatprep.subr.bf16.mxu0 0
        %3244 = vmatpush2.bf16.msra.mxu0 0
        %3245 = vmatprep.subr.bf16.mxu0 0
        %3246 = vmatpush2.bf16.msra.mxu0 0
        %3247 = vmatprep.subr.bf16.mxu0 0
        %3248 = vmatpush2.bf16.msra.mxu0 0
        %3249 = vmatprep.subr.bf16.mxu0 0
        %3250 = vmatpush2.bf16.msra.mxu0 0
        %3251 = vmatprep.subr.bf16.mxu0 0
        %3252 = vmatpush2.bf16.msra.mxu0 0
        %3253 = vmatprep.subr.bf16.mxu0 0
        %3254 = vmatpush2.bf16.msra.mxu0 0
        %3255 = vmatprep.subr.bf16.mxu0 0
        %3256 = vmatpush2.bf16.msra.mxu0 0
        %3257 = vmatprep.mubr.bf16.mxu0 0
        %3258 = vmatmul.mubr.bf16.gmra.mxu0 %v3202
        %v3259 = vpop.f32.mrf.mxu0
        %v3260 = vadd.f32 %v3188, %v3259
        %v3261 = vpop.f32.mrf.mxu0
        %v3262 = vpop.f32.mrf.mxu0
        %v3263 = vadd.f32 %v3188, %v3262
        %v3264 = vpop.f32.mrf.mxu0
        %3265 = vmatprep.mubr.bf16.mxu0 0
        %3266 = vmatmul.mubr.bf16.gmra.mxu0 %v3205
        %v3267 = vpop.f32.mrf.mxu0
        %v3268 = vadd.f32 %v3188, %v3267
        %v3269 = vpop.f32.mrf.mxu0
        %v3270 = vpop.f32.mrf.mxu0
        %v3271 = vadd.f32 %v3188, %v3270
        %v3272 = vpop.f32.mrf.mxu0
        %3273 = vmatprep.mubr.bf16.mxu0 0
        %3274 = vmatmul.mubr.bf16.gmra.mxu0 %v3208
        %v3275 = vpop.f32.mrf.mxu0
        %v3276 = vadd.f32 %v3188, %v3275
        %v3277 = vpop.f32.mrf.mxu0
        %v3278 = vpop.f32.mrf.mxu0
        %v3279 = vadd.f32 %v3188, %v3278
        %v3280 = vpop.f32.mrf.mxu0
        %3281 = vmatprep.mubr.bf16.mxu0 0
        %3282 = vmatmul.mubr.bf16.gmra.mxu0 %v3211
        %v3283 = vpop.f32.mrf.mxu0
        %v3284 = vadd.f32 %v3188, %v3283
        %v3285 = vpop.f32.mrf.mxu0
        %v3286 = vpop.f32.mrf.mxu0
        %v3287 = vadd.f32 %v3188, %v3286
        %v3288 = vpop.f32.mrf.mxu0
        %3289 = vmatprep.mubr.bf16.mxu0 0
        %3290 = vmatmul.mubr.bf16.gmra.mxu0 %v3214
        %v3291 = vpop.f32.mrf.mxu0
        %v3292 = vadd.f32 %v3188, %v3291
        %v3293 = vpop.f32.mrf.mxu0
        %v3294 = vpop.f32.mrf.mxu0
        %v3295 = vadd.f32 %v3188, %v3294
        %v3296 = vpop.f32.mrf.mxu0
        %3297 = vmatprep.mubr.bf16.mxu0 0
        %3298 = vmatmul.mubr.bf16.gmra.mxu0 %v3217
        %v3299 = vpop.f32.mrf.mxu0
        %v3300 = vadd.f32 %v3188, %v3299
        %v3301 = vpop.f32.mrf.mxu0
        %v3302 = vpop.f32.mrf.mxu0
        %v3303 = vadd.f32 %v3188, %v3302
        %v3304 = vpop.f32.mrf.mxu0
        %3305 = vmatprep.mubr.bf16.mxu0 0
        %3306 = vmatmul.mubr.bf16.gmra.mxu0 %v3220
        %v3307 = vpop.f32.mrf.mxu0
        %v3308 = vadd.f32 %v3188, %v3307
        %v3309 = vpop.f32.mrf.mxu0
        %v3310 = vpop.f32.mrf.mxu0
        %v3311 = vadd.f32 %v3188, %v3310
        %v3312 = vpop.f32.mrf.mxu0
        %3313 = vmatprep.mubr.bf16.mxu0 0
        %3314 = vmatmul.mubr.bf16.gmra.mxu0 %v3223
        %v3315 = vpop.f32.mrf.mxu0
        %v3316 = vadd.f32 %v3188, %v3315
        %v3317 = vpop.f32.mrf.mxu0
        %v3318 = vpop.f32.mrf.mxu0
        %v3319 = vadd.f32 %v3188, %v3318
        %v3320 = vpop.f32.mrf.mxu0
        %3321 = vdwg.mxu0
        %v3322 = vmul.f32 %v3260, %v3260
        %v3323 = vmul.f32 %v3263, %v3263
        %v3324 = vmul.f32 %v3268, %v3268
        %v3325 = vmul.f32 %v3271, %v3271
        %v3326 = vmul.f32 %v3276, %v3276
        %v3327 = vmul.f32 %v3279, %v3279
        %v3328 = vmul.f32 %v3284, %v3284
        %v3329 = vmul.f32 %v3287, %v3287
        %v3330 = vmul.f32 %v3292, %v3292
        %v3331 = vmul.f32 %v3295, %v3295
        %v3332 = vmul.f32 %v3300, %v3300
        %v3333 = vmul.f32 %v3303, %v3303
        %v3334 = vmul.f32 %v3308, %v3308
        %v3335 = vmul.f32 %v3311, %v3311
        %v3336 = vmul.f32 %v3316, %v3316
        %v3337 = vmul.f32 %v3319, %v3319
        %v3338 = vmul.f32 %v3260, %v3322
        %v3339 = vmul.f32 %v3263, %v3323
        %v3340 = vmul.f32 %v3268, %v3324
        %v3341 = vmul.f32 %v3271, %v3325
        %v3342 = vmul.f32 %v3276, %v3326
        %v3343 = vmul.f32 %v3279, %v3327
        %v3344 = vmul.f32 %v3284, %v3328
        %v3345 = vmul.f32 %v3287, %v3329
        %v3346 = vmul.f32 %v3292, %v3330
        %v3347 = vmul.f32 %v3295, %v3331
        %v3348 = vmul.f32 %v3300, %v3332
        %v3349 = vmul.f32 %v3303, %v3333
        %v3350 = vmul.f32 %v3308, %v3334
        %v3351 = vmul.f32 %v3311, %v3335
        %v3352 = vmul.f32 %v3316, %v3336
        %v3353 = vmul.f32 %v3319, %v3337
        %v3354 = vmul.f32 %v3338, 0.044715
        %v3355 = vmul.f32 %v3339, 0.044715
        %v3356 = vmul.f32 %v3340, 0.044715
        %v3357 = vmul.f32 %v3341, 0.044715
        %v3358 = vmul.f32 %v3342, 0.044715
        %v3359 = vmul.f32 %v3343, 0.044715
        %v3360 = vmul.f32 %v3344, 0.044715
        %v3361 = vmul.f32 %v3345, 0.044715
        %v3362 = vmul.f32 %v3346, 0.044715
        %v3363 = vmul.f32 %v3347, 0.044715
        %v3364 = vmul.f32 %v3348, 0.044715
        %v3365 = vmul.f32 %v3349, 0.044715
        %v3366 = vmul.f32 %v3350, 0.044715
        %v3367 = vmul.f32 %v3351, 0.044715
        %v3368 = vmul.f32 %v3352, 0.044715
        %v3369 = vmul.f32 %v3353, 0.044715
        %v3370 = vadd.f32 %v3260, %v3354
        %v3371 = vadd.f32 %v3263, %v3355
        %v3372 = vadd.f32 %v3268, %v3356
        %v3373 = vadd.f32 %v3271, %v3357
        %v3374 = vadd.f32 %v3276, %v3358
        %v3375 = vadd.f32 %v3279, %v3359
        %v3376 = vadd.f32 %v3284, %v3360
        %v3377 = vadd.f32 %v3287, %v3361
        %v3378 = vadd.f32 %v3292, %v3362
        %v3379 = vadd.f32 %v3295, %v3363
        %v3380 = vadd.f32 %v3300, %v3364
        %v3381 = vadd.f32 %v3303, %v3365
        %v3382 = vadd.f32 %v3308, %v3366
        %v3383 = vadd.f32 %v3311, %v3367
        %v3384 = vadd.f32 %v3316, %v3368
        %v3385 = vadd.f32 %v3319, %v3369
        %v3386 = vmul.f32 %v3370, 0.7978846
        %v3387 = vmul.f32 %v3371, 0.7978846
        %v3388 = vmul.f32 %v3372, 0.7978846
        %v3389 = vmul.f32 %v3373, 0.7978846
        %v3390 = vmul.f32 %v3374, 0.7978846
        %v3391 = vmul.f32 %v3375, 0.7978846
        %v3392 = vmul.f32 %v3376, 0.7978846
        %v3393 = vmul.f32 %v3377, 0.7978846
        %v3394 = vmul.f32 %v3378, 0.7978846
        %v3395 = vmul.f32 %v3379, 0.7978846
        %v3396 = vmul.f32 %v3380, 0.7978846
        %v3397 = vmul.f32 %v3381, 0.7978846
        %v3398 = vmul.f32 %v3382, 0.7978846
        %v3399 = vmul.f32 %v3383, 0.7978846
        %v3400 = vmul.f32 %v3384, 0.7978846
        %v3401 = vmul.f32 %v3385, 0.7978846
        %v3402 = vtanh.pop %v3386
        %v3403 = vtanh.pop %v3387
        %v3404 = vtanh.pop %v3388
        %v3405 = vtanh.pop %v3389
        %v3406 = vtanh.pop %v3390
        %v3407 = vtanh.pop %v3391
        %v3408 = vtanh.pop %v3392
        %v3409 = vtanh.pop %v3393
        %v3410 = vtanh.pop %v3394
        %v3411 = vtanh.pop %v3395
        %v3412 = vtanh.pop %v3396
        %v3413 = vtanh.pop %v3397
        %v3414 = vtanh.pop %v3398
        %v3415 = vtanh.pop %v3399
        %v3416 = vtanh.pop %v3400
        %v3417 = vtanh.pop %v3401
        %v3418 = vadd.f32 %v3402, 1.0
        %v3419 = vadd.f32 %v3403, 1.0
        %v3420 = vadd.f32 %v3404, 1.0
        %v3421 = vadd.f32 %v3405, 1.0
        %v3422 = vadd.f32 %v3406, 1.0
        %v3423 = vadd.f32 %v3407, 1.0
        %v3424 = vadd.f32 %v3408, 1.0
        %v3425 = vadd.f32 %v3409, 1.0
        %v3426 = vadd.f32 %v3410, 1.0
        %v3427 = vadd.f32 %v3411, 1.0
        %v3428 = vadd.f32 %v3412, 1.0
        %v3429 = vadd.f32 %v3413, 1.0
        %v3430 = vadd.f32 %v3414, 1.0
        %v3431 = vadd.f32 %v3415, 1.0
        %v3432 = vadd.f32 %v3416, 1.0
        %v3433 = vadd.f32 %v3417, 1.0
        %v3434 = vmul.f32 %v3418, 0.5
        %v3435 = vmul.f32 %v3419, 0.5
        %v3436 = vmul.f32 %v3420, 0.5
        %v3437 = vmul.f32 %v3421, 0.5
        %v3438 = vmul.f32 %v3422, 0.5
        %v3439 = vmul.f32 %v3423, 0.5
        %v3440 = vmul.f32 %v3424, 0.5
        %v3441 = vmul.f32 %v3425, 0.5
        %v3442 = vmul.f32 %v3426, 0.5
        %v3443 = vmul.f32 %v3427, 0.5
        %v3444 = vmul.f32 %v3428, 0.5
        %v3445 = vmul.f32 %v3429, 0.5
        %v3446 = vmul.f32 %v3430, 0.5
        %v3447 = vmul.f32 %v3431, 0.5
        %v3448 = vmul.f32 %v3432, 0.5
        %v3449 = vmul.f32 %v3433, 0.5
        %v3450 = vmul.f32 %v3260, %v3434
        %v3451 = vmul.f32 %v3263, %v3435
        %v3452 = vmul.f32 %v3268, %v3436
        %v3453 = vmul.f32 %v3271, %v3437
        %v3454 = vmul.f32 %v3276, %v3438
        %v3455 = vmul.f32 %v3279, %v3439
        %v3456 = vmul.f32 %v3284, %v3440
        %v3457 = vmul.f32 %v3287, %v3441
        %v3458 = vmul.f32 %v3292, %v3442
        %v3459 = vmul.f32 %v3295, %v3443
        %v3460 = vmul.f32 %v3300, %v3444
        %v3461 = vmul.f32 %v3303, %v3445
        %v3462 = vmul.f32 %v3308, %v3446
        %v3463 = vmul.f32 %v3311, %v3447
        %v3464 = vmul.f32 %v3316, %v3448
        %v3465 = vmul.f32 %v3319, %v3449
        %v3466 = vpack.c.bf16 %v3451, %v3450
        %v3467 = vpack.c.bf16 %v3453, %v3452
        %v3468 = vpack.c.bf16 %v3455, %v3454
        %v3469 = vpack.c.bf16 %v3457, %v3456
        %v3470 = vpack.c.bf16 %v3459, %v3458
        %v3471 = vpack.c.bf16 %v3461, %v3460
        %v3472 = vpack.c.bf16 %v3463, %v3462
        %v3473 = vpack.c.bf16 %v3465, %v3464
        %v3474 = vld [vmem:[%s8] sm:$0xf]
        %v3475 = vld [vmem:[%s8 + $0x4] sm:$0xf]
        %v3476 = vld [vmem:[%s8 + $0x8] sm:$0xf]
        %v3477 = vld [vmem:[%s8 + $0xc] sm:$0xf]
        %v3478 = vld [vmem:[%s8 + $0x10] sm:$0xf]
        %v3479 = vld [vmem:[%s8 + $0x14] sm:$0xf]
        %v3480 = vld [vmem:[%s8 + $0x18] sm:$0xf]
        %v3481 = vld [vmem:[%s8 + $0x1c] sm:$0xf]
        %v3482 = vld [vmem:[%s8 + $0x20] sm:$0xf]
        %v3483 = vld [vmem:[%s8 + $0x24] sm:$0xf]
        %v3484 = vld [vmem:[%s8 + $0x28] sm:$0xf]
        %v3485 = vld [vmem:[%s8 + $0x2c] sm:$0xf]
        %v3486 = vld [vmem:[%s8 + $0x30] sm:$0xf]
        %v3487 = vld [vmem:[%s8 + $0x34] sm:$0xf]
        %v3488 = vld [vmem:[%s8 + $0x38] sm:$0xf]
        %v3489 = vld [vmem:[%s8 + $0x3c] sm:$0xf]
        %v3506 = vunpack.c.l.b16 %v3474
        %v3507 = vunpack.c.l.b16 %v3475
        %v3508 = vunpack.c.l.b16 %v3476
        %v3509 = vunpack.c.l.b16 %v3477
        %v3510 = vunpack.c.l.b16 %v3478
        %v3511 = vunpack.c.l.b16 %v3479
        %v3512 = vunpack.c.l.b16 %v3480
        %v3513 = vunpack.c.l.b16 %v3481
        %v3514 = vunpack.c.l.b16 %v3482
        %v3515 = vunpack.c.l.b16 %v3483
        %v3516 = vunpack.c.l.b16 %v3484
        %v3517 = vunpack.c.l.b16 %v3485
        %v3518 = vunpack.c.l.b16 %v3486
        %v3519 = vunpack.c.l.b16 %v3487
        %v3520 = vunpack.c.l.b16 %v3488
        %v3521 = vunpack.c.l.b16 %v3489
        %v3522 = vpack.c.b16 %v3507, %v3506
        %v3523 = vpack.c.b16 %v3509, %v3508
        %v3524 = vpack.c.b16 %v3511, %v3510
        %v3525 = vpack.c.b16 %v3513, %v3512
        %v3526 = vpack.c.b16 %v3515, %v3514
        %v3527 = vpack.c.b16 %v3517, %v3516
        %v3528 = vpack.c.b16 %v3519, %v3518
        %v3529 = vpack.c.b16 %v3521, %v3520
        %3538 = vmatprep.subr.bf16.mxu0 0
        %3539 = vmatpush1.bf16.msra.mxu0 %v3529
        %3540 = vmatprep.subr.bf16.mxu0 0
        %3541 = vmatpush1.bf16.msra.mxu0 %v3528
        %3542 = vmatprep.subr.bf16.mxu0 0
        %3543 = vmatpush1.bf16.msra.mxu0 %v3527
        %3544 = vmatprep.subr.bf16.mxu0 0
        %3545 = vmatpush1.bf16.msra.mxu0 %v3526
        %3546 = vmatprep.subr.bf16.mxu0 0
        %3547 = vmatpush1.bf16.msra.mxu0 %v3525
        %3548 = vmatprep.subr.bf16.mxu0 0
        %3549 = vmatpush1.bf16.msra.mxu0 %v3524
        %3550 = vmatprep.subr.bf16.mxu0 0
        %3551 = vmatpush1.bf16.msra.mxu0 %v3523
        %3552 = vmatprep.subr.bf16.mxu0 0
        %3553 = vmatpush1.bf16.msra.mxu0 %v3522
        %3554 = vmatprep.subr.bf16.mxu0 0
        %3555 = vmatpush2.bf16.msra.mxu0 0
        %3556 = vmatprep.subr.bf16.mxu0 0
        %3557 = vmatpush2.bf16.msra.mxu0 0
        %3558 = vmatprep.subr.bf16.mxu0 0
        %3559 = vmatpush2.bf16.msra.mxu0 0
        %3560 = vmatprep.subr.bf16.mxu0 0
        %3561 = vmatpush2.bf16.msra.mxu0 0
        %3562 = vmatprep.subr.bf16.mxu0 0
        %3563 = vmatpush2.bf16.msra.mxu0 0
        %3564 = vmatprep.subr.bf16.mxu0 0
        %3565 = vmatpush2.bf16.msra.mxu0 0
        %3566 = vmatprep.subr.bf16.mxu0 0
        %3567 = vmatpush2.bf16.msra.mxu0 0
        %3568 = vmatprep.subr.bf16.mxu0 0
        %3569 = vmatpush2.bf16.msra.mxu0 0
        %3570 = vmatprep.mubr.bf16.mxu0 0
        %3571 = vmatmul.mubr.bf16.gmra.mxu0 %v3466
        %v3572 = vpop.f32.mrf.mxu0
        %v3573 = vadd.f32 0.0, %v3572
        %v3574 = vpop.f32.mrf.mxu0
        %v3575 = vpop.f32.mrf.mxu0
        %v3576 = vadd.f32 0.0, %v3575
        %v3577 = vpop.f32.mrf.mxu0
        %3578 = vmatprep.mubr.bf16.mxu0 0
        %3579 = vmatmul.mubr.bf16.gmra.mxu0 %v3467
        %v3580 = vpop.f32.mrf.mxu0
        %v3581 = vadd.f32 0.0, %v3580
        %v3582 = vpop.f32.mrf.mxu0
        %v3583 = vpop.f32.mrf.mxu0
        %v3584 = vadd.f32 0.0, %v3583
        %v3585 = vpop.f32.mrf.mxu0
        %3586 = vmatprep.mubr.bf16.mxu0 0
        %3587 = vmatmul.mubr.bf16.gmra.mxu0 %v3468
        %v3588 = vpop.f32.mrf.mxu0
        %v3589 = vadd.f32 0.0, %v3588
        %v3590 = vpop.f32.mrf.mxu0
        %v3591 = vpop.f32.mrf.mxu0
        %v3592 = vadd.f32 0.0, %v3591
        %v3593 = vpop.f32.mrf.mxu0
        %3594 = vmatprep.mubr.bf16.mxu0 0
        %3595 = vmatmul.mubr.bf16.gmra.mxu0 %v3469
        %v3596 = vpop.f32.mrf.mxu0
        %v3597 = vadd.f32 0.0, %v3596
        %v3598 = vpop.f32.mrf.mxu0
        %v3599 = vpop.f32.mrf.mxu0
        %v3600 = vadd.f32 0.0, %v3599
        %v3601 = vpop.f32.mrf.mxu0
        %3602 = vmatprep.mubr.bf16.mxu0 0
        %3603 = vmatmul.mubr.bf16.gmra.mxu0 %v3470
        %v3604 = vpop.f32.mrf.mxu0
        %v3605 = vadd.f32 0.0, %v3604
        %v3606 = vpop.f32.mrf.mxu0
        %v3607 = vpop.f32.mrf.mxu0
        %v3608 = vadd.f32 0.0, %v3607
        %v3609 = vpop.f32.mrf.mxu0
        %3610 = vmatprep.mubr.bf16.mxu0 0
        %3611 = vmatmul.mubr.bf16.gmra.mxu0 %v3471
        %v3612 = vpop.f32.mrf.mxu0
        %v3613 = vadd.f32 0.0, %v3612
        %v3614 = vpop.f32.mrf.mxu0
        %v3615 = vpop.f32.mrf.mxu0
        %v3616 = vadd.f32 0.0, %v3615
        %v3617 = vpop.f32.mrf.mxu0
        %3618 = vmatprep.mubr.bf16.mxu0 0
        %3619 = vmatmul.mubr.bf16.gmra.mxu0 %v3472
        %v3620 = vpop.f32.mrf.mxu0
        %v3621 = vadd.f32 0.0, %v3620
        %v3622 = vpop.f32.mrf.mxu0
        %v3623 = vpop.f32.mrf.mxu0
        %v3624 = vadd.f32 0.0, %v3623
        %v3625 = vpop.f32.mrf.mxu0
        %3626 = vmatprep.mubr.bf16.mxu0 0
        %3627 = vmatmul.mubr.bf16.gmra.mxu0 %v3473
        %v3628 = vpop.f32.mrf.mxu0
        %v3629 = vadd.f32 0.0, %v3628
        %v3630 = vpop.f32.mrf.mxu0
        %v3631 = vpop.f32.mrf.mxu0
        %v3632 = vadd.f32 0.0, %v3631
        %v3633 = vpop.f32.mrf.mxu0
        %3634 = vdwg.mxu0
        %v3635 = vadd.f32 %v2906, %v3573
        %v3636 = vadd.f32 %v2907, %v3576
        %v3637 = vadd.f32 %v2908, %v3581
        %v3638 = vadd.f32 %v2909, %v3584
        %v3639 = vadd.f32 %v2910, %v3589
        %v3640 = vadd.f32 %v2911, %v3592
        %v3641 = vadd.f32 %v2912, %v3597
        %v3642 = vadd.f32 %v2913, %v3600
        %v3643 = vadd.f32 %v2914, %v3605
        %v3644 = vadd.f32 %v2915, %v3608
        %v3645 = vadd.f32 %v2916, %v3613
        %v3646 = vadd.f32 %v2917, %v3616
        %v3647 = vadd.f32 %v2918, %v3621
        %v3648 = vadd.f32 %v2919, %v3624
        %v3649 = vadd.f32 %v2920, %v3629
        %v3650 = vadd.f32 %v2921, %v3632
        %v3651 = vld [vmem:[%s1 + $0x9] sm:$0x1]
        %v3652 = vlaneseq
        %v3653 = vshrl.u32 %v3652, 7
        %v3654 = vsub.s32 0, %v3653
        %v3655 = vrot.slane %v3651, %v3654
        %v3656 = vadd.f32 %v3635, %v3655
        %v3657 = vadd.f32 %v3636, %v3655
        %v3658 = vadd.f32 %v3637, %v3655
        %v3659 = vadd.f32 %v3638, %v3655
        %v3660 = vadd.f32 %v3639, %v3655
        %v3661 = vadd.f32 %v3640, %v3655
        %v3662 = vadd.f32 %v3641, %v3655
        %v3663 = vadd.f32 %v3642, %v3655
        %v3664 = vadd.f32 %v3643, %v3655
        %v3665 = vadd.f32 %v3644, %v3655
        %v3666 = vadd.f32 %v3645, %v3655
        %v3667 = vadd.f32 %v3646, %v3655
        %v3668 = vadd.f32 %v3647, %v3655
        %v3669 = vadd.f32 %v3648, %v3655
        %v3670 = vadd.f32 %v3649, %v3655
        %v3671 = vadd.f32 %v3650, %v3655
        %v3672 = vld [vmem:[%s1 + $0xa] sm:$0x1]
        %v3673 = vld [vmem:[%s1 + $0xb] sm:$0x1]
        %v3674 = vsel %vm428, %v3656, 0.0
        %3675 = vadd.xlane.f32.xlu0 %v3674
        %v3676 = vpop.xlane.xlu0 %3675
        %v3677 = vsel %vm428, %v3657, 0.0
        %3678 = vadd.xlane.f32.xlu0 %v3677
        %v3679 = vpop.xlane.xlu0 %3678
        %v3680 = vsel %vm428, %v3658, 0.0
        %3681 = vadd.xlane.f32.xlu0 %v3680
        %v3682 = vpop.xlane.xlu0 %3681
        %v3683 = vsel %vm428, %v3659, 0.0
        %3684 = vadd.xlane.f32.xlu0 %v3683
        %v3685 = vpop.xlane.xlu0 %3684
        %v3686 = vsel %vm428, %v3660, 0.0
        %3687 = vadd.xlane.f32.xlu0 %v3686
        %v3688 = vpop.xlane.xlu0 %3687
        %v3689 = vsel %vm428, %v3661, 0.0
        %3690 = vadd.xlane.f32.xlu0 %v3689
        %v3691 = vpop.xlane.xlu0 %3690
        %v3692 = vsel %vm428, %v3662, 0.0
        %3693 = vadd.xlane.f32.xlu0 %v3692
        %v3694 = vpop.xlane.xlu0 %3693
        %v3695 = vsel %vm428, %v3663, 0.0
        %3696 = vadd.xlane.f32.xlu0 %v3695
        %v3697 = vpop.xlane.xlu0 %3696
        %v3698 = vsel %vm428, %v3664, 0.0
        %3699 = vadd.xlane.f32.xlu0 %v3698
        %v3700 = vpop.xlane.xlu0 %3699
        %v3701 = vsel %vm428, %v3665, 0.0
        %3702 = vadd.xlane.f32.xlu0 %v3701
        %v3703 = vpop.xlane.xlu0 %3702
        %v3704 = vsel %vm428, %v3666, 0.0
        %3705 = vadd.xlane.f32.xlu0 %v3704
        %v3706 = vpop.xlane.xlu0 %3705
        %v3707 = vsel %vm428, %v3667, 0.0
        %3708 = vadd.xlane.f32.xlu0 %v3707
        %v3709 = vpop.xlane.xlu0 %3708
        %v3710 = vsel %vm428, %v3668, 0.0
        %3711 = vadd.xlane.f32.xlu0 %v3710
        %v3712 = vpop.xlane.xlu0 %3711
        %v3713 = vsel %vm428, %v3669, 0.0
        %3714 = vadd.xlane.f32.xlu0 %v3713
        %v3715 = vpop.xlane.xlu0 %3714
        %v3716 = vsel %vm428, %v3670, 0.0
        %3717 = vadd.xlane.f32.xlu0 %v3716
        %v3718 = vpop.xlane.xlu0 %3717
        %v3719 = vsel %vm428, %v3671, 0.0
        %3720 = vadd.xlane.f32.xlu0 %v3719
        %v3721 = vpop.xlane.xlu0 %3720
        %v3722 = vmul.f32 %v3676, %v477
        %v3723 = vmul.f32 %v3679, %v477
        %v3724 = vmul.f32 %v3682, %v477
        %v3725 = vmul.f32 %v3685, %v477
        %v3726 = vmul.f32 %v3688, %v477
        %v3727 = vmul.f32 %v3691, %v477
        %v3728 = vmul.f32 %v3694, %v477
        %v3729 = vmul.f32 %v3697, %v477
        %v3730 = vmul.f32 %v3700, %v477
        %v3731 = vmul.f32 %v3703, %v477
        %v3732 = vmul.f32 %v3706, %v477
        %v3733 = vmul.f32 %v3709, %v477
        %v3734 = vmul.f32 %v3712, %v477
        %v3735 = vmul.f32 %v3715, %v477
        %v3736 = vmul.f32 %v3718, %v477
        %v3737 = vmul.f32 %v3721, %v477
        %v3738 = vsub.f32 %v3656, %v3722
        %v3739 = vsub.f32 %v3657, %v3723
        %v3740 = vsub.f32 %v3658, %v3724
        %v3741 = vsub.f32 %v3659, %v3725
        %v3742 = vsub.f32 %v3660, %v3726
        %v3743 = vsub.f32 %v3661, %v3727
        %v3744 = vsub.f32 %v3662, %v3728
        %v3745 = vsub.f32 %v3663, %v3729
        %v3746 = vsub.f32 %v3664, %v3730
        %v3747 = vsub.f32 %v3665, %v3731
        %v3748 = vsub.f32 %v3666, %v3732
        %v3749 = vsub.f32 %v3667, %v3733
        %v3750 = vsub.f32 %v3668, %v3734
        %v3751 = vsub.f32 %v3669, %v3735
        %v3752 = vsub.f32 %v3670, %v3736
        %v3753 = vsub.f32 %v3671, %v3737
        %v3754 = vmul.f32 %v3738, %v3738
        %v3755 = vmul.f32 %v3739, %v3739
        %v3756 = vmul.f32 %v3740, %v3740
        %v3757 = vmul.f32 %v3741, %v3741
        %v3758 = vmul.f32 %v3742, %v3742
        %v3759 = vmul.f32 %v3743, %v3743
        %v3760 = vmul.f32 %v3744, %v3744
        %v3761 = vmul.f32 %v3745, %v3745
        %v3762 = vmul.f32 %v3746, %v3746
        %v3763 = vmul.f32 %v3747, %v3747
        %v3764 = vmul.f32 %v3748, %v3748
        %v3765 = vmul.f32 %v3749, %v3749
        %v3766 = vmul.f32 %v3750, %v3750
        %v3767 = vmul.f32 %v3751, %v3751
        %v3768 = vmul.f32 %v3752, %v3752
        %v3769 = vmul.f32 %v3753, %v3753
        %v3770 = vsel %vm428, %v3754, 0.0
        %3771 = vadd.xlane.f32.xlu0 %v3770
        %v3772 = vpop.xlane.xlu0 %3771
        %v3773 = vsel %vm428, %v3755, 0.0
        %3774 = vadd.xlane.f32.xlu0 %v3773
        %v3775 = vpop.xlane.xlu0 %3774
        %v3776 = vsel %vm428, %v3756, 0.0
        %3777 = vadd.xlane.f32.xlu0 %v3776
        %v3778 = vpop.xlane.xlu0 %3777
        %v3779 = vsel %vm428, %v3757, 0.0
        %3780 = vadd.xlane.f32.xlu0 %v3779
        %v3781 = vpop.xlane.xlu0 %3780
        %v3782 = vsel %vm428, %v3758, 0.0
        %3783 = vadd.xlane.f32.xlu0 %v3782
        %v3784 = vpop.xlane.xlu0 %3783
        %v3785 = vsel %vm428, %v3759, 0.0
        %3786 = vadd.xlane.f32.xlu0 %v3785
        %v3787 = vpop.xlane.xlu0 %3786
        %v3788 = vsel %vm428, %v3760, 0.0
        %3789 = vadd.xlane.f32.xlu0 %v3788
        %v3790 = vpop.xlane.xlu0 %3789
        %v3791 = vsel %vm428, %v3761, 0.0
        %3792 = vadd.xlane.f32.xlu0 %v3791
        %v3793 = vpop.xlane.xlu0 %3792
        %v3794 = vsel %vm428, %v3762, 0.0
        %3795 = vadd.xlane.f32.xlu0 %v3794
        %v3796 = vpop.xlane.xlu0 %3795
        %v3797 = vsel %vm428, %v3763, 0.0
        %3798 = vadd.xlane.f32.xlu0 %v3797
        %v3799 = vpop.xlane.xlu0 %3798
        %v3800 = vsel %vm428, %v3764, 0.0
        %3801 = vadd.xlane.f32.xlu0 %v3800
        %v3802 = vpop.xlane.xlu0 %3801
        %v3803 = vsel %vm428, %v3765, 0.0
        %3804 = vadd.xlane.f32.xlu0 %v3803
        %v3805 = vpop.xlane.xlu0 %3804
        %v3806 = vsel %vm428, %v3766, 0.0
        %3807 = vadd.xlane.f32.xlu0 %v3806
        %v3808 = vpop.xlane.xlu0 %3807
        %v3809 = vsel %vm428, %v3767, 0.0
        %3810 = vadd.xlane.f32.xlu0 %v3809
        %v3811 = vpop.xlane.xlu0 %3810
        %v3812 = vsel %vm428, %v3768, 0.0
        %3813 = vadd.xlane.f32.xlu0 %v3812
        %v3814 = vpop.xlane.xlu0 %3813
        %v3815 = vsel %vm428, %v3769, 0.0
        %3816 = vadd.xlane.f32.xlu0 %v3815
        %v3817 = vpop.xlane.xlu0 %3816
        %v3818 = vmul.f32 %v3772, %v477
        %v3819 = vmul.f32 %v3775, %v477
        %v3820 = vmul.f32 %v3778, %v477
        %v3821 = vmul.f32 %v3781, %v477
        %v3822 = vmul.f32 %v3784, %v477
        %v3823 = vmul.f32 %v3787, %v477
        %v3824 = vmul.f32 %v3790, %v477
        %v3825 = vmul.f32 %v3793, %v477
        %v3826 = vmul.f32 %v3796, %v477
        %v3827 = vmul.f32 %v3799, %v477
        %v3828 = vmul.f32 %v3802, %v477
        %v3829 = vmul.f32 %v3805, %v477
        %v3830 = vmul.f32 %v3808, %v477
        %v3831 = vmul.f32 %v3811, %v477
        %v3832 = vmul.f32 %v3814, %v477
        %v3833 = vmul.f32 %v3817, %v477
        %v3834 = vadd.f32 %v3818, 1e-05
        %v3835 = vadd.f32 %v3819, 1e-05
        %v3836 = vadd.f32 %v3820, 1e-05
        %v3837 = vadd.f32 %v3821, 1e-05
        %v3838 = vadd.f32 %v3822, 1e-05
        %v3839 = vadd.f32 %v3823, 1e-05
        %v3840 = vadd.f32 %v3824, 1e-05
        %v3841 = vadd.f32 %v3825, 1e-05
        %v3842 = vadd.f32 %v3826, 1e-05
        %v3843 = vadd.f32 %v3827, 1e-05
        %v3844 = vadd.f32 %v3828, 1e-05
        %v3845 = vadd.f32 %v3829, 1e-05
        %v3846 = vadd.f32 %v3830, 1e-05
        %v3847 = vadd.f32 %v3831, 1e-05
        %v3848 = vadd.f32 %v3832, 1e-05
        %v3849 = vadd.f32 %v3833, 1e-05
        %v3850 = vrsqrt.pop %v3834
        %v3851 = vrsqrt.pop %v3835
        %v3852 = vrsqrt.pop %v3836
        %v3853 = vrsqrt.pop %v3837
        %v3854 = vrsqrt.pop %v3838
        %v3855 = vrsqrt.pop %v3839
        %v3856 = vrsqrt.pop %v3840
        %v3857 = vrsqrt.pop %v3841
        %v3858 = vrsqrt.pop %v3842
        %v3859 = vrsqrt.pop %v3843
        %v3860 = vrsqrt.pop %v3844
        %v3861 = vrsqrt.pop %v3845
        %v3862 = vrsqrt.pop %v3846
        %v3863 = vrsqrt.pop %v3847
        %v3864 = vrsqrt.pop %v3848
        %v3865 = vrsqrt.pop %v3849
        %v3866 = vmul.f32 %v3738, %v3850
        %v3867 = vmul.f32 %v3739, %v3851
        %v3868 = vmul.f32 %v3740, %v3852
        %v3869 = vmul.f32 %v3741, %v3853
        %v3870 = vmul.f32 %v3742, %v3854
        %v3871 = vmul.f32 %v3743, %v3855
        %v3872 = vmul.f32 %v3744, %v3856
        %v3873 = vmul.f32 %v3745, %v3857
        %v3874 = vmul.f32 %v3746, %v3858
        %v3875 = vmul.f32 %v3747, %v3859
        %v3876 = vmul.f32 %v3748, %v3860
        %v3877 = vmul.f32 %v3749, %v3861
        %v3878 = vmul.f32 %v3750, %v3862
        %v3879 = vmul.f32 %v3751, %v3863
        %v3880 = vmul.f32 %v3752, %v3864
        %v3881 = vmul.f32 %v3753, %v3865
        %v3882 = vlaneseq
        %v3883 = vshrl.u32 %v3882, 7
        %v3884 = vsub.s32 0, %v3883
        %v3885 = vrot.slane %v3672, %v3884
        %v3886 = vmul.f32 %v3866, %v3885
        %v3887 = vmul.f32 %v3867, %v3885
        %v3888 = vmul.f32 %v3868, %v3885
        %v3889 = vmul.f32 %v3869, %v3885
        %v3890 = vmul.f32 %v3870, %v3885
        %v3891 = vmul.f32 %v3871, %v3885
        %v3892 = vmul.f32 %v3872, %v3885
        %v3893 = vmul.f32 %v3873, %v3885
        %v3894 = vmul.f32 %v3874, %v3885
        %v3895 = vmul.f32 %v3875, %v3885
        %v3896 = vmul.f32 %v3876, %v3885
        %v3897 = vmul.f32 %v3877, %v3885
        %v3898 = vmul.f32 %v3878, %v3885
        %v3899 = vmul.f32 %v3879, %v3885
        %v3900 = vmul.f32 %v3880, %v3885
        %v3901 = vmul.f32 %v3881, %v3885
        %v3902 = vlaneseq
        %v3903 = vshrl.u32 %v3902, 7
        %v3904 = vsub.s32 0, %v3903
        %v3905 = vrot.slane %v3673, %v3904
        %v3906 = vadd.f32 %v3886, %v3905
        %v3907 = vadd.f32 %v3887, %v3905
        %v3908 = vadd.f32 %v3888, %v3905
        %v3909 = vadd.f32 %v3889, %v3905
        %v3910 = vadd.f32 %v3890, %v3905
        %v3911 = vadd.f32 %v3891, %v3905
        %v3912 = vadd.f32 %v3892, %v3905
        %v3913 = vadd.f32 %v3893, %v3905
        %v3914 = vadd.f32 %v3894, %v3905
        %v3915 = vadd.f32 %v3895, %v3905
        %v3916 = vadd.f32 %v3896, %v3905
        %v3917 = vadd.f32 %v3897, %v3905
        %v3918 = vadd.f32 %v3898, %v3905
        %v3919 = vadd.f32 %v3899, %v3905
        %v3920 = vadd.f32 %v3900, %v3905
        %v3921 = vadd.f32 %v3901, %v3905
        %v3922 = vpack.c.bf16 %v3907, %v3906
        %v3923 = vpack.c.bf16 %v3909, %v3908
        %v3924 = vpack.c.bf16 %v3911, %v3910
        %v3925 = vpack.c.bf16 %v3913, %v3912
        %v3926 = vpack.c.bf16 %v3915, %v3914
        %v3927 = vpack.c.bf16 %v3917, %v3916
        %v3928 = vpack.c.bf16 %v3919, %v3918
        %v3929 = vpack.c.bf16 %v3921, %v3920
        %v3930 = vld [vmem:[%s9] sm:$0xf]
        %v3931 = vld [vmem:[%s9 + $0x4] sm:$0xf]
        %v3932 = vld [vmem:[%s9 + $0x8] sm:$0xf]
        %v3933 = vld [vmem:[%s9 + $0xc] sm:$0xf]
        %v3938 = vunpack.c.l.b16 %v3930
        %v3939 = vunpack.c.l.b16 %v3931
        %v3940 = vunpack.c.l.b16 %v3932
        %v3941 = vunpack.c.l.b16 %v3933
        %v3942 = vpack.c.b16 %v3939, %v3938
        %v3943 = vpack.c.b16 %v3941, %v3940
        %v3947 = vsel %vm428, %v3922, 0
        %v3950 = vsel %vm428, %v3923, 0
        %v3953 = vsel %vm428, %v3924, 0
        %v3956 = vsel %vm428, %v3925, 0
        %v3959 = vsel %vm428, %v3926, 0
        %v3962 = vsel %vm428, %v3927, 0
        %v3965 = vsel %vm428, %v3928, 0
        %v3968 = vsel %vm428, %v3929, 0
        %3970 = vmatprep.subr.bf16.mxu0 0
        %3971 = vmatpush1.bf16.msra.mxu0 0
        %3972 = vmatprep.subr.bf16.mxu0 0
        %3973 = vmatpush1.bf16.msra.mxu0 0
        %3974 = vmatprep.subr.bf16.mxu0 0
        %3975 = vmatpush1.bf16.msra.mxu0 0
        %3976 = vmatprep.subr.bf16.mxu0 0
        %3977 = vmatpush1.bf16.msra.mxu0 0
        %3978 = vmatprep.subr.bf16.mxu0 0
        %3979 = vmatpush1.bf16.msra.mxu0 0
        %3980 = vmatprep.subr.bf16.mxu0 0
        %3981 = vmatpush1.bf16.msra.mxu0 0
        %3982 = vmatprep.subr.bf16.mxu0 0
        %3983 = vmatpush1.bf16.msra.mxu0 %v3943
        %3984 = vmatprep.subr.bf16.mxu0 0
        %3985 = vmatpush1.bf16.msra.mxu0 %v3942
        %3986 = vmatprep.subr.bf16.mxu0 0
        %3987 = vmatpush2.bf16.msra.mxu0 0
        %3988 = vmatprep.subr.bf16.mxu0 0
        %3989 = vmatpush2.bf16.msra.mxu0 0
        %3990 = vmatprep.subr.bf16.mxu0 0
        %3991 = vmatpush2.bf16.msra.mxu0 0
        %3992 = vmatprep.subr.bf16.mxu0 0
        %3993 = vmatpush2.bf16.msra.mxu0 0
        %3994 = vmatprep.subr.bf16.mxu0 0
        %3995 = vmatpush2.bf16.msra.mxu0 0
        %3996 = vmatprep.subr.bf16.mxu0 0
        %3997 = vmatpush2.bf16.msra.mxu0 0
        %3998 = vmatprep.subr.bf16.mxu0 0
        %3999 = vmatpush2.bf16.msra.mxu0 0
        %4000 = vmatprep.subr.bf16.mxu0 0
        %4001 = vmatpush2.bf16.msra.mxu0 0
        %4002 = vmatprep.mubr.bf16.mxu0 0
        %4003 = vmatmul.mubr.bf16.gmra.mxu0 %v3947
        %v4004 = vpop.f32.mrf.mxu0
        %v4005 = vadd.f32 0.0, %v4004
        %v4006 = vpop.f32.mrf.mxu0
        %v4007 = vpop.f32.mrf.mxu0
        %v4008 = vadd.f32 0.0, %v4007
        %v4009 = vpop.f32.mrf.mxu0
        %4010 = vmatprep.mubr.bf16.mxu0 0
        %4011 = vmatmul.mubr.bf16.gmra.mxu0 %v3950
        %v4012 = vpop.f32.mrf.mxu0
        %v4013 = vadd.f32 0.0, %v4012
        %v4014 = vpop.f32.mrf.mxu0
        %v4015 = vpop.f32.mrf.mxu0
        %v4016 = vadd.f32 0.0, %v4015
        %v4017 = vpop.f32.mrf.mxu0
        %4018 = vmatprep.mubr.bf16.mxu0 0
        %4019 = vmatmul.mubr.bf16.gmra.mxu0 %v3953
        %v4020 = vpop.f32.mrf.mxu0
        %v4021 = vadd.f32 0.0, %v4020
        %v4022 = vpop.f32.mrf.mxu0
        %v4023 = vpop.f32.mrf.mxu0
        %v4024 = vadd.f32 0.0, %v4023
        %v4025 = vpop.f32.mrf.mxu0
        %4026 = vmatprep.mubr.bf16.mxu0 0
        %4027 = vmatmul.mubr.bf16.gmra.mxu0 %v3956
        %v4028 = vpop.f32.mrf.mxu0
        %v4029 = vadd.f32 0.0, %v4028
        %v4030 = vpop.f32.mrf.mxu0
        %v4031 = vpop.f32.mrf.mxu0
        %v4032 = vadd.f32 0.0, %v4031
        %v4033 = vpop.f32.mrf.mxu0
        %4034 = vmatprep.mubr.bf16.mxu0 0
        %4035 = vmatmul.mubr.bf16.gmra.mxu0 %v3959
        %v4036 = vpop.f32.mrf.mxu0
        %v4037 = vadd.f32 0.0, %v4036
        %v4038 = vpop.f32.mrf.mxu0
        %v4039 = vpop.f32.mrf.mxu0
        %v4040 = vadd.f32 0.0, %v4039
        %v4041 = vpop.f32.mrf.mxu0
        %4042 = vmatprep.mubr.bf16.mxu0 0
        %4043 = vmatmul.mubr.bf16.gmra.mxu0 %v3962
        %v4044 = vpop.f32.mrf.mxu0
        %v4045 = vadd.f32 0.0, %v4044
        %v4046 = vpop.f32.mrf.mxu0
        %v4047 = vpop.f32.mrf.mxu0
        %v4048 = vadd.f32 0.0, %v4047
        %v4049 = vpop.f32.mrf.mxu0
        %4050 = vmatprep.mubr.bf16.mxu0 0
        %4051 = vmatmul.mubr.bf16.gmra.mxu0 %v3965
        %v4052 = vpop.f32.mrf.mxu0
        %v4053 = vadd.f32 0.0, %v4052
        %v4054 = vpop.f32.mrf.mxu0
        %v4055 = vpop.f32.mrf.mxu0
        %v4056 = vadd.f32 0.0, %v4055
        %v4057 = vpop.f32.mrf.mxu0
        %4058 = vmatprep.mubr.bf16.mxu0 0
        %4059 = vmatmul.mubr.bf16.gmra.mxu0 %v3968
        %v4060 = vpop.f32.mrf.mxu0
        %v4061 = vadd.f32 0.0, %v4060
        %v4062 = vpop.f32.mrf.mxu0
        %v4063 = vpop.f32.mrf.mxu0
        %v4064 = vadd.f32 0.0, %v4063
        %v4065 = vpop.f32.mrf.mxu0
        %4066 = vdwg.mxu0
        %4067 = vst [vmem:[%s406] sm:$0xff] %v4005
        %4068 = vst [vmem:[%s406 + $0x8] sm:$0xff] %v4008
        %4069 = vst [vmem:[%s406 + $0x10] sm:$0xff] %v4013
        %4070 = vst [vmem:[%s406 + $0x18] sm:$0xff] %v4016
        %4071 = vst [vmem:[%s406 + $0x20] sm:$0xff] %v4021
        %4072 = vst [vmem:[%s406 + $0x28] sm:$0xff] %v4024
        %4073 = vst [vmem:[%s406 + $0x30] sm:$0xff] %v4029
        %4074 = vst [vmem:[%s406 + $0x38] sm:$0xff] %v4032
        %4075 = vst [vmem:[%s406 + $0x40] sm:$0xff] %v4037
        %4076 = vst [vmem:[%s406 + $0x48] sm:$0xff] %v4040
        %4077 = vst [vmem:[%s406 + $0x50] sm:$0xff] %v4045
        %4078 = vst [vmem:[%s406 + $0x58] sm:$0xff] %v4048
        %4079 = vst [vmem:[%s406 + $0x60] sm:$0xff] %v4053
        %4080 = vst [vmem:[%s406 + $0x68] sm:$0xff] %v4056
        %4081 = vst [vmem:[%s406 + $0x70] sm:$0xff] %v4061
        %4082 = vst [vmem:[%s406 + $0x78] sm:$0xff] %v4064
        %s4083 = sand.u32 %s251, 1
        %s4084 = scalar_lea.sflag [#allocation4], %s4083
        %s4085 = sand.u32 %s251, 1
        %s4086 = smul.addr %s4085, 128
        %s4087 = scalar_lea.vmem [#allocation8], %s4086
        // Predicated region
        $region73: #{tpu_custom_call.1} parent=59 // pred_check
          %p4088 = pneg %p261
        $region74: #{tpu_custom_call.1} parent=59 // pred_check_branch
          %4090 = sbr.rel (%p4088) target = $region76
        $region75: #{tpu_custom_call.1} parent=59 // pred_region
          %s4091 = smul.u32 16, %s28
          %s4093 = ssub.s32 2048, 2048
          %4094 = vsyncadd %s4084, %s4093
          %s4095 = smul.addr %s4091, 128
          %s4096 = scalar_lea.hbm %s10, %s4095
          %s4097 = sshll.u32 %s4087, 4
          %s4098 = int_to_ptr.vmem [resolvable:$true] %s4097
          %4103 = dma.vmem_to_hbm [thread:$0]  %s4098, 2048, %s4096, %s4084, 128, 128, 8
        $region76: #{tpu_custom_call.1} parent=59 // pred_fallthru
          _
      $region60: #{tpu_custom_call.1} parent=5 // pred_fallthru
        _
      %p4104 = scmp.le.s32.totalorder 2, %s23
      // Predicated region
      $region77: #{tpu_custom_call.1} parent=5 // pred_check
        %p4105 = pneg %p4104
      $region78: #{tpu_custom_call.1} parent=5 // pred_check_branch
        %4107 = sbr.rel (%p4105) target = $region80
      $region79: #{tpu_custom_call.1} parent=5 // pred_region
        %s4108 = ssub.s32 %s23, 2
        // Predicated region
        $region81: #{tpu_custom_call.1} parent=79 // pred_check
          %p4109 = pneg %p267
        $region82: #{tpu_custom_call.1} parent=79 // pred_check_branch
          %4111 = sbr.rel (%p4109) target = $region84
        $region83: #{tpu_custom_call.1} parent=79 // pred_region
          %s4112 = sand.u32 %s252, 1
          %s4113 = scalar_lea.sflag [#allocation4], %s4112
          %s4114 = sand.u32 %s252, 1
          %s4115 = smul.addr %s4114, 128
          %s4116 = scalar_lea.vmem [#allocation8], %s4115
          %4117 = dma.done %s4113, 2048
        $region84: #{tpu_custom_call.1} parent=79 // pred_fallthru
          _
      $region80: #{tpu_custom_call.1} parent=5 // pred_fallthru
        _
    $region6: #{tpu_custom_call.1} parent=1 // loop_footer
      %s27 = sadd.s32 1, %s23
    $region7: #{tpu_custom_call.1} parent=1 // loop_footer_branch
      %22 = sbr.rel target = $region3
    $region8: #{tpu_custom_call.1} parent=1 // loop_exit
      _
    %4118 = vsyncpa [#allocation3], 1
    %s4119 = scalar_lea.sflag [#allocation3], 1
    %4120 = vsyncpa %s4119, 1
    %4121 = vsyncpa [#allocation6], 1
    %4122 = vsyncpa [#allocation4], 1
    %s4123 = scalar_lea.sflag [#allocation4], 1
    %4124 = vsyncpa %s4123, 1

</llo_original>
